<compile_context>
chip_gen: v6e
topology: v6e:2x2x1
jax: 0.10.0
libtpu: 0.0.40
codegen_flags: <defaults>
</compile_context>

<pallas_src>
import jax
import jax.numpy as jnp
from jax.experimental import pallas as pl
from jax.experimental.pallas import tpu as pltpu

NUM_EMOTIONS = 6
NUM_BEHS = 5
HIDDEN = 128
NUM_LAYERS = 2
FC_MID = HIDDEN // 2  # 64


def emotion_seq2beh_kernel(x2e_ref, wih0e_ref, bhh0n_ref,
                           wfused_ref, whh1_ref, b1rz_ref, b1in_ref, b1hn_ref,
                           fw1_ref, fb1_ref, fw2_ref, fb2_ref,
                           out_ref,
                           gi0_s):
    H = HIDDEN
    Bp = out_ref.shape[0]          # padded batch (multiple of 16)
    T = x2e_ref.shape[0] // Bp     # static trip count

    # ---- Hoisted layer-0 input projection: one matmul for all T steps.
    # Biases (b_ih0 all gates + b_hh0 r/z halves) are folded in via the ones
    # column appended in the wrapper, so no slab-wide VPU add is needed.
    gi0_s[...] = jnp.dot(x2e_ref[...], wih0e_ref[...],
                         preferred_element_type=jnp.float32)

    wfused = wfused_ref[...]       # (H, 6H) bf16 = [W_ih1 | W_hh0]
    whh1 = whh1_ref[...]           # (H, 3H) bf16
    bhh0n = bhh0n_ref[...]         # (1, H)  f32
    b1rz = b1rz_ref[...]           # (1, 2H) f32
    b1in = b1in_ref[...]           # (1, H)  f32
    b1hn = b1hn_ref[...]           # (1, H)  f32

    def fused_dot(h0_new, last_step):
        """h0_new @ [W_ih1 | W_hh0] -> (gi1_t, gh0_{t+1}).

        Issued right after h0_new is formed so next-step layer-0 MXU work
        overlaps this step's layer-1 element-wise work.  On the last step the
        W_hh0 half is skipped (its result would be unused)."""
        h0b = h0_new.astype(jnp.bfloat16)
        if last_step:
            gi1 = jnp.dot(h0b, wfused[:, :3 * H],
                          preferred_element_type=jnp.float32)
            return gi1, None
        g01 = jnp.dot(h0b, wfused, preferred_element_type=jnp.float32)
        return g01[:, :3 * H], g01[:, 3 * H:]

    # ---- Step 0 (peeled): h0 = h1 = 0, so both recurrent matmuls vanish ----
    gi0 = gi0_s[0:Bp, :]
    rz0 = jax.nn.sigmoid(gi0[:, :2 * H])
    r0 = rz0[:, :H]
    z0 = rz0[:, H:]
    n0 = jnp.tanh(gi0[:, 2 * H:] + r0 * bhh0n)
    h0 = (1.0 - z0) * n0

    gi1, gh0_next = fused_dot(h0, last_step=(T == 1))

    rz1 = jax.nn.sigmoid(gi1[:, :2 * H] + b1rz)
    r1 = rz1[:, :H]
    z1 = rz1[:, H:]
    n1 = jnp.tanh(gi1[:, 2 * H:] + b1in + r1 * b1hn)
    h1 = (1.0 - z1) * n1

    # ---- Steps 1..T-1 (fully unrolled; T static and small) ----
    for t in range(1, T):
        # GRU layer 0 (gh0 was produced by the previous step's fused dot).
        gi0 = gi0_s[t * Bp:(t + 1) * Bp, :]
        gh0 = gh0_next
        rz0 = jax.nn.sigmoid(gi0[:, :2 * H] + gh0[:, :2 * H])
        r0 = rz0[:, :H]
        z0 = rz0[:, H:]
        n0 = jnp.tanh(gi0[:, 2 * H:] + r0 * (gh0[:, 2 * H:] + bhh0n))
        h0 = (1.0 - z0) * n0 + z0 * h0

        # Fused: this step's layer-1 input projection + next step's layer-0
        # recurrent term, single K=128 dot with no zero-padding overhead.
        gi1, gh0_next = fused_dot(h0, last_step=(t == T - 1))

        # GRU layer 1 (bf16 operands, f32 accumulation / element-wise).
        gh1 = jnp.dot(h1.astype(jnp.bfloat16), whh1,
                      preferred_element_type=jnp.float32)
        rz1 = jax.nn.sigmoid(gi1[:, :2 * H] + gh1[:, :2 * H] + b1rz)
        r1 = rz1[:, :H]
        z1 = rz1[:, H:]
        n1 = jnp.tanh(gi1[:, 2 * H:] + b1in
                      + r1 * (gh1[:, 2 * H:] + b1hn))
        h1 = (1.0 - z1) * n1 + z1 * h1

    # ---- fc_out( x[-1, :, :] )  (runs once; kept in f32) ----
    zmid = jnp.maximum(
        jnp.dot(h1, fw1_ref[...], preferred_element_type=jnp.float32)
        + fb1_ref[...], 0.0)
    out_ref[...] = (jnp.dot(zmid, fw2_ref[...],
                            preferred_element_type=jnp.float32)
                    + fb2_ref[...])


def emotion_seq2beh_forward(x, params):
    """x: (T, B, NUM_EMOTIONS) float32. Returns (B, NUM_BEHS) float32."""
    T, B, E = x.shape
    assert E == NUM_EMOTIONS
    H = HIDDEN

    # Pad batch to a multiple of 16 so f32 slab slices and bf16 hidden-state
    # casts are both sublane-tile aligned.  Extra LHS rows are nearly free in
    # this weight-push-dominated regime.
    Bp = ((B + 15) // 16) * 16
    if Bp != B:
        x = jnp.pad(x, ((0, 0), (0, Bp - B), (0, 0)))

    # Layer-0 input projection operand: append a ones column so the folded
    # biases ride along in the matmul:  gi0 = [x | 1] @ [W_ih0 ; b0].
    x2d = x.reshape(T * Bp, E)
    x2e = jnp.concatenate([x2d, jnp.ones((T * Bp, 1), jnp.float32)], axis=1)

    # Bias / weight folding (tiny XLA ops, once per call, outside the kernel):
    #   layer 0: b0 = [b_ih0_rz + b_hh0_rz | b_ih0_n] folded into wih0e;
    #            b_hh0_n stays separate (it sits inside the r-gated term).
    #   layer 1: r/z bias halves pre-summed; b_ih1_n / b_hh1_n kept separate.
    bih0, bhh0 = params["bih0"], params["bhh0"]
    bih1, bhh1 = params["bih1"], params["bhh1"]
    b0 = jnp.concatenate(
        [bih0[:, :2 * H] + bhh0[:, :2 * H], bih0[:, 2 * H:]], axis=1)
    wih0e = jnp.concatenate([params["wih0"], b0], axis=0)          # (E+1, 3H)
    bhh0_n = bhh0[:, 2 * H:]
    b1_rz = bih1[:, :2 * H] + bhh1[:, :2 * H]
    b1_in = bih1[:, 2 * H:]
    b1_hn = bhh1[:, 2 * H:]

    # Recurrence-path weights in bf16 (MXU-native); fused [W_ih1 | W_hh0].
    wfused = jnp.concatenate([params["wih1"], params["whh0"]],
                             axis=1).astype(jnp.bfloat16)           # (H, 6H)
    whh1_b = params["whh1"].astype(jnp.bfloat16)                    # (H, 3H)

    args = (x2e, wih0e, bhh0_n,
            wfused, whh1_b, b1_rz, b1_in, b1_hn,
            params["fw1"], params["fb1"], params["fw2"], params["fb2"])

    vmem_spec = lambda: pl.BlockSpec(memory_space=pltpu.MemorySpace.VMEM)

    out = pl.pallas_call(
        emotion_seq2beh_kernel,
        out_shape=jax.ShapeDtypeStruct((Bp, NUM_BEHS), jnp.float32),
        in_specs=[vmem_spec() for _ in args],
        out_specs=vmem_spec(),
        scratch_shapes=[pltpu.VMEM((T * Bp, 3 * H), jnp.float32)],
    )(*args)

    return out[:B]


def init_params(key):
    """Deterministic parameter init (PyTorch-style uniform(-1/sqrt(H), 1/sqrt(H)))."""
    H = HIDDEN
    k = 1.0 / jnp.sqrt(jnp.float32(H))
    keys = jax.random.split(key, 12)
    u = lambda kk, shape, bound: jax.random.uniform(
        kk, shape, jnp.float32, -bound, bound)

    params = {
        # GRU layer 0: stored transposed so kernel does x @ W; gate order [r,z,n]
        "wih0": u(keys[0], (NUM_EMOTIONS, 3 * H), k),
        "whh0": u(keys[1], (H, 3 * H), k),
        "bih0": u(keys[2], (1, 3 * H), k),
        "bhh0": u(keys[3], (1, 3 * H), k),
        # GRU layer 1 (input size = hidden)
        "wih1": u(keys[4], (H, 3 * H), k),
        "whh1": u(keys[5], (H, 3 * H), k),
        "bih1": u(keys[6], (1, 3 * H), k),
        "bhh1": u(keys[7], (1, 3 * H), k),
        # fc_out
        "fw1": u(keys[8], (H, FC_MID), 1.0 / jnp.sqrt(jnp.float32(H))),
        "fb1": u(keys[9], (1, FC_MID), 1.0 / jnp.sqrt(jnp.float32(H))),
        "fw2": u(keys[10], (FC_MID, NUM_BEHS), 1.0 / jnp.sqrt(jnp.float32(FC_MID))),
        "fb2": u(keys[11], (1, NUM_BEHS), 1.0 / jnp.sqrt(jnp.float32(FC_MID))),
    }
    return params


def _gru_cell_ref(x, h, w_ih, w_hh, b_ih, b_hh):
    """PyTorch GRU cell (f32 reference, un-folded biases). Gate order [r, z, n]."""
    H = HIDDEN
    gi = jnp.dot(x, w_ih) + b_ih
    gh = jnp.dot(h, w_hh) + b_hh
    r = jax.nn.sigmoid(gi[:, 0:H] + gh[:, 0:H])
    z = jax.nn.sigmoid(gi[:, H:2 * H] + gh[:, H:2 * H])
    n = jnp.tanh(gi[:, 2 * H:3 * H] + r * gh[:, 2 * H:3 * H])
    return (1.0 - z) * n + z * h


def reference_forward(x, p):
    """Pure-JAX f32 reference of the same math (for verification)."""
    T, B, _ = x.shape
    h0 = jnp.zeros((B, HIDDEN), jnp.float32)
    h1 = jnp.zeros((B, HIDDEN), jnp.float32)

    def step(carry, x_t):
        h0, h1 = carry
        h0 = _gru_cell_ref(x_t, h0, p["wih0"], p["whh0"], p["bih0"], p["bhh0"])
        h1 = _gru_cell_ref(h0, h1, p["wih1"], p["whh1"], p["bih1"], p["bhh1"])
        return (h0, h1), None

    (h0, h1), _ = jax.lax.scan(step, (h0, h1), x)
    z1 = jnp.maximum(h1 @ p["fw1"] + p["fb1"], 0.0)
    return z1 @ p["fw2"] + p["fb2"]


if __name__ == "__main__":
    key = jax.random.PRNGKey(0)
    k_x, k_p = jax.random.split(key)

    seq_len, batch = 8, 4
    x = jax.random.normal(k_x, (seq_len, batch, NUM_EMOTIONS), jnp.float32)
    params = init_params(k_p)

    fwd = jax.jit(emotion_seq2beh_forward)
    out = jax.block_until_ready(fwd(x, params))

    ref = jax.block_until_ready(reference_forward(x, params))
    assert out.shape == (batch, NUM_BEHS)
    # Loosened tolerance: recurrence-path MXU operands are bf16 (f32 accum),
    # compared against the pure-f32 reference.
    assert jnp.allclose(out, ref, atol=3e-2, rtol=3e-2), (out, ref)

    print("KERNEL_OK")
</pallas_src>

<mosaic_0001>
module attributes {stable_mosaic.version = 11 : i64} {
  func.func @emotion_seq2beh_kernel(%arg0: memref<128x7xf32, #tpu.memory_space<vmem>>, %arg1: memref<7x384xf32, #tpu.memory_space<vmem>>, %arg2: memref<1x128xf32, #tpu.memory_space<vmem>>, %arg3: memref<128x768xbf16, #tpu.memory_space<vmem>>, %arg4: memref<128x384xbf16, #tpu.memory_space<vmem>>, %arg5: memref<1x256xf32, #tpu.memory_space<vmem>>, %arg6: memref<1x128xf32, #tpu.memory_space<vmem>>, %arg7: memref<1x128xf32, #tpu.memory_space<vmem>>, %arg8: memref<128x64xf32, #tpu.memory_space<vmem>>, %arg9: memref<1x64xf32, #tpu.memory_space<vmem>>, %arg10: memref<64x5xf32, #tpu.memory_space<vmem>>, %arg11: memref<1x5xf32, #tpu.memory_space<vmem>>, %arg12: memref<16x5xf32, #tpu.memory_space<vmem>>, %arg13: memref<128x384xf32, #tpu.memory_space<vmem>>) attributes {dimension_semantics = [], scalar_prefetch = 0 : i64, scratch_operands = 1 : i64, tpu.core_type = #tpu.core_type<tc>} {
    %c0 = arith.constant 0 : index
    %c0_0 = arith.constant 0 : index
    %0 = vector.load %arg0[%c0, %c0_0] : memref<128x7xf32, #tpu.memory_space<vmem>>, vector<128x7xf32>
    %c0_1 = arith.constant 0 : index
    %c0_2 = arith.constant 0 : index
    %1 = vector.load %arg1[%c0_1, %c0_2] : memref<7x384xf32, #tpu.memory_space<vmem>>, vector<7x384xf32>
    %cst = arith.constant dense<0.000000e+00> : vector<128x384xf32>
    %2 = tpu.matmul %0, %1, %cst {dimension_numbers = #tpu.dot_dimension_numbers<[1], [0], [0], [1], [0, 0, 1, 1], [], []>} : vector<128x7xf32>, vector<7x384xf32>, vector<128x384xf32> -> vector<128x384xf32>
    %c0_3 = arith.constant 0 : index
    %c0_4 = arith.constant 0 : index
    %3 = vector.load %arg13[%c0_3, %c0_4] : memref<128x384xf32, #tpu.memory_space<vmem>>, vector<128x384xf32>
    tpu.vector_store %arg13[%c0_3, %c0_4], %2 {strides = array<i32>} : memref<128x384xf32, #tpu.memory_space<vmem>>, vector<128x384xf32>,
    %c0_5 = arith.constant 0 : index
    %c0_6 = arith.constant 0 : index
    %4 = vector.load %arg3[%c0_5, %c0_6] : memref<128x768xbf16, #tpu.memory_space<vmem>>, vector<128x768xbf16>
    %c0_7 = arith.constant 0 : index
    %c0_8 = arith.constant 0 : index
    %5 = vector.load %arg4[%c0_7, %c0_8] : memref<128x384xbf16, #tpu.memory_space<vmem>>, vector<128x384xbf16>
    %c0_9 = arith.constant 0 : index
    %c0_10 = arith.constant 0 : index
    %6 = vector.load %arg2[%c0_9, %c0_10] : memref<1x128xf32, #tpu.memory_space<vmem>>, vector<1x128xf32>
    %c0_11 = arith.constant 0 : index
    %c0_12 = arith.constant 0 : index
    %7 = vector.load %arg5[%c0_11, %c0_12] : memref<1x256xf32, #tpu.memory_space<vmem>>, vector<1x256xf32>
    %c0_13 = arith.constant 0 : index
    %c0_14 = arith.constant 0 : index
    %8 = vector.load %arg6[%c0_13, %c0_14] : memref<1x128xf32, #tpu.memory_space<vmem>>, vector<1x128xf32>
    %c0_15 = arith.constant 0 : index
    %c0_16 = arith.constant 0 : index
    %9 = vector.load %arg7[%c0_15, %c0_16] : memref<1x128xf32, #tpu.memory_space<vmem>>, vector<1x128xf32>
    %c0_17 = arith.constant 0 : index
    %c0_18 = arith.constant 0 : index
    %10 = vector.load %arg13[%c0_17, %c0_18] : memref<128x384xf32, #tpu.memory_space<vmem>>, vector<16x384xf32>
    %11 = vector.extract_strided_slice %10 {offsets = [0, 0], sizes = [16, 256], strides = [1, 1]} : vector<16x384xf32> to vector<16x256xf32>
    %12 = arith.negf %11 : vector<16x256xf32>
    %13 = math.exp %12 : vector<16x256xf32>
    %cst_19 = arith.constant 1.000000e+00 : f32
    %14 = vector.broadcast %cst_19 : f32 to vector<16x256xf32>
    %15 = arith.addf %14, %13 : vector<16x256xf32>
    %16 = arith.divf %14, %15 : vector<16x256xf32>
    %17 = vector.extract_strided_slice %16 {offsets = [0, 0], sizes = [16, 128], strides = [1, 1]} : vector<16x256xf32> to vector<16x128xf32>
    %18 = vector.extract_strided_slice %16 {offsets = [0, 128], sizes = [16, 128], strides = [1, 1]} : vector<16x256xf32> to vector<16x128xf32>
    %19 = vector.extract_strided_slice %10 {offsets = [0, 256], sizes = [16, 128], strides = [1, 1]} : vector<16x384xf32> to vector<16x128xf32>
    %20 = vector.broadcast %6 : vector<1x128xf32> to vector<16x128xf32>
    %21 = arith.mulf %17, %20 : vector<16x128xf32>
    %22 = arith.addf %19, %21 : vector<16x128xf32>
    %23 = math.tanh %22 : vector<16x128xf32>
    %cst_20 = arith.constant 1.000000e+00 : f32
    %24 = vector.broadcast %cst_20 : f32 to vector<16x128xf32>
    %25 = arith.subf %24, %18 : vector<16x128xf32>
    %26 = arith.mulf %25, %23 : vector<16x128xf32>
    %27 = arith.truncf %26 : vector<16x128xf32> to vector<16x128xbf16>
    %cst_21 = arith.constant dense<0.000000e+00> : vector<16x768xf32>
    %28 = tpu.matmul %27, %4, %cst_21 {dimension_numbers = #tpu.dot_dimension_numbers<[1], [0], [0], [1], [0, 0, 1, 1], [], []>} : vector<16x128xbf16>, vector<128x768xbf16>, vector<16x768xf32> -> vector<16x768xf32>
    %29 = vector.extract_strided_slice %28 {offsets = [0, 0], sizes = [16, 384], strides = [1, 1]} : vector<16x768xf32> to vector<16x384xf32>
    %30 = vector.extract_strided_slice %28 {offsets = [0, 384], sizes = [16, 384], strides = [1, 1]} : vector<16x768xf32> to vector<16x384xf32>
    %31 = vector.extract_strided_slice %29 {offsets = [0, 0], sizes = [16, 256], strides = [1, 1]} : vector<16x384xf32> to vector<16x256xf32>
    %32 = vector.broadcast %7 : vector<1x256xf32> to vector<16x256xf32>
    %33 = arith.addf %31, %32 : vector<16x256xf32>
    %34 = arith.negf %33 : vector<16x256xf32>
    %35 = math.exp %34 : vector<16x256xf32>
    %cst_22 = arith.constant 1.000000e+00 : f32
    %36 = vector.broadcast %cst_22 : f32 to vector<16x256xf32>
    %37 = arith.addf %36, %35 : vector<16x256xf32>
    %38 = arith.divf %36, %37 : vector<16x256xf32>
    %39 = vector.extract_strided_slice %38 {offsets = [0, 0], sizes = [16, 128], strides = [1, 1]} : vector<16x256xf32> to vector<16x128xf32>
    %40 = vector.extract_strided_slice %38 {offsets = [0, 128], sizes = [16, 128], strides = [1, 1]} : vector<16x256xf32> to vector<16x128xf32>
    %41 = vector.extract_strided_slice %29 {offsets = [0, 256], sizes = [16, 128], strides = [1, 1]} : vector<16x384xf32> to vector<16x128xf32>
    %42 = vector.broadcast %8 : vector<1x128xf32> to vector<16x128xf32>
    %43 = arith.addf %41, %42 : vector<16x128xf32>
    %44 = vector.broadcast %9 : vector<1x128xf32> to vector<16x128xf32>
    %45 = arith.mulf %39, %44 : vector<16x128xf32>
    %46 = arith.addf %43, %45 : vector<16x128xf32>
    %47 = math.tanh %46 : vector<16x128xf32>
    %cst_23 = arith.constant 1.000000e+00 : f32
    %48 = vector.broadcast %cst_23 : f32 to vector<16x128xf32>
    %49 = arith.subf %48, %40 : vector<16x128xf32>
    %50 = arith.mulf %49, %47 : vector<16x128xf32>
    %c16 = arith.constant 16 : index
    %c0_24 = arith.constant 0 : index
    %51 = vector.load %arg13[%c16, %c0_24] : memref<128x384xf32, #tpu.memory_space<vmem>>, vector<16x384xf32>
    %52 = vector.extract_strided_slice %51 {offsets = [0, 0], sizes = [16, 256], strides = [1, 1]} : vector<16x384xf32> to vector<16x256xf32>
    %53 = vector.extract_strided_slice %30 {offsets = [0, 0], sizes = [16, 256], strides = [1, 1]} : vector<16x384xf32> to vector<16x256xf32>
    %54 = arith.addf %52, %53 : vector<16x256xf32>
    %55 = arith.negf %54 : vector<16x256xf32>
    %56 = math.exp %55 : vector<16x256xf32>
    %cst_25 = arith.constant 1.000000e+00 : f32
    %57 = vector.broadcast %cst_25 : f32 to vector<16x256xf32>
    %58 = arith.addf %57, %56 : vector<16x256xf32>
    %59 = arith.divf %57, %58 : vector<16x256xf32>
    %60 = vector.extract_strided_slice %59 {offsets = [0, 0], sizes = [16, 128], strides = [1, 1]} : vector<16x256xf32> to vector<16x128xf32>
    %61 = vector.extract_strided_slice %59 {offsets = [0, 128], sizes = [16, 128], strides = [1, 1]} : vector<16x256xf32> to vector<16x128xf32>
    %62 = vector.extract_strided_slice %51 {offsets = [0, 256], sizes = [16, 128], strides = [1, 1]} : vector<16x384xf32> to vector<16x128xf32>
    %63 = vector.extract_strided_slice %30 {offsets = [0, 256], sizes = [16, 128], strides = [1, 1]} : vector<16x384xf32> to vector<16x128xf32>
    %64 = vector.broadcast %6 : vector<1x128xf32> to vector<16x128xf32>
    %65 = arith.addf %63, %64 : vector<16x128xf32>
    %66 = arith.mulf %60, %65 : vector<16x128xf32>
    %67 = arith.addf %62, %66 : vector<16x128xf32>
    %68 = math.tanh %67 : vector<16x128xf32>
    %cst_26 = arith.constant 1.000000e+00 : f32
    %69 = vector.broadcast %cst_26 : f32 to vector<16x128xf32>
    %70 = arith.subf %69, %61 : vector<16x128xf32>
    %71 = arith.mulf %70, %68 : vector<16x128xf32>
    %72 = arith.mulf %61, %26 : vector<16x128xf32>
    %73 = arith.addf %71, %72 : vector<16x128xf32>
    %74 = arith.truncf %73 : vector<16x128xf32> to vector<16x128xbf16>
    %cst_27 = arith.constant dense<0.000000e+00> : vector<16x768xf32>
    %75 = tpu.matmul %74, %4, %cst_27 {dimension_numbers = #tpu.dot_dimension_numbers<[1], [0], [0], [1], [0, 0, 1, 1], [], []>} : vector<16x128xbf16>, vector<128x768xbf16>, vector<16x768xf32> -> vector<16x768xf32>
    %76 = vector.extract_strided_slice %75 {offsets = [0, 0], sizes = [16, 384], strides = [1, 1]} : vector<16x768xf32> to vector<16x384xf32>
    %77 = vector.extract_strided_slice %75 {offsets = [0, 384], sizes = [16, 384], strides = [1, 1]} : vector<16x768xf32> to vector<16x384xf32>
    %78 = arith.truncf %50 : vector<16x128xf32> to vector<16x128xbf16>
    %cst_28 = arith.constant dense<0.000000e+00> : vector<16x384xf32>
    %79 = tpu.matmul %78, %5, %cst_28 {dimension_numbers = #tpu.dot_dimension_numbers<[1], [0], [0], [1], [0, 0, 1, 1], [], []>} : vector<16x128xbf16>, vector<128x384xbf16>, vector<16x384xf32> -> vector<16x384xf32>
    %80 = vector.extract_strided_slice %76 {offsets = [0, 0], sizes = [16, 256], strides = [1, 1]} : vector<16x384xf32> to vector<16x256xf32>
    %81 = vector.extract_strided_slice %79 {offsets = [0, 0], sizes = [16, 256], strides = [1, 1]} : vector<16x384xf32> to vector<16x256xf32>
    %82 = arith.addf %80, %81 : vector<16x256xf32>
    %83 = vector.broadcast %7 : vector<1x256xf32> to vector<16x256xf32>
    %84 = arith.addf %82, %83 : vector<16x256xf32>
    %85 = arith.negf %84 : vector<16x256xf32>
    %86 = math.exp %85 : vector<16x256xf32>
    %cst_29 = arith.constant 1.000000e+00 : f32
    %87 = vector.broadcast %cst_29 : f32 to vector<16x256xf32>
    %88 = arith.addf %87, %86 : vector<16x256xf32>
    %89 = arith.divf %87, %88 : vector<16x256xf32>
    %90 = vector.extract_strided_slice %89 {offsets = [0, 0], sizes = [16, 128], strides = [1, 1]} : vector<16x256xf32> to vector<16x128xf32>
    %91 = vector.extract_strided_slice %89 {offsets = [0, 128], sizes = [16, 128], strides = [1, 1]} : vector<16x256xf32> to vector<16x128xf32>
    %92 = vector.extract_strided_slice %76 {offsets = [0, 256], sizes = [16, 128], strides = [1, 1]} : vector<16x384xf32> to vector<16x128xf32>
    %93 = vector.broadcast %8 : vector<1x128xf32> to vector<16x128xf32>
    %94 = arith.addf %92, %93 : vector<16x128xf32>
    %95 = vector.extract_strided_slice %79 {offsets = [0, 256], sizes = [16, 128], strides = [1, 1]} : vector<16x384xf32> to vector<16x128xf32>
    %96 = vector.broadcast %9 : vector<1x128xf32> to vector<16x128xf32>
    %97 = arith.addf %95, %96 : vector<16x128xf32>
    %98 = arith.mulf %90, %97 : vector<16x128xf32>
    %99 = arith.addf %94, %98 : vector<16x128xf32>
    %100 = math.tanh %99 : vector<16x128xf32>
    %cst_30 = arith.constant 1.000000e+00 : f32
    %101 = vector.broadcast %cst_30 : f32 to vector<16x128xf32>
    %102 = arith.subf %101, %91 : vector<16x128xf32>
    %103 = arith.mulf %102, %100 : vector<16x128xf32>
    %104 = arith.mulf %91, %50 : vector<16x128xf32>
    %105 = arith.addf %103, %104 : vector<16x128xf32>
    %c32 = arith.constant 32 : index
    %c0_31 = arith.constant 0 : index
    %106 = vector.load %arg13[%c32, %c0_31] : memref<128x384xf32, #tpu.memory_space<vmem>>, vector<16x384xf32>
    %107 = vector.extract_strided_slice %106 {offsets = [0, 0], sizes = [16, 256], strides = [1, 1]} : vector<16x384xf32> to vector<16x256xf32>
    %108 = vector.extract_strided_slice %77 {offsets = [0, 0], sizes = [16, 256], strides = [1, 1]} : vector<16x384xf32> to vector<16x256xf32>
    %109 = arith.addf %107, %108 : vector<16x256xf32>
    %110 = arith.negf %109 : vector<16x256xf32>
    %111 = math.exp %110 : vector<16x256xf32>
    %cst_32 = arith.constant 1.000000e+00 : f32
    %112 = vector.broadcast %cst_32 : f32 to vector<16x256xf32>
    %113 = arith.addf %112, %111 : vector<16x256xf32>
    %114 = arith.divf %112, %113 : vector<16x256xf32>
    %115 = vector.extract_strided_slice %114 {offsets = [0, 0], sizes = [16, 128], strides = [1, 1]} : vector<16x256xf32> to vector<16x128xf32>
    %116 = vector.extract_strided_slice %114 {offsets = [0, 128], sizes = [16, 128], strides = [1, 1]} : vector<16x256xf32> to vector<16x128xf32>
    %117 = vector.extract_strided_slice %106 {offsets = [0, 256], sizes = [16, 128], strides = [1, 1]} : vector<16x384xf32> to vector<16x128xf32>
    %118 = vector.extract_strided_slice %77 {offsets = [0, 256], sizes = [16, 128], strides = [1, 1]} : vector<16x384xf32> to vector<16x128xf32>
    %119 = vector.broadcast %6 : vector<1x128xf32> to vector<16x128xf32>
    %120 = arith.addf %118, %119 : vector<16x128xf32>
    %121 = arith.mulf %115, %120 : vector<16x128xf32>
    %122 = arith.addf %117, %121 : vector<16x128xf32>
    %123 = math.tanh %122 : vector<16x128xf32>
    %cst_33 = arith.constant 1.000000e+00 : f32
    %124 = vector.broadcast %cst_33 : f32 to vector<16x128xf32>
    %125 = arith.subf %124, %116 : vector<16x128xf32>
    %126 = arith.mulf %125, %123 : vector<16x128xf32>
    %127 = arith.mulf %116, %73 : vector<16x128xf32>
    %128 = arith.addf %126, %127 : vector<16x128xf32>
    %129 = arith.truncf %128 : vector<16x128xf32> to vector<16x128xbf16>
    %cst_34 = arith.constant dense<0.000000e+00> : vector<16x768xf32>
    %130 = tpu.matmul %129, %4, %cst_34 {dimension_numbers = #tpu.dot_dimension_numbers<[1], [0], [0], [1], [0, 0, 1, 1], [], []>} : vector<16x128xbf16>, vector<128x768xbf16>, vector<16x768xf32> -> vector<16x768xf32>
    %131 = vector.extract_strided_slice %130 {offsets = [0, 0], sizes = [16, 384], strides = [1, 1]} : vector<16x768xf32> to vector<16x384xf32>
    %132 = vector.extract_strided_slice %130 {offsets = [0, 384], sizes = [16, 384], strides = [1, 1]} : vector<16x768xf32> to vector<16x384xf32>
    %133 = arith.truncf %105 : vector<16x128xf32> to vector<16x128xbf16>
    %cst_35 = arith.constant dense<0.000000e+00> : vector<16x384xf32>
    %134 = tpu.matmul %133, %5, %cst_35 {dimension_numbers = #tpu.dot_dimension_numbers<[1], [0], [0], [1], [0, 0, 1, 1], [], []>} : vector<16x128xbf16>, vector<128x384xbf16>, vector<16x384xf32> -> vector<16x384xf32>
    %135 = vector.extract_strided_slice %131 {offsets = [0, 0], sizes = [16, 256], strides = [1, 1]} : vector<16x384xf32> to vector<16x256xf32>
    %136 = vector.extract_strided_slice %134 {offsets = [0, 0], sizes = [16, 256], strides = [1, 1]} : vector<16x384xf32> to vector<16x256xf32>
    %137 = arith.addf %135, %136 : vector<16x256xf32>
    %138 = vector.broadcast %7 : vector<1x256xf32> to vector<16x256xf32>
    %139 = arith.addf %137, %138 : vector<16x256xf32>
    %140 = arith.negf %139 : vector<16x256xf32>
    %141 = math.exp %140 : vector<16x256xf32>
    %cst_36 = arith.constant 1.000000e+00 : f32
    %142 = vector.broadcast %cst_36 : f32 to vector<16x256xf32>
    %143 = arith.addf %142, %141 : vector<16x256xf32>
    %144 = arith.divf %142, %143 : vector<16x256xf32>
    %145 = vector.extract_strided_slice %144 {offsets = [0, 0], sizes = [16, 128], strides = [1, 1]} : vector<16x256xf32> to vector<16x128xf32>
    %146 = vector.extract_strided_slice %144 {offsets = [0, 128], sizes = [16, 128], strides = [1, 1]} : vector<16x256xf32> to vector<16x128xf32>
    %147 = vector.extract_strided_slice %131 {offsets = [0, 256], sizes = [16, 128], strides = [1, 1]} : vector<16x384xf32> to vector<16x128xf32>
    %148 = vector.broadcast %8 : vector<1x128xf32> to vector<16x128xf32>
    %149 = arith.addf %147, %148 : vector<16x128xf32>
    %150 = vector.extract_strided_slice %134 {offsets = [0, 256], sizes = [16, 128], strides = [1, 1]} : vector<16x384xf32> to vector<16x128xf32>
    %151 = vector.broadcast %9 : vector<1x128xf32> to vector<16x128xf32>
    %152 = arith.addf %150, %151 : vector<16x128xf32>
    %153 = arith.mulf %145, %152 : vector<16x128xf32>
    %154 = arith.addf %149, %153 : vector<16x128xf32>
    %155 = math.tanh %154 : vector<16x128xf32>
    %cst_37 = arith.constant 1.000000e+00 : f32
    %156 = vector.broadcast %cst_37 : f32 to vector<16x128xf32>
    %157 = arith.subf %156, %146 : vector<16x128xf32>
    %158 = arith.mulf %157, %155 : vector<16x128xf32>
    %159 = arith.mulf %146, %105 : vector<16x128xf32>
    %160 = arith.addf %158, %159 : vector<16x128xf32>
    %c48 = arith.constant 48 : index
    %c0_38 = arith.constant 0 : index
    %161 = vector.load %arg13[%c48, %c0_38] : memref<128x384xf32, #tpu.memory_space<vmem>>, vector<16x384xf32>
    %162 = vector.extract_strided_slice %161 {offsets = [0, 0], sizes = [16, 256], strides = [1, 1]} : vector<16x384xf32> to vector<16x256xf32>
    %163 = vector.extract_strided_slice %132 {offsets = [0, 0], sizes = [16, 256], strides = [1, 1]} : vector<16x384xf32> to vector<16x256xf32>
    %164 = arith.addf %162, %163 : vector<16x256xf32>
    %165 = arith.negf %164 : vector<16x256xf32>
    %166 = math.exp %165 : vector<16x256xf32>
    %cst_39 = arith.constant 1.000000e+00 : f32
    %167 = vector.broadcast %cst_39 : f32 to vector<16x256xf32>
    %168 = arith.addf %167, %166 : vector<16x256xf32>
    %169 = arith.divf %167, %168 : vector<16x256xf32>
    %170 = vector.extract_strided_slice %169 {offsets = [0, 0], sizes = [16, 128], strides = [1, 1]} : vector<16x256xf32> to vector<16x128xf32>
    %171 = vector.extract_strided_slice %169 {offsets = [0, 128], sizes = [16, 128], strides = [1, 1]} : vector<16x256xf32> to vector<16x128xf32>
    %172 = vector.extract_strided_slice %161 {offsets = [0, 256], sizes = [16, 128], strides = [1, 1]} : vector<16x384xf32> to vector<16x128xf32>
    %173 = vector.extract_strided_slice %132 {offsets = [0, 256], sizes = [16, 128], strides = [1, 1]} : vector<16x384xf32> to vector<16x128xf32>
    %174 = vector.broadcast %6 : vector<1x128xf32> to vector<16x128xf32>
    %175 = arith.addf %173, %174 : vector<16x128xf32>
    %176 = arith.mulf %170, %175 : vector<16x128xf32>
    %177 = arith.addf %172, %176 : vector<16x128xf32>
    %178 = math.tanh %177 : vector<16x128xf32>
    %cst_40 = arith.constant 1.000000e+00 : f32
    %179 = vector.broadcast %cst_40 : f32 to vector<16x128xf32>
    %180 = arith.subf %179, %171 : vector<16x128xf32>
    %181 = arith.mulf %180, %178 : vector<16x128xf32>
    %182 = arith.mulf %171, %128 : vector<16x128xf32>
    %183 = arith.addf %181, %182 : vector<16x128xf32>
    %184 = arith.truncf %183 : vector<16x128xf32> to vector<16x128xbf16>
    %cst_41 = arith.constant dense<0.000000e+00> : vector<16x768xf32>
    %185 = tpu.matmul %184, %4, %cst_41 {dimension_numbers = #tpu.dot_dimension_numbers<[1], [0], [0], [1], [0, 0, 1, 1], [], []>} : vector<16x128xbf16>, vector<128x768xbf16>, vector<16x768xf32> -> vector<16x768xf32>
    %186 = vector.extract_strided_slice %185 {offsets = [0, 0], sizes = [16, 384], strides = [1, 1]} : vector<16x768xf32> to vector<16x384xf32>
    %187 = vector.extract_strided_slice %185 {offsets = [0, 384], sizes = [16, 384], strides = [1, 1]} : vector<16x768xf32> to vector<16x384xf32>
    %188 = arith.truncf %160 : vector<16x128xf32> to vector<16x128xbf16>
    %cst_42 = arith.constant dense<0.000000e+00> : vector<16x384xf32>
    %189 = tpu.matmul %188, %5, %cst_42 {dimension_numbers = #tpu.dot_dimension_numbers<[1], [0], [0], [1], [0, 0, 1, 1], [], []>} : vector<16x128xbf16>, vector<128x384xbf16>, vector<16x384xf32> -> vector<16x384xf32>
    %190 = vector.extract_strided_slice %186 {offsets = [0, 0], sizes = [16, 256], strides = [1, 1]} : vector<16x384xf32> to vector<16x256xf32>
    %191 = vector.extract_strided_slice %189 {offsets = [0, 0], sizes = [16, 256], strides = [1, 1]} : vector<16x384xf32> to vector<16x256xf32>
    %192 = arith.addf %190, %191 : vector<16x256xf32>
    %193 = vector.broadcast %7 : vector<1x256xf32> to vector<16x256xf32>
    %194 = arith.addf %192, %193 : vector<16x256xf32>
    %195 = arith.negf %194 : vector<16x256xf32>
    %196 = math.exp %195 : vector<16x256xf32>
    %cst_43 = arith.constant 1.000000e+00 : f32
    %197 = vector.broadcast %cst_43 : f32 to vector<16x256xf32>
    %198 = arith.addf %197, %196 : vector<16x256xf32>
    %199 = arith.divf %197, %198 : vector<16x256xf32>
    %200 = vector.extract_strided_slice %199 {offsets = [0, 0], sizes = [16, 128], strides = [1, 1]} : vector<16x256xf32> to vector<16x128xf32>
    %201 = vector.extract_strided_slice %199 {offsets = [0, 128], sizes = [16, 128], strides = [1, 1]} : vector<16x256xf32> to vector<16x128xf32>
    %202 = vector.extract_strided_slice %186 {offsets = [0, 256], sizes = [16, 128], strides = [1, 1]} : vector<16x384xf32> to vector<16x128xf32>
    %203 = vector.broadcast %8 : vector<1x128xf32> to vector<16x128xf32>
    %204 = arith.addf %202, %203 : vector<16x128xf32>
    %205 = vector.extract_strided_slice %189 {offsets = [0, 256], sizes = [16, 128], strides = [1, 1]} : vector<16x384xf32> to vector<16x128xf32>
    %206 = vector.broadcast %9 : vector<1x128xf32> to vector<16x128xf32>
    %207 = arith.addf %205, %206 : vector<16x128xf32>
    %208 = arith.mulf %200, %207 : vector<16x128xf32>
    %209 = arith.addf %204, %208 : vector<16x128xf32>
    %210 = math.tanh %209 : vector<16x128xf32>
    %cst_44 = arith.constant 1.000000e+00 : f32
    %211 = vector.broadcast %cst_44 : f32 to vector<16x128xf32>
    %212 = arith.subf %211, %201 : vector<16x128xf32>
    %213 = arith.mulf %212, %210 : vector<16x128xf32>
    %214 = arith.mulf %201, %160 : vector<16x128xf32>
    %215 = arith.addf %213, %214 : vector<16x128xf32>
    %c64 = arith.constant 64 : index
    %c0_45 = arith.constant 0 : index
    %216 = vector.load %arg13[%c64, %c0_45] : memref<128x384xf32, #tpu.memory_space<vmem>>, vector<16x384xf32>
    %217 = vector.extract_strided_slice %216 {offsets = [0, 0], sizes = [16, 256], strides = [1, 1]} : vector<16x384xf32> to vector<16x256xf32>
    %218 = vector.extract_strided_slice %187 {offsets = [0, 0], sizes = [16, 256], strides = [1, 1]} : vector<16x384xf32> to vector<16x256xf32>
    %219 = arith.addf %217, %218 : vector<16x256xf32>
    %220 = arith.negf %219 : vector<16x256xf32>
    %221 = math.exp %220 : vector<16x256xf32>
    %cst_46 = arith.constant 1.000000e+00 : f32
    %222 = vector.broadcast %cst_46 : f32 to vector<16x256xf32>
    %223 = arith.addf %222, %221 : vector<16x256xf32>
    %224 = arith.divf %222, %223 : vector<16x256xf32>
    %225 = vector.extract_strided_slice %224 {offsets = [0, 0], sizes = [16, 128], strides = [1, 1]} : vector<16x256xf32> to vector<16x128xf32>
    %226 = vector.extract_strided_slice %224 {offsets = [0, 128], sizes = [16, 128], strides = [1, 1]} : vector<16x256xf32> to vector<16x128xf32>
    %227 = vector.extract_strided_slice %216 {offsets = [0, 256], sizes = [16, 128], strides = [1, 1]} : vector<16x384xf32> to vector<16x128xf32>
    %228 = vector.extract_strided_slice %187 {offsets = [0, 256], sizes = [16, 128], strides = [1, 1]} : vector<16x384xf32> to vector<16x128xf32>
    %229 = vector.broadcast %6 : vector<1x128xf32> to vector<16x128xf32>
    %230 = arith.addf %228, %229 : vector<16x128xf32>
    %231 = arith.mulf %225, %230 : vector<16x128xf32>
    %232 = arith.addf %227, %231 : vector<16x128xf32>
    %233 = math.tanh %232 : vector<16x128xf32>
    %cst_47 = arith.constant 1.000000e+00 : f32
    %234 = vector.broadcast %cst_47 : f32 to vector<16x128xf32>
    %235 = arith.subf %234, %226 : vector<16x128xf32>
    %236 = arith.mulf %235, %233 : vector<16x128xf32>
    %237 = arith.mulf %226, %183 : vector<16x128xf32>
    %238 = arith.addf %236, %237 : vector<16x128xf32>
    %239 = arith.truncf %238 : vector<16x128xf32> to vector<16x128xbf16>
    %cst_48 = arith.constant dense<0.000000e+00> : vector<16x768xf32>
    %240 = tpu.matmul %239, %4, %cst_48 {dimension_numbers = #tpu.dot_dimension_numbers<[1], [0], [0], [1], [0, 0, 1, 1], [], []>} : vector<16x128xbf16>, vector<128x768xbf16>, vector<16x768xf32> -> vector<16x768xf32>
    %241 = vector.extract_strided_slice %240 {offsets = [0, 0], sizes = [16, 384], strides = [1, 1]} : vector<16x768xf32> to vector<16x384xf32>
    %242 = vector.extract_strided_slice %240 {offsets = [0, 384], sizes = [16, 384], strides = [1, 1]} : vector<16x768xf32> to vector<16x384xf32>
    %243 = arith.truncf %215 : vector<16x128xf32> to vector<16x128xbf16>
    %cst_49 = arith.constant dense<0.000000e+00> : vector<16x384xf32>
    %244 = tpu.matmul %243, %5, %cst_49 {dimension_numbers = #tpu.dot_dimension_numbers<[1], [0], [0], [1], [0, 0, 1, 1], [], []>} : vector<16x128xbf16>, vector<128x384xbf16>, vector<16x384xf32> -> vector<16x384xf32>
    %245 = vector.extract_strided_slice %241 {offsets = [0, 0], sizes = [16, 256], strides = [1, 1]} : vector<16x384xf32> to vector<16x256xf32>
    %246 = vector.extract_strided_slice %244 {offsets = [0, 0], sizes = [16, 256], strides = [1, 1]} : vector<16x384xf32> to vector<16x256xf32>
    %247 = arith.addf %245, %246 : vector<16x256xf32>
    %248 = vector.broadcast %7 : vector<1x256xf32> to vector<16x256xf32>
    %249 = arith.addf %247, %248 : vector<16x256xf32>
    %250 = arith.negf %249 : vector<16x256xf32>
    %251 = math.exp %250 : vector<16x256xf32>
    %cst_50 = arith.constant 1.000000e+00 : f32
    %252 = vector.broadcast %cst_50 : f32 to vector<16x256xf32>
    %253 = arith.addf %252, %251 : vector<16x256xf32>
    %254 = arith.divf %252, %253 : vector<16x256xf32>
    %255 = vector.extract_strided_slice %254 {offsets = [0, 0], sizes = [16, 128], strides = [1, 1]} : vector<16x256xf32> to vector<16x128xf32>
    %256 = vector.extract_strided_slice %254 {offsets = [0, 128], sizes = [16, 128], strides = [1, 1]} : vector<16x256xf32> to vector<16x128xf32>
    %257 = vector.extract_strided_slice %241 {offsets = [0, 256], sizes = [16, 128], strides = [1, 1]} : vector<16x384xf32> to vector<16x128xf32>
    %258 = vector.broadcast %8 : vector<1x128xf32> to vector<16x128xf32>
    %259 = arith.addf %257, %258 : vector<16x128xf32>
    %260 = vector.extract_strided_slice %244 {offsets = [0, 256], sizes = [16, 128], strides = [1, 1]} : vector<16x384xf32> to vector<16x128xf32>
    %261 = vector.broadcast %9 : vector<1x128xf32> to vector<16x128xf32>
    %262 = arith.addf %260, %261 : vector<16x128xf32>
    %263 = arith.mulf %255, %262 : vector<16x128xf32>
    %264 = arith.addf %259, %263 : vector<16x128xf32>
    %265 = math.tanh %264 : vector<16x128xf32>
    %cst_51 = arith.constant 1.000000e+00 : f32
    %266 = vector.broadcast %cst_51 : f32 to vector<16x128xf32>
    %267 = arith.subf %266, %256 : vector<16x128xf32>
    %268 = arith.mulf %267, %265 : vector<16x128xf32>
    %269 = arith.mulf %256, %215 : vector<16x128xf32>
    %270 = arith.addf %268, %269 : vector<16x128xf32>
    %c80 = arith.constant 80 : index
    %c0_52 = arith.constant 0 : index
    %271 = vector.load %arg13[%c80, %c0_52] : memref<128x384xf32, #tpu.memory_space<vmem>>, vector<16x384xf32>
    %272 = vector.extract_strided_slice %271 {offsets = [0, 0], sizes = [16, 256], strides = [1, 1]} : vector<16x384xf32> to vector<16x256xf32>
    %273 = vector.extract_strided_slice %242 {offsets = [0, 0], sizes = [16, 256], strides = [1, 1]} : vector<16x384xf32> to vector<16x256xf32>
    %274 = arith.addf %272, %273 : vector<16x256xf32>
    %275 = arith.negf %274 : vector<16x256xf32>
    %276 = math.exp %275 : vector<16x256xf32>
    %cst_53 = arith.constant 1.000000e+00 : f32
    %277 = vector.broadcast %cst_53 : f32 to vector<16x256xf32>
    %278 = arith.addf %277, %276 : vector<16x256xf32>
    %279 = arith.divf %277, %278 : vector<16x256xf32>
    %280 = vector.extract_strided_slice %279 {offsets = [0, 0], sizes = [16, 128], strides = [1, 1]} : vector<16x256xf32> to vector<16x128xf32>
    %281 = vector.extract_strided_slice %279 {offsets = [0, 128], sizes = [16, 128], strides = [1, 1]} : vector<16x256xf32> to vector<16x128xf32>
    %282 = vector.extract_strided_slice %271 {offsets = [0, 256], sizes = [16, 128], strides = [1, 1]} : vector<16x384xf32> to vector<16x128xf32>
    %283 = vector.extract_strided_slice %242 {offsets = [0, 256], sizes = [16, 128], strides = [1, 1]} : vector<16x384xf32> to vector<16x128xf32>
    %284 = vector.broadcast %6 : vector<1x128xf32> to vector<16x128xf32>
    %285 = arith.addf %283, %284 : vector<16x128xf32>
    %286 = arith.mulf %280, %285 : vector<16x128xf32>
    %287 = arith.addf %282, %286 : vector<16x128xf32>
    %288 = math.tanh %287 : vector<16x128xf32>
    %cst_54 = arith.constant 1.000000e+00 : f32
    %289 = vector.broadcast %cst_54 : f32 to vector<16x128xf32>
    %290 = arith.subf %289, %281 : vector<16x128xf32>
    %291 = arith.mulf %290, %288 : vector<16x128xf32>
    %292 = arith.mulf %281, %238 : vector<16x128xf32>
    %293 = arith.addf %291, %292 : vector<16x128xf32>
    %294 = arith.truncf %293 : vector<16x128xf32> to vector<16x128xbf16>
    %cst_55 = arith.constant dense<0.000000e+00> : vector<16x768xf32>
    %295 = tpu.matmul %294, %4, %cst_55 {dimension_numbers = #tpu.dot_dimension_numbers<[1], [0], [0], [1], [0, 0, 1, 1], [], []>} : vector<16x128xbf16>, vector<128x768xbf16>, vector<16x768xf32> -> vector<16x768xf32>
    %296 = vector.extract_strided_slice %295 {offsets = [0, 0], sizes = [16, 384], strides = [1, 1]} : vector<16x768xf32> to vector<16x384xf32>
    %297 = vector.extract_strided_slice %295 {offsets = [0, 384], sizes = [16, 384], strides = [1, 1]} : vector<16x768xf32> to vector<16x384xf32>
    %298 = arith.truncf %270 : vector<16x128xf32> to vector<16x128xbf16>
    %cst_56 = arith.constant dense<0.000000e+00> : vector<16x384xf32>
    %299 = tpu.matmul %298, %5, %cst_56 {dimension_numbers = #tpu.dot_dimension_numbers<[1], [0], [0], [1], [0, 0, 1, 1], [], []>} : vector<16x128xbf16>, vector<128x384xbf16>, vector<16x384xf32> -> vector<16x384xf32>
    %300 = vector.extract_strided_slice %296 {offsets = [0, 0], sizes = [16, 256], strides = [1, 1]} : vector<16x384xf32> to vector<16x256xf32>
    %301 = vector.extract_strided_slice %299 {offsets = [0, 0], sizes = [16, 256], strides = [1, 1]} : vector<16x384xf32> to vector<16x256xf32>
    %302 = arith.addf %300, %301 : vector<16x256xf32>
    %303 = vector.broadcast %7 : vector<1x256xf32> to vector<16x256xf32>
    %304 = arith.addf %302, %303 : vector<16x256xf32>
    %305 = arith.negf %304 : vector<16x256xf32>
    %306 = math.exp %305 : vector<16x256xf32>
    %cst_57 = arith.constant 1.000000e+00 : f32
    %307 = vector.broadcast %cst_57 : f32 to vector<16x256xf32>
    %308 = arith.addf %307, %306 : vector<16x256xf32>
    %309 = arith.divf %307, %308 : vector<16x256xf32>
    %310 = vector.extract_strided_slice %309 {offsets = [0, 0], sizes = [16, 128], strides = [1, 1]} : vector<16x256xf32> to vector<16x128xf32>
    %311 = vector.extract_strided_slice %309 {offsets = [0, 128], sizes = [16, 128], strides = [1, 1]} : vector<16x256xf32> to vector<16x128xf32>
    %312 = vector.extract_strided_slice %296 {offsets = [0, 256], sizes = [16, 128], strides = [1, 1]} : vector<16x384xf32> to vector<16x128xf32>
    %313 = vector.broadcast %8 : vector<1x128xf32> to vector<16x128xf32>
    %314 = arith.addf %312, %313 : vector<16x128xf32>
    %315 = vector.extract_strided_slice %299 {offsets = [0, 256], sizes = [16, 128], strides = [1, 1]} : vector<16x384xf32> to vector<16x128xf32>
    %316 = vector.broadcast %9 : vector<1x128xf32> to vector<16x128xf32>
    %317 = arith.addf %315, %316 : vector<16x128xf32>
    %318 = arith.mulf %310, %317 : vector<16x128xf32>
    %319 = arith.addf %314, %318 : vector<16x128xf32>
    %320 = math.tanh %319 : vector<16x128xf32>
    %cst_58 = arith.constant 1.000000e+00 : f32
    %321 = vector.broadcast %cst_58 : f32 to vector<16x128xf32>
    %322 = arith.subf %321, %311 : vector<16x128xf32>
    %323 = arith.mulf %322, %320 : vector<16x128xf32>
    %324 = arith.mulf %311, %270 : vector<16x128xf32>
    %325 = arith.addf %323, %324 : vector<16x128xf32>
    %c96 = arith.constant 96 : index
    %c0_59 = arith.constant 0 : index
    %326 = vector.load %arg13[%c96, %c0_59] : memref<128x384xf32, #tpu.memory_space<vmem>>, vector<16x384xf32>
    %327 = vector.extract_strided_slice %326 {offsets = [0, 0], sizes = [16, 256], strides = [1, 1]} : vector<16x384xf32> to vector<16x256xf32>
    %328 = vector.extract_strided_slice %297 {offsets = [0, 0], sizes = [16, 256], strides = [1, 1]} : vector<16x384xf32> to vector<16x256xf32>
    %329 = arith.addf %327, %328 : vector<16x256xf32>
    %330 = arith.negf %329 : vector<16x256xf32>
    %331 = math.exp %330 : vector<16x256xf32>
    %cst_60 = arith.constant 1.000000e+00 : f32
    %332 = vector.broadcast %cst_60 : f32 to vector<16x256xf32>
    %333 = arith.addf %332, %331 : vector<16x256xf32>
    %334 = arith.divf %332, %333 : vector<16x256xf32>
    %335 = vector.extract_strided_slice %334 {offsets = [0, 0], sizes = [16, 128], strides = [1, 1]} : vector<16x256xf32> to vector<16x128xf32>
    %336 = vector.extract_strided_slice %334 {offsets = [0, 128], sizes = [16, 128], strides = [1, 1]} : vector<16x256xf32> to vector<16x128xf32>
    %337 = vector.extract_strided_slice %326 {offsets = [0, 256], sizes = [16, 128], strides = [1, 1]} : vector<16x384xf32> to vector<16x128xf32>
    %338 = vector.extract_strided_slice %297 {offsets = [0, 256], sizes = [16, 128], strides = [1, 1]} : vector<16x384xf32> to vector<16x128xf32>
    %339 = vector.broadcast %6 : vector<1x128xf32> to vector<16x128xf32>
    %340 = arith.addf %338, %339 : vector<16x128xf32>
    %341 = arith.mulf %335, %340 : vector<16x128xf32>
    %342 = arith.addf %337, %341 : vector<16x128xf32>
    %343 = math.tanh %342 : vector<16x128xf32>
    %cst_61 = arith.constant 1.000000e+00 : f32
    %344 = vector.broadcast %cst_61 : f32 to vector<16x128xf32>
    %345 = arith.subf %344, %336 : vector<16x128xf32>
    %346 = arith.mulf %345, %343 : vector<16x128xf32>
    %347 = arith.mulf %336, %293 : vector<16x128xf32>
    %348 = arith.addf %346, %347 : vector<16x128xf32>
    %349 = arith.truncf %348 : vector<16x128xf32> to vector<16x128xbf16>
    %cst_62 = arith.constant dense<0.000000e+00> : vector<16x768xf32>
    %350 = tpu.matmul %349, %4, %cst_62 {dimension_numbers = #tpu.dot_dimension_numbers<[1], [0], [0], [1], [0, 0, 1, 1], [], []>} : vector<16x128xbf16>, vector<128x768xbf16>, vector<16x768xf32> -> vector<16x768xf32>
    %351 = vector.extract_strided_slice %350 {offsets = [0, 0], sizes = [16, 384], strides = [1, 1]} : vector<16x768xf32> to vector<16x384xf32>
    %352 = vector.extract_strided_slice %350 {offsets = [0, 384], sizes = [16, 384], strides = [1, 1]} : vector<16x768xf32> to vector<16x384xf32>
    %353 = arith.truncf %325 : vector<16x128xf32> to vector<16x128xbf16>
    %cst_63 = arith.constant dense<0.000000e+00> : vector<16x384xf32>
    %354 = tpu.matmul %353, %5, %cst_63 {dimension_numbers = #tpu.dot_dimension_numbers<[1], [0], [0], [1], [0, 0, 1, 1], [], []>} : vector<16x128xbf16>, vector<128x384xbf16>, vector<16x384xf32> -> vector<16x384xf32>
    %355 = vector.extract_strided_slice %351 {offsets = [0, 0], sizes = [16, 256], strides = [1, 1]} : vector<16x384xf32> to vector<16x256xf32>
    %356 = vector.extract_strided_slice %354 {offsets = [0, 0], sizes = [16, 256], strides = [1, 1]} : vector<16x384xf32> to vector<16x256xf32>
    %357 = arith.addf %355, %356 : vector<16x256xf32>
    %358 = vector.broadcast %7 : vector<1x256xf32> to vector<16x256xf32>
    %359 = arith.addf %357, %358 : vector<16x256xf32>
    %360 = arith.negf %359 : vector<16x256xf32>
    %361 = math.exp %360 : vector<16x256xf32>
    %cst_64 = arith.constant 1.000000e+00 : f32
    %362 = vector.broadcast %cst_64 : f32 to vector<16x256xf32>
    %363 = arith.addf %362, %361 : vector<16x256xf32>
    %364 = arith.divf %362, %363 : vector<16x256xf32>
    %365 = vector.extract_strided_slice %364 {offsets = [0, 0], sizes = [16, 128], strides = [1, 1]} : vector<16x256xf32> to vector<16x128xf32>
    %366 = vector.extract_strided_slice %364 {offsets = [0, 128], sizes = [16, 128], strides = [1, 1]} : vector<16x256xf32> to vector<16x128xf32>
    %367 = vector.extract_strided_slice %351 {offsets = [0, 256], sizes = [16, 128], strides = [1, 1]} : vector<16x384xf32> to vector<16x128xf32>
    %368 = vector.broadcast %8 : vector<1x128xf32> to vector<16x128xf32>
    %369 = arith.addf %367, %368 : vector<16x128xf32>
    %370 = vector.extract_strided_slice %354 {offsets = [0, 256], sizes = [16, 128], strides = [1, 1]} : vector<16x384xf32> to vector<16x128xf32>
    %371 = vector.broadcast %9 : vector<1x128xf32> to vector<16x128xf32>
    %372 = arith.addf %370, %371 : vector<16x128xf32>
    %373 = arith.mulf %365, %372 : vector<16x128xf32>
    %374 = arith.addf %369, %373 : vector<16x128xf32>
    %375 = math.tanh %374 : vector<16x128xf32>
    %cst_65 = arith.constant 1.000000e+00 : f32
    %376 = vector.broadcast %cst_65 : f32 to vector<16x128xf32>
    %377 = arith.subf %376, %366 : vector<16x128xf32>
    %378 = arith.mulf %377, %375 : vector<16x128xf32>
    %379 = arith.mulf %366, %325 : vector<16x128xf32>
    %380 = arith.addf %378, %379 : vector<16x128xf32>
    %c112 = arith.constant 112 : index
    %c0_66 = arith.constant 0 : index
    %381 = vector.load %arg13[%c112, %c0_66] : memref<128x384xf32, #tpu.memory_space<vmem>>, vector<16x384xf32>
    %382 = vector.extract_strided_slice %381 {offsets = [0, 0], sizes = [16, 256], strides = [1, 1]} : vector<16x384xf32> to vector<16x256xf32>
    %383 = vector.extract_strided_slice %352 {offsets = [0, 0], sizes = [16, 256], strides = [1, 1]} : vector<16x384xf32> to vector<16x256xf32>
    %384 = arith.addf %382, %383 : vector<16x256xf32>
    %385 = arith.negf %384 : vector<16x256xf32>
    %386 = math.exp %385 : vector<16x256xf32>
    %cst_67 = arith.constant 1.000000e+00 : f32
    %387 = vector.broadcast %cst_67 : f32 to vector<16x256xf32>
    %388 = arith.addf %387, %386 : vector<16x256xf32>
    %389 = arith.divf %387, %388 : vector<16x256xf32>
    %390 = vector.extract_strided_slice %389 {offsets = [0, 0], sizes = [16, 128], strides = [1, 1]} : vector<16x256xf32> to vector<16x128xf32>
    %391 = vector.extract_strided_slice %389 {offsets = [0, 128], sizes = [16, 128], strides = [1, 1]} : vector<16x256xf32> to vector<16x128xf32>
    %392 = vector.extract_strided_slice %381 {offsets = [0, 256], sizes = [16, 128], strides = [1, 1]} : vector<16x384xf32> to vector<16x128xf32>
    %393 = vector.extract_strided_slice %352 {offsets = [0, 256], sizes = [16, 128], strides = [1, 1]} : vector<16x384xf32> to vector<16x128xf32>
    %394 = vector.broadcast %6 : vector<1x128xf32> to vector<16x128xf32>
    %395 = arith.addf %393, %394 : vector<16x128xf32>
    %396 = arith.mulf %390, %395 : vector<16x128xf32>
    %397 = arith.addf %392, %396 : vector<16x128xf32>
    %398 = math.tanh %397 : vector<16x128xf32>
    %cst_68 = arith.constant 1.000000e+00 : f32
    %399 = vector.broadcast %cst_68 : f32 to vector<16x128xf32>
    %400 = arith.subf %399, %391 : vector<16x128xf32>
    %401 = arith.mulf %400, %398 : vector<16x128xf32>
    %402 = arith.mulf %391, %348 : vector<16x128xf32>
    %403 = arith.addf %401, %402 : vector<16x128xf32>
    %404 = arith.truncf %403 : vector<16x128xf32> to vector<16x128xbf16>
    %405 = vector.extract_strided_slice %4 {offsets = [0, 0], sizes = [128, 384], strides = [1, 1]} : vector<128x768xbf16> to vector<128x384xbf16>
    %cst_69 = arith.constant dense<0.000000e+00> : vector<16x384xf32>
    %406 = tpu.matmul %404, %405, %cst_69 {dimension_numbers = #tpu.dot_dimension_numbers<[1], [0], [0], [1], [0, 0, 1, 1], [], []>} : vector<16x128xbf16>, vector<128x384xbf16>, vector<16x384xf32> -> vector<16x384xf32>
    %407 = arith.truncf %380 : vector<16x128xf32> to vector<16x128xbf16>
    %cst_70 = arith.constant dense<0.000000e+00> : vector<16x384xf32>
    %408 = tpu.matmul %407, %5, %cst_70 {dimension_numbers = #tpu.dot_dimension_numbers<[1], [0], [0], [1], [0, 0, 1, 1], [], []>} : vector<16x128xbf16>, vector<128x384xbf16>, vector<16x384xf32> -> vector<16x384xf32>
    %409 = vector.extract_strided_slice %406 {offsets = [0, 0], sizes = [16, 256], strides = [1, 1]} : vector<16x384xf32> to vector<16x256xf32>
    %410 = vector.extract_strided_slice %408 {offsets = [0, 0], sizes = [16, 256], strides = [1, 1]} : vector<16x384xf32> to vector<16x256xf32>
    %411 = arith.addf %409, %410 : vector<16x256xf32>
    %412 = vector.broadcast %7 : vector<1x256xf32> to vector<16x256xf32>
    %413 = arith.addf %411, %412 : vector<16x256xf32>
    %414 = arith.negf %413 : vector<16x256xf32>
    %415 = math.exp %414 : vector<16x256xf32>
    %cst_71 = arith.constant 1.000000e+00 : f32
    %416 = vector.broadcast %cst_71 : f32 to vector<16x256xf32>
    %417 = arith.addf %416, %415 : vector<16x256xf32>
    %418 = arith.divf %416, %417 : vector<16x256xf32>
    %419 = vector.extract_strided_slice %418 {offsets = [0, 0], sizes = [16, 128], strides = [1, 1]} : vector<16x256xf32> to vector<16x128xf32>
    %420 = vector.extract_strided_slice %418 {offsets = [0, 128], sizes = [16, 128], strides = [1, 1]} : vector<16x256xf32> to vector<16x128xf32>
    %421 = vector.extract_strided_slice %406 {offsets = [0, 256], sizes = [16, 128], strides = [1, 1]} : vector<16x384xf32> to vector<16x128xf32>
    %422 = vector.broadcast %8 : vector<1x128xf32> to vector<16x128xf32>
    %423 = arith.addf %421, %422 : vector<16x128xf32>
    %424 = vector.extract_strided_slice %408 {offsets = [0, 256], sizes = [16, 128], strides = [1, 1]} : vector<16x384xf32> to vector<16x128xf32>
    %425 = vector.broadcast %9 : vector<1x128xf32> to vector<16x128xf32>
    %426 = arith.addf %424, %425 : vector<16x128xf32>
    %427 = arith.mulf %419, %426 : vector<16x128xf32>
    %428 = arith.addf %423, %427 : vector<16x128xf32>
    %429 = math.tanh %428 : vector<16x128xf32>
    %cst_72 = arith.constant 1.000000e+00 : f32
    %430 = vector.broadcast %cst_72 : f32 to vector<16x128xf32>
    %431 = arith.subf %430, %420 : vector<16x128xf32>
    %432 = arith.mulf %431, %429 : vector<16x128xf32>
    %433 = arith.mulf %420, %380 : vector<16x128xf32>
    %434 = arith.addf %432, %433 : vector<16x128xf32>
    %c0_73 = arith.constant 0 : index
    %c0_74 = arith.constant 0 : index
    %435 = vector.load %arg8[%c0_73, %c0_74] : memref<128x64xf32, #tpu.memory_space<vmem>>, vector<128x64xf32>
    %cst_75 = arith.constant dense<0.000000e+00> : vector<16x64xf32>
    %436 = tpu.matmul %434, %435, %cst_75 {dimension_numbers = #tpu.dot_dimension_numbers<[1], [0], [0], [1], [0, 0, 1, 1], [], []>} : vector<16x128xf32>, vector<128x64xf32>, vector<16x64xf32> -> vector<16x64xf32>
    %c0_76 = arith.constant 0 : index
    %c0_77 = arith.constant 0 : index
    %437 = vector.load %arg9[%c0_76, %c0_77] : memref<1x64xf32, #tpu.memory_space<vmem>>, vector<1x64xf32>
    %438 = vector.broadcast %437 : vector<1x64xf32> to vector<16x64xf32>
    %439 = arith.addf %436, %438 : vector<16x64xf32>
    %cst_78 = arith.constant 0.000000e+00 : f32
    %440 = vector.broadcast %cst_78 : f32 to vector<16x64xf32>
    %441 = arith.maximumf %439, %440 : vector<16x64xf32>
    %c0_79 = arith.constant 0 : index
    %c0_80 = arith.constant 0 : index
    %442 = vector.load %arg10[%c0_79, %c0_80] : memref<64x5xf32, #tpu.memory_space<vmem>>, vector<64x5xf32>
    %cst_81 = arith.constant dense<0.000000e+00> : vector<16x5xf32>
    %443 = tpu.matmul %441, %442, %cst_81 {dimension_numbers = #tpu.dot_dimension_numbers<[1], [0], [0], [1], [0, 0, 1, 1], [], []>} : vector<16x64xf32>, vector<64x5xf32>, vector<16x5xf32> -> vector<16x5xf32>
    %c0_82 = arith.constant 0 : index
    %c0_83 = arith.constant 0 : index
    %444 = vector.load %arg11[%c0_82, %c0_83] : memref<1x5xf32, #tpu.memory_space<vmem>>, vector<1x5xf32>
    %445 = vector.broadcast %444 : vector<1x5xf32> to vector<16x5xf32>
    %446 = arith.addf %443, %445 : vector<16x5xf32>
    %c0_84 = arith.constant 0 : index
    %c0_85 = arith.constant 0 : index
    %447 = vector.load %arg12[%c0_84, %c0_85] : memref<16x5xf32, #tpu.memory_space<vmem>>, vector<16x5xf32>
    tpu.vector_store %arg12[%c0_84, %c0_85], %446 {strides = array<i32>} : memref<16x5xf32, #tpu.memory_space<vmem>>, vector<16x5xf32>,
    return
  }
}

</mosaic_0001>

<llo_original>
// kernel: emotion_seq2beh_forward.1
$region0: #{emotion_seq2beh_forward.1}
  #allocation0 [shape = 'u32[]', space=smem, size = 0x4, offset = 0x4, fixed_abs, tag = 'smem constant byte address 0x4 - core index']
  #allocation1 [shape = 'u32[144,128]{1,0:T(1,128)}', space=vmem, size = 0x12000, scoped, tag = 'internal scratch']
  #allocation2 [shape = 'f32[128,384]{1,0:T(8,128)}', space=vmem, size = 0x30000, scoped, tag = 'scratch operand']
  %s0 = inlined_call_operand.vmem [shape: f32[128,7], index: 0, kind: input, shape index: {}]
  %s1 = inlined_call_operand.vmem [shape: f32[7,384], index: 1, kind: input, shape index: {}]
  %s2 = inlined_call_operand.vmem [shape: f32[1,128], index: 2, kind: input, shape index: {}]
  %s3 = inlined_call_operand.vmem [shape: bf16[128,768], index: 3, kind: input, shape index: {}]
  %s4 = inlined_call_operand.vmem [shape: bf16[128,384], index: 4, kind: input, shape index: {}]
  %s5 = inlined_call_operand.vmem [shape: f32[1,256], index: 5, kind: input, shape index: {}]
  %s6 = inlined_call_operand.vmem [shape: f32[1,128], index: 6, kind: input, shape index: {}]
  %s7 = inlined_call_operand.vmem [shape: f32[1,128], index: 7, kind: input, shape index: {}]
  %s8 = inlined_call_operand.vmem [shape: f32[128,64], index: 8, kind: input, shape index: {}]
  %s9 = inlined_call_operand.vmem [shape: f32[1,64], index: 9, kind: input, shape index: {}]
  %s10 = inlined_call_operand.vmem [shape: f32[64,5], index: 10, kind: input, shape index: {}]
  %s11 = inlined_call_operand.vmem [shape: f32[1,5], index: 11, kind: input, shape index: {}]
  %s12 = inlined_call_operand.vmem [shape: f32[16,5], index: 12, kind: output, shape index: {}]
  %s13 = sld [smem:[#allocation0]]
  $region58: #{emotion_seq2beh_forward.1} parent=0
    _
  %s15 = ssub.s32 1, %s13
  %s16 = scalar_select 0, %s15, %s13
  // Predicated region
  $region2: #{emotion_seq2beh_forward.1} parent=0 // pred_check
    _
  $region3: #{emotion_seq2beh_forward.1} parent=0 // pred_check_branch
    %18 = sbr.rel (0) target = $region5
  $region4: #{emotion_seq2beh_forward.1} parent=0 // pred_region
    _
  $region5: #{emotion_seq2beh_forward.1} parent=0 // pred_fallthru
    _
  // Predicated region
  $region6: #{emotion_seq2beh_forward.1} parent=0 // pred_check
    _
  $region7: #{emotion_seq2beh_forward.1} parent=0 // pred_check_branch
    %20 = sbr.rel (0) target = $region9
  $region8: #{emotion_seq2beh_forward.1} parent=0 // pred_region
    _
  $region9: #{emotion_seq2beh_forward.1} parent=0 // pred_fallthru
    _
  // Predicated region
  $region10: #{emotion_seq2beh_forward.1} parent=0 // pred_check
    _
  $region11: #{emotion_seq2beh_forward.1} parent=0 // pred_check_branch
    %22 = sbr.rel (0) target = $region13
  $region12: #{emotion_seq2beh_forward.1} parent=0 // pred_region
    _
  $region13: #{emotion_seq2beh_forward.1} parent=0 // pred_fallthru
    _
  // Predicated region
  $region14: #{emotion_seq2beh_forward.1} parent=0 // pred_check
    _
  $region15: #{emotion_seq2beh_forward.1} parent=0 // pred_check_branch
    %24 = sbr.rel (0) target = $region17
  $region16: #{emotion_seq2beh_forward.1} parent=0 // pred_region
    _
  $region17: #{emotion_seq2beh_forward.1} parent=0 // pred_fallthru
    _
  // Predicated region
  $region18: #{emotion_seq2beh_forward.1} parent=0 // pred_check
    _
  $region19: #{emotion_seq2beh_forward.1} parent=0 // pred_check_branch
    %26 = sbr.rel (0) target = $region21
  $region20: #{emotion_seq2beh_forward.1} parent=0 // pred_region
    _
  $region21: #{emotion_seq2beh_forward.1} parent=0 // pred_fallthru
    _
  // Predicated region
  $region22: #{emotion_seq2beh_forward.1} parent=0 // pred_check
    _
  $region23: #{emotion_seq2beh_forward.1} parent=0 // pred_check_branch
    %28 = sbr.rel (0) target = $region25
  $region24: #{emotion_seq2beh_forward.1} parent=0 // pred_region
    _
  $region25: #{emotion_seq2beh_forward.1} parent=0 // pred_fallthru
    _
  // Predicated region
  $region26: #{emotion_seq2beh_forward.1} parent=0 // pred_check
    _
  $region27: #{emotion_seq2beh_forward.1} parent=0 // pred_check_branch
    %30 = sbr.rel (0) target = $region29
  $region28: #{emotion_seq2beh_forward.1} parent=0 // pred_region
    _
  $region29: #{emotion_seq2beh_forward.1} parent=0 // pred_fallthru
    _
  // Predicated region
  $region30: #{emotion_seq2beh_forward.1} parent=0 // pred_check
    _
  $region31: #{emotion_seq2beh_forward.1} parent=0 // pred_check_branch
    %32 = sbr.rel (0) target = $region33
  $region32: #{emotion_seq2beh_forward.1} parent=0 // pred_region
    _
  $region33: #{emotion_seq2beh_forward.1} parent=0 // pred_fallthru
    _
  // Predicated region
  $region34: #{emotion_seq2beh_forward.1} parent=0 // pred_check
    _
  $region35: #{emotion_seq2beh_forward.1} parent=0 // pred_check_branch
    %34 = sbr.rel (0) target = $region37
  $region36: #{emotion_seq2beh_forward.1} parent=0 // pred_region
    _
  $region37: #{emotion_seq2beh_forward.1} parent=0 // pred_fallthru
    _
  // Predicated region
  $region38: #{emotion_seq2beh_forward.1} parent=0 // pred_check
    _
  $region39: #{emotion_seq2beh_forward.1} parent=0 // pred_check_branch
    %36 = sbr.rel (0) target = $region41
  $region40: #{emotion_seq2beh_forward.1} parent=0 // pred_region
    _
  $region41: #{emotion_seq2beh_forward.1} parent=0 // pred_fallthru
    _
  // Predicated region
  $region42: #{emotion_seq2beh_forward.1} parent=0 // pred_check
    _
  $region43: #{emotion_seq2beh_forward.1} parent=0 // pred_check_branch
    %38 = sbr.rel (0) target = $region45
  $region44: #{emotion_seq2beh_forward.1} parent=0 // pred_region
    _
  $region45: #{emotion_seq2beh_forward.1} parent=0 // pred_fallthru
    _
  // Predicated region
  $region46: #{emotion_seq2beh_forward.1} parent=0 // pred_check
    _
  $region47: #{emotion_seq2beh_forward.1} parent=0 // pred_check_branch
    %40 = sbr.rel (0) target = $region49
  $region48: #{emotion_seq2beh_forward.1} parent=0 // pred_region
    _
  $region49: #{emotion_seq2beh_forward.1} parent=0 // pred_fallthru
    _
  %v42 = vld [vmem:[%s0] sm:$0xff]
  %v43 = vld [vmem:[%s0 + $0x8] sm:$0xff]
  %v44 = vld [vmem:[%s0 + $0x10] sm:$0xff]
  %v45 = vld [vmem:[%s0 + $0x18] sm:$0xff]
  %v46 = vld [vmem:[%s0 + $0x20] sm:$0xff]
  %v47 = vld [vmem:[%s0 + $0x28] sm:$0xff]
  %v48 = vld [vmem:[%s0 + $0x30] sm:$0xff]
  %v49 = vld [vmem:[%s0 + $0x38] sm:$0xff]
  %v50 = vld [vmem:[%s0 + $0x40] sm:$0xff]
  %v51 = vld [vmem:[%s0 + $0x48] sm:$0xff]
  %v52 = vld [vmem:[%s0 + $0x50] sm:$0xff]
  %v53 = vld [vmem:[%s0 + $0x58] sm:$0xff]
  %v54 = vld [vmem:[%s0 + $0x60] sm:$0xff]
  %v55 = vld [vmem:[%s0 + $0x68] sm:$0xff]
  %v56 = vld [vmem:[%s0 + $0x70] sm:$0xff]
  %v57 = vld [vmem:[%s0 + $0x78] sm:$0xff]
  %v58 = vld [vmem:[%s1] sm:$0x7f]
  %v59 = vld [vmem:[%s1 + $0x8] sm:$0x7f]
  %v60 = vld [vmem:[%s1 + $0x10] sm:$0x7f]
  %vm61 = vcmask 56320
  %v63 = vsel %vm61, %v42, 0
  %v66 = vsel %vm61, %v43, 0
  %v69 = vsel %vm61, %v44, 0
  %v72 = vsel %vm61, %v45, 0
  %v75 = vsel %vm61, %v46, 0
  %v78 = vsel %vm61, %v47, 0
  %v81 = vsel %vm61, %v48, 0
  %v84 = vsel %vm61, %v49, 0
  %v87 = vsel %vm61, %v50, 0
  %v90 = vsel %vm61, %v51, 0
  %v93 = vsel %vm61, %v52, 0
  %v96 = vsel %vm61, %v53, 0
  %v99 = vsel %vm61, %v54, 0
  %v102 = vsel %vm61, %v55, 0
  %v105 = vsel %vm61, %v56, 0
  %v108 = vsel %vm61, %v57, 0
  %vm110 = vcmask 1046528
  %v112 = vsel %vm110, %v58, 0
  %v115 = vsel %vm110, %v59, 0
  %v118 = vsel %vm110, %v60, 0
  %120 = vmatprep.subr.mxu0 0.0
  %121 = vmatpush1.msra.mxu0 0.0
  %122 = vmatprep.subr.mxu0 0.0
  %123 = vmatpush1.msra.mxu0 0.0
  %124 = vmatprep.subr.mxu0 0.0
  %125 = vmatpush1.msra.mxu0 0.0
  %126 = vmatprep.subr.mxu0 0.0
  %127 = vmatpush1.msra.mxu0 0.0
  %128 = vmatprep.subr.mxu0 0.0
  %129 = vmatpush1.msra.mxu0 0.0
  %130 = vmatprep.subr.mxu0 0.0
  %131 = vmatpush1.msra.mxu0 0.0
  %132 = vmatprep.subr.mxu0 0.0
  %133 = vmatpush1.msra.mxu0 0.0
  %134 = vmatprep.subr.mxu0 0.0
  %135 = vmatpush1.msra.mxu0 0.0
  %136 = vmatprep.subr.mxu0 0.0
  %137 = vmatpush1.msra.mxu0 0.0
  %138 = vmatprep.subr.mxu0 0.0
  %139 = vmatpush1.msra.mxu0 0.0
  %140 = vmatprep.subr.mxu0 0.0
  %141 = vmatpush1.msra.mxu0 0.0
  %142 = vmatprep.subr.mxu0 0.0
  %143 = vmatpush1.msra.mxu0 0.0
  %144 = vmatprep.subr.mxu0 0.0
  %145 = vmatpush1.msra.mxu0 0.0
  %146 = vmatprep.subr.mxu0 0.0
  %147 = vmatpush1.msra.mxu0 0.0
  %148 = vmatprep.subr.mxu0 0.0
  %149 = vmatpush1.msra.mxu0 0.0
  %150 = vmatprep.subr.mxu0 %v115
  %151 = vmatpush1.msra.mxu0 %v112
  %152 = vmatprep.subr.mxu0 0.0
  %153 = vmatpush2.msra.mxu0 0.0
  %154 = vmatprep.subr.mxu0 0.0
  %155 = vmatpush2.msra.mxu0 0.0
  %156 = vmatprep.subr.mxu0 0.0
  %157 = vmatpush2.msra.mxu0 0.0
  %158 = vmatprep.subr.mxu0 0.0
  %159 = vmatpush2.msra.mxu0 0.0
  %160 = vmatprep.subr.mxu0 0.0
  %161 = vmatpush2.msra.mxu0 0.0
  %162 = vmatprep.subr.mxu0 0.0
  %163 = vmatpush2.msra.mxu0 0.0
  %164 = vmatprep.subr.mxu0 0.0
  %165 = vmatpush2.msra.mxu0 0.0
  %166 = vmatprep.subr.mxu0 0.0
  %167 = vmatpush2.msra.mxu0 0.0
  %168 = vmatprep.subr.mxu0 0.0
  %169 = vmatpush2.msra.mxu0 0.0
  %170 = vmatprep.subr.mxu0 0.0
  %171 = vmatpush2.msra.mxu0 0.0
  %172 = vmatprep.subr.mxu0 0.0
  %173 = vmatpush2.msra.mxu0 0.0
  %174 = vmatprep.subr.mxu0 0.0
  %175 = vmatpush2.msra.mxu0 0.0
  %176 = vmatprep.subr.mxu0 0.0
  %177 = vmatpush2.msra.mxu0 0.0
  %178 = vmatprep.subr.mxu0 0.0
  %179 = vmatpush2.msra.mxu0 0.0
  %180 = vmatprep.subr.mxu0 0.0
  %181 = vmatpush2.msra.mxu0 0.0
  %182 = vmatprep.subr.mxu0 0.0
  %183 = vmatpush2.msra.mxu0 0.0
  %184 = vmatprep.mubr.f32.mxu0 0.0
  %185 = vmatmul.mubr.f32.gmra.mxu0 %v63
  %v186 = vpop.f32.mrf.mxu0
  %v187 = vadd.f32 0.0, %v186
  %v188 = vpop.f32.mrf.mxu0
  %v189 = vadd.f32 0.0, %v188
  %190 = vmatprep.mubr.f32.mxu0 0.0
  %191 = vmatmul.mubr.f32.gmra.mxu0 %v66
  %v192 = vpop.f32.mrf.mxu0
  %v193 = vadd.f32 0.0, %v192
  %v194 = vpop.f32.mrf.mxu0
  %v195 = vadd.f32 0.0, %v194
  %196 = vmatprep.mubr.f32.mxu0 0.0
  %197 = vmatmul.mubr.f32.gmra.mxu0 %v69
  %v198 = vpop.f32.mrf.mxu0
  %v199 = vadd.f32 0.0, %v198
  %v200 = vpop.f32.mrf.mxu0
  %v201 = vadd.f32 0.0, %v200
  %202 = vmatprep.mubr.f32.mxu0 0.0
  %203 = vmatmul.mubr.f32.gmra.mxu0 %v72
  %v204 = vpop.f32.mrf.mxu0
  %v205 = vadd.f32 0.0, %v204
  %v206 = vpop.f32.mrf.mxu0
  %v207 = vadd.f32 0.0, %v206
  %208 = vmatprep.mubr.f32.mxu0 0.0
  %209 = vmatmul.mubr.f32.gmra.mxu0 %v75
  %v210 = vpop.f32.mrf.mxu0
  %v211 = vadd.f32 0.0, %v210
  %v212 = vpop.f32.mrf.mxu0
  %v213 = vadd.f32 0.0, %v212
  %214 = vmatprep.mubr.f32.mxu0 0.0
  %215 = vmatmul.mubr.f32.gmra.mxu0 %v78
  %v216 = vpop.f32.mrf.mxu0
  %v217 = vadd.f32 0.0, %v216
  %v218 = vpop.f32.mrf.mxu0
  %v219 = vadd.f32 0.0, %v218
  %220 = vmatprep.mubr.f32.mxu0 0.0
  %221 = vmatmul.mubr.f32.gmra.mxu0 %v81
  %v222 = vpop.f32.mrf.mxu0
  %v223 = vadd.f32 0.0, %v222
  %v224 = vpop.f32.mrf.mxu0
  %v225 = vadd.f32 0.0, %v224
  %226 = vmatprep.mubr.f32.mxu0 0.0
  %227 = vmatmul.mubr.f32.gmra.mxu0 %v84
  %v228 = vpop.f32.mrf.mxu0
  %v229 = vadd.f32 0.0, %v228
  %v230 = vpop.f32.mrf.mxu0
  %v231 = vadd.f32 0.0, %v230
  %232 = vmatprep.mubr.f32.mxu0 0.0
  %233 = vmatmul.mubr.f32.gmra.mxu0 %v87
  %v234 = vpop.f32.mrf.mxu0
  %v235 = vadd.f32 0.0, %v234
  %v236 = vpop.f32.mrf.mxu0
  %v237 = vadd.f32 0.0, %v236
  %238 = vmatprep.mubr.f32.mxu0 0.0
  %239 = vmatmul.mubr.f32.gmra.mxu0 %v90
  %v240 = vpop.f32.mrf.mxu0
  %v241 = vadd.f32 0.0, %v240
  %v242 = vpop.f32.mrf.mxu0
  %v243 = vadd.f32 0.0, %v242
  %244 = vmatprep.mubr.f32.mxu0 0.0
  %245 = vmatmul.mubr.f32.gmra.mxu0 %v93
  %v246 = vpop.f32.mrf.mxu0
  %v247 = vadd.f32 0.0, %v246
  %v248 = vpop.f32.mrf.mxu0
  %v249 = vadd.f32 0.0, %v248
  %250 = vmatprep.mubr.f32.mxu0 0.0
  %251 = vmatmul.mubr.f32.gmra.mxu0 %v96
  %v252 = vpop.f32.mrf.mxu0
  %v253 = vadd.f32 0.0, %v252
  %v254 = vpop.f32.mrf.mxu0
  %v255 = vadd.f32 0.0, %v254
  %256 = vmatprep.mubr.f32.mxu0 0.0
  %257 = vmatmul.mubr.f32.gmra.mxu0 %v99
  %v258 = vpop.f32.mrf.mxu0
  %v259 = vadd.f32 0.0, %v258
  %v260 = vpop.f32.mrf.mxu0
  %v261 = vadd.f32 0.0, %v260
  %262 = vmatprep.mubr.f32.mxu0 0.0
  %263 = vmatmul.mubr.f32.gmra.mxu0 %v102
  %v264 = vpop.f32.mrf.mxu0
  %v265 = vadd.f32 0.0, %v264
  %v266 = vpop.f32.mrf.mxu0
  %v267 = vadd.f32 0.0, %v266
  %268 = vmatprep.mubr.f32.mxu0 0.0
  %269 = vmatmul.mubr.f32.gmra.mxu0 %v105
  %v270 = vpop.f32.mrf.mxu0
  %v271 = vadd.f32 0.0, %v270
  %v272 = vpop.f32.mrf.mxu0
  %v273 = vadd.f32 0.0, %v272
  %274 = vmatprep.mubr.f32.mxu0 0.0
  %275 = vmatmul.mubr.f32.gmra.mxu0 %v108
  %v276 = vpop.f32.mrf.mxu0
  %v277 = vadd.f32 0.0, %v276
  %v278 = vpop.f32.mrf.mxu0
  %v279 = vadd.f32 0.0, %v278
  %280 = vdwg.mxu0
  %281 = vmatprep.subr.mxu0 0.0
  %282 = vmatpush1.msra.mxu0 0.0
  %283 = vmatprep.subr.mxu0 0.0
  %284 = vmatpush1.msra.mxu0 0.0
  %285 = vmatprep.subr.mxu0 0.0
  %286 = vmatpush1.msra.mxu0 0.0
  %287 = vmatprep.subr.mxu0 0.0
  %288 = vmatpush1.msra.mxu0 0.0
  %289 = vmatprep.subr.mxu0 0.0
  %290 = vmatpush1.msra.mxu0 0.0
  %291 = vmatprep.subr.mxu0 0.0
  %292 = vmatpush1.msra.mxu0 0.0
  %293 = vmatprep.subr.mxu0 0.0
  %294 = vmatpush1.msra.mxu0 0.0
  %295 = vmatprep.subr.mxu0 0.0
  %296 = vmatpush1.msra.mxu0 0.0
  %297 = vmatprep.subr.mxu0 0.0
  %298 = vmatpush1.msra.mxu0 0.0
  %299 = vmatprep.subr.mxu0 0.0
  %300 = vmatpush1.msra.mxu0 0.0
  %301 = vmatprep.subr.mxu0 0.0
  %302 = vmatpush1.msra.mxu0 0.0
  %303 = vmatprep.subr.mxu0 0.0
  %304 = vmatpush1.msra.mxu0 0.0
  %305 = vmatprep.subr.mxu0 0.0
  %306 = vmatpush1.msra.mxu0 0.0
  %307 = vmatprep.subr.mxu0 0.0
  %308 = vmatpush1.msra.mxu0 0.0
  %309 = vmatprep.subr.mxu0 0.0
  %310 = vmatpush1.msra.mxu0 0.0
  %311 = vmatprep.subr.mxu0 0.0
  %312 = vmatpush1.msra.mxu0 %v118
  %313 = vmatprep.subr.mxu0 0.0
  %314 = vmatpush2.msra.mxu0 0.0
  %315 = vmatprep.subr.mxu0 0.0
  %316 = vmatpush2.msra.mxu0 0.0
  %317 = vmatprep.subr.mxu0 0.0
  %318 = vmatpush2.msra.mxu0 0.0
  %319 = vmatprep.subr.mxu0 0.0
  %320 = vmatpush2.msra.mxu0 0.0
  %321 = vmatprep.subr.mxu0 0.0
  %322 = vmatpush2.msra.mxu0 0.0
  %323 = vmatprep.subr.mxu0 0.0
  %324 = vmatpush2.msra.mxu0 0.0
  %325 = vmatprep.subr.mxu0 0.0
  %326 = vmatpush2.msra.mxu0 0.0
  %327 = vmatprep.subr.mxu0 0.0
  %328 = vmatpush2.msra.mxu0 0.0
  %329 = vmatprep.subr.mxu0 0.0
  %330 = vmatpush2.msra.mxu0 0.0
  %331 = vmatprep.subr.mxu0 0.0
  %332 = vmatpush2.msra.mxu0 0.0
  %333 = vmatprep.subr.mxu0 0.0
  %334 = vmatpush2.msra.mxu0 0.0
  %335 = vmatprep.subr.mxu0 0.0
  %336 = vmatpush2.msra.mxu0 0.0
  %337 = vmatprep.subr.mxu0 0.0
  %338 = vmatpush2.msra.mxu0 0.0
  %339 = vmatprep.subr.mxu0 0.0
  %340 = vmatpush2.msra.mxu0 0.0
  %341 = vmatprep.subr.mxu0 0.0
  %342 = vmatpush2.msra.mxu0 0.0
  %343 = vmatprep.subr.mxu0 0.0
  %344 = vmatpush2.msra.mxu0 0.0
  %345 = vmatprep.mubr.f32.mxu0 0.0
  %346 = vmatmul.mubr.f32.gmra.mxu0 %v63
  %v347 = vpop.f32.mrf.mxu0
  %v348 = vadd.f32 0.0, %v347
  %v349 = vpop.f32.mrf.mxu0
  %350 = vmatprep.mubr.f32.mxu0 0.0
  %351 = vmatmul.mubr.f32.gmra.mxu0 %v66
  %v352 = vpop.f32.mrf.mxu0
  %v353 = vadd.f32 0.0, %v352
  %v354 = vpop.f32.mrf.mxu0
  %355 = vmatprep.mubr.f32.mxu0 0.0
  %356 = vmatmul.mubr.f32.gmra.mxu0 %v69
  %v357 = vpop.f32.mrf.mxu0
  %v358 = vadd.f32 0.0, %v357
  %v359 = vpop.f32.mrf.mxu0
  %360 = vmatprep.mubr.f32.mxu0 0.0
  %361 = vmatmul.mubr.f32.gmra.mxu0 %v72
  %v362 = vpop.f32.mrf.mxu0
  %v363 = vadd.f32 0.0, %v362
  %v364 = vpop.f32.mrf.mxu0
  %365 = vmatprep.mubr.f32.mxu0 0.0
  %366 = vmatmul.mubr.f32.gmra.mxu0 %v75
  %v367 = vpop.f32.mrf.mxu0
  %v368 = vadd.f32 0.0, %v367
  %v369 = vpop.f32.mrf.mxu0
  %370 = vmatprep.mubr.f32.mxu0 0.0
  %371 = vmatmul.mubr.f32.gmra.mxu0 %v78
  %v372 = vpop.f32.mrf.mxu0
  %v373 = vadd.f32 0.0, %v372
  %v374 = vpop.f32.mrf.mxu0
  %375 = vmatprep.mubr.f32.mxu0 0.0
  %376 = vmatmul.mubr.f32.gmra.mxu0 %v81
  %v377 = vpop.f32.mrf.mxu0
  %v378 = vadd.f32 0.0, %v377
  %v379 = vpop.f32.mrf.mxu0
  %380 = vmatprep.mubr.f32.mxu0 0.0
  %381 = vmatmul.mubr.f32.gmra.mxu0 %v84
  %v382 = vpop.f32.mrf.mxu0
  %v383 = vadd.f32 0.0, %v382
  %v384 = vpop.f32.mrf.mxu0
  %385 = vmatprep.mubr.f32.mxu0 0.0
  %386 = vmatmul.mubr.f32.gmra.mxu0 %v87
  %v387 = vpop.f32.mrf.mxu0
  %v388 = vadd.f32 0.0, %v387
  %v389 = vpop.f32.mrf.mxu0
  %390 = vmatprep.mubr.f32.mxu0 0.0
  %391 = vmatmul.mubr.f32.gmra.mxu0 %v90
  %v392 = vpop.f32.mrf.mxu0
  %v393 = vadd.f32 0.0, %v392
  %v394 = vpop.f32.mrf.mxu0
  %395 = vmatprep.mubr.f32.mxu0 0.0
  %396 = vmatmul.mubr.f32.gmra.mxu0 %v93
  %v397 = vpop.f32.mrf.mxu0
  %v398 = vadd.f32 0.0, %v397
  %v399 = vpop.f32.mrf.mxu0
  %400 = vmatprep.mubr.f32.mxu0 0.0
  %401 = vmatmul.mubr.f32.gmra.mxu0 %v96
  %v402 = vpop.f32.mrf.mxu0
  %v403 = vadd.f32 0.0, %v402
  %v404 = vpop.f32.mrf.mxu0
  %405 = vmatprep.mubr.f32.mxu0 0.0
  %406 = vmatmul.mubr.f32.gmra.mxu0 %v99
  %v407 = vpop.f32.mrf.mxu0
  %v408 = vadd.f32 0.0, %v407
  %v409 = vpop.f32.mrf.mxu0
  %410 = vmatprep.mubr.f32.mxu0 0.0
  %411 = vmatmul.mubr.f32.gmra.mxu0 %v102
  %v412 = vpop.f32.mrf.mxu0
  %v413 = vadd.f32 0.0, %v412
  %v414 = vpop.f32.mrf.mxu0
  %415 = vmatprep.mubr.f32.mxu0 0.0
  %416 = vmatmul.mubr.f32.gmra.mxu0 %v105
  %v417 = vpop.f32.mrf.mxu0
  %v418 = vadd.f32 0.0, %v417
  %v419 = vpop.f32.mrf.mxu0
  %420 = vmatprep.mubr.f32.mxu0 0.0
  %421 = vmatmul.mubr.f32.gmra.mxu0 %v108
  %v422 = vpop.f32.mrf.mxu0
  %v423 = vadd.f32 0.0, %v422
  %v424 = vpop.f32.mrf.mxu0
  %425 = vdwg.mxu0
  %426 = vst [vmem:[#allocation2] sm:$0xff] %v187
  %427 = vst [vmem:[#allocation2 + $0x8] sm:$0xff] %v189
  %428 = vst [vmem:[#allocation2 + $0x10] sm:$0xff] %v348
  %429 = vst [vmem:[#allocation2 + $0x18] sm:$0xff] %v193
  %430 = vst [vmem:[#allocation2 + $0x20] sm:$0xff] %v195
  %431 = vst [vmem:[#allocation2 + $0x28] sm:$0xff] %v353
  %432 = vst [vmem:[#allocation2 + $0x30] sm:$0xff] %v199
  %433 = vst [vmem:[#allocation2 + $0x38] sm:$0xff] %v201
  %434 = vst [vmem:[#allocation2 + $0x40] sm:$0xff] %v358
  %435 = vst [vmem:[#allocation2 + $0x48] sm:$0xff] %v205
  %436 = vst [vmem:[#allocation2 + $0x50] sm:$0xff] %v207
  %437 = vst [vmem:[#allocation2 + $0x58] sm:$0xff] %v363
  %438 = vst [vmem:[#allocation2 + $0x60] sm:$0xff] %v211
  %439 = vst [vmem:[#allocation2 + $0x68] sm:$0xff] %v213
  %440 = vst [vmem:[#allocation2 + $0x70] sm:$0xff] %v368
  %441 = vst [vmem:[#allocation2 + $0x78] sm:$0xff] %v217
  %442 = vst [vmem:[#allocation2 + $0x80] sm:$0xff] %v219
  %443 = vst [vmem:[#allocation2 + $0x88] sm:$0xff] %v373
  %444 = vst [vmem:[#allocation2 + $0x90] sm:$0xff] %v223
  %445 = vst [vmem:[#allocation2 + $0x98] sm:$0xff] %v225
  %446 = vst [vmem:[#allocation2 + $0xa0] sm:$0xff] %v378
  %447 = vst [vmem:[#allocation2 + $0xa8] sm:$0xff] %v229
  %448 = vst [vmem:[#allocation2 + $0xb0] sm:$0xff] %v231
  %449 = vst [vmem:[#allocation2 + $0xb8] sm:$0xff] %v383
  %450 = vst [vmem:[#allocation2 + $0xc0] sm:$0xff] %v235
  %451 = vst [vmem:[#allocation2 + $0xc8] sm:$0xff] %v237
  %452 = vst [vmem:[#allocation2 + $0xd0] sm:$0xff] %v388
  %453 = vst [vmem:[#allocation2 + $0xd8] sm:$0xff] %v241
  %454 = vst [vmem:[#allocation2 + $0xe0] sm:$0xff] %v243
  %455 = vst [vmem:[#allocation2 + $0xe8] sm:$0xff] %v393
  %456 = vst [vmem:[#allocation2 + $0xf0] sm:$0xff] %v247
  %457 = vst [vmem:[#allocation2 + $0xf8] sm:$0xff] %v249
  %458 = vst [vmem:[#allocation2 + $0x100] sm:$0xff] %v398
  %459 = vst [vmem:[#allocation2 + $0x108] sm:$0xff] %v253
  %460 = vst [vmem:[#allocation2 + $0x110] sm:$0xff] %v255
  %461 = vst [vmem:[#allocation2 + $0x118] sm:$0xff] %v403
  %462 = vst [vmem:[#allocation2 + $0x120] sm:$0xff] %v259
  %463 = vst [vmem:[#allocation2 + $0x128] sm:$0xff] %v261
  %464 = vst [vmem:[#allocation2 + $0x130] sm:$0xff] %v408
  %465 = vst [vmem:[#allocation2 + $0x138] sm:$0xff] %v265
  %466 = vst [vmem:[#allocation2 + $0x140] sm:$0xff] %v267
  %467 = vst [vmem:[#allocation2 + $0x148] sm:$0xff] %v413
  %468 = vst [vmem:[#allocation2 + $0x150] sm:$0xff] %v271
  %469 = vst [vmem:[#allocation2 + $0x158] sm:$0xff] %v273
  %470 = vst [vmem:[#allocation2 + $0x160] sm:$0xff] %v418
  %471 = vst [vmem:[#allocation2 + $0x168] sm:$0xff] %v277
  %472 = vst [vmem:[#allocation2 + $0x170] sm:$0xff] %v279
  %473 = vst [vmem:[#allocation2 + $0x178] sm:$0xff] %v423
  %v474 = vld [vmem:[%s3] sm:$0xff]
  %v475 = vld [vmem:[%s3 + $0x8] sm:$0xff]
  %v476 = vld [vmem:[%s3 + $0x10] sm:$0xff]
  %v477 = vld [vmem:[%s3 + $0x18] sm:$0xff]
  %v478 = vld [vmem:[%s3 + $0x20] sm:$0xff]
  %v479 = vld [vmem:[%s3 + $0x28] sm:$0xff]
  %v480 = vld [vmem:[%s3 + $0x30] sm:$0xff]
  %v481 = vld [vmem:[%s3 + $0x38] sm:$0xff]
  %v482 = vld [vmem:[%s3 + $0x40] sm:$0xff]
  %v483 = vld [vmem:[%s3 + $0x48] sm:$0xff]
  %v484 = vld [vmem:[%s3 + $0x50] sm:$0xff]
  %v485 = vld [vmem:[%s3 + $0x58] sm:$0xff]
  %v486 = vld [vmem:[%s3 + $0x60] sm:$0xff]
  %v487 = vld [vmem:[%s3 + $0x68] sm:$0xff]
  %v488 = vld [vmem:[%s3 + $0x70] sm:$0xff]
  %v489 = vld [vmem:[%s3 + $0x78] sm:$0xff]
  %v490 = vld [vmem:[%s3 + $0x80] sm:$0xff]
  %v491 = vld [vmem:[%s3 + $0x88] sm:$0xff]
  %v492 = vld [vmem:[%s3 + $0x90] sm:$0xff]
  %v493 = vld [vmem:[%s3 + $0x98] sm:$0xff]
  %v494 = vld [vmem:[%s3 + $0xa0] sm:$0xff]
  %v495 = vld [vmem:[%s3 + $0xa8] sm:$0xff]
  %v496 = vld [vmem:[%s3 + $0xb0] sm:$0xff]
  %v497 = vld [vmem:[%s3 + $0xb8] sm:$0xff]
  %v498 = vld [vmem:[%s3 + $0xc0] sm:$0xff]
  %v499 = vld [vmem:[%s3 + $0xc8] sm:$0xff]
  %v500 = vld [vmem:[%s3 + $0xd0] sm:$0xff]
  %v501 = vld [vmem:[%s3 + $0xd8] sm:$0xff]
  %v502 = vld [vmem:[%s3 + $0xe0] sm:$0xff]
  %v503 = vld [vmem:[%s3 + $0xe8] sm:$0xff]
  %v504 = vld [vmem:[%s3 + $0xf0] sm:$0xff]
  %v505 = vld [vmem:[%s3 + $0xf8] sm:$0xff]
  %v506 = vld [vmem:[%s3 + $0x100] sm:$0xff]
  %v507 = vld [vmem:[%s3 + $0x108] sm:$0xff]
  %v508 = vld [vmem:[%s3 + $0x110] sm:$0xff]
  %v509 = vld [vmem:[%s3 + $0x118] sm:$0xff]
  %v510 = vld [vmem:[%s3 + $0x120] sm:$0xff]
  %v511 = vld [vmem:[%s3 + $0x128] sm:$0xff]
  %v512 = vld [vmem:[%s3 + $0x130] sm:$0xff]
  %v513 = vld [vmem:[%s3 + $0x138] sm:$0xff]
  %v514 = vld [vmem:[%s3 + $0x140] sm:$0xff]
  %v515 = vld [vmem:[%s3 + $0x148] sm:$0xff]
  %v516 = vld [vmem:[%s3 + $0x150] sm:$0xff]
  %v517 = vld [vmem:[%s3 + $0x158] sm:$0xff]
  %v518 = vld [vmem:[%s3 + $0x160] sm:$0xff]
  %v519 = vld [vmem:[%s3 + $0x168] sm:$0xff]
  %v520 = vld [vmem:[%s3 + $0x170] sm:$0xff]
  %v521 = vld [vmem:[%s3 + $0x178] sm:$0xff]
  %v522 = vld [vmem:[%s4] sm:$0xff]
  %v523 = vld [vmem:[%s4 + $0x8] sm:$0xf]
  %v524 = vld [vmem:[%s4 + $0xc] sm:$0xff]
  %v525 = vld [vmem:[%s4 + $0x14] sm:$0xf]
  %v526 = vld [vmem:[%s4 + $0x18] sm:$0xff]
  %v527 = vld [vmem:[%s4 + $0x20] sm:$0xf]
  %v528 = vld [vmem:[%s4 + $0x24] sm:$0xff]
  %v529 = vld [vmem:[%s4 + $0x2c] sm:$0xf]
  %v530 = vld [vmem:[%s4 + $0x30] sm:$0xff]
  %v531 = vld [vmem:[%s4 + $0x38] sm:$0xf]
  %v532 = vld [vmem:[%s4 + $0x3c] sm:$0xff]
  %v533 = vld [vmem:[%s4 + $0x44] sm:$0xf]
  %v534 = vld [vmem:[%s4 + $0x48] sm:$0xff]
  %v535 = vld [vmem:[%s4 + $0x50] sm:$0xf]
  %v536 = vld [vmem:[%s4 + $0x54] sm:$0xff]
  %v537 = vld [vmem:[%s4 + $0x5c] sm:$0xf]
  %v538 = vld [vmem:[%s4 + $0x60] sm:$0xff]
  %v539 = vld [vmem:[%s4 + $0x68] sm:$0xf]
  %v540 = vld [vmem:[%s4 + $0x6c] sm:$0xff]
  %v541 = vld [vmem:[%s4 + $0x74] sm:$0xf]
  %v542 = vld [vmem:[%s4 + $0x78] sm:$0xff]
  %v543 = vld [vmem:[%s4 + $0x80] sm:$0xf]
  %v544 = vld [vmem:[%s4 + $0x84] sm:$0xff]
  %v545 = vld [vmem:[%s4 + $0x8c] sm:$0xf]
  %v546 = vld [vmem:[%s4 + $0x90] sm:$0xff]
  %v547 = vld [vmem:[%s4 + $0x98] sm:$0xf]
  %v548 = vld [vmem:[%s4 + $0x9c] sm:$0xff]
  %v549 = vld [vmem:[%s4 + $0xa4] sm:$0xf]
  %v550 = vld [vmem:[%s4 + $0xa8] sm:$0xff]
  %v551 = vld [vmem:[%s4 + $0xb0] sm:$0xf]
  %v552 = vld [vmem:[%s4 + $0xb4] sm:$0xff]
  %v553 = vld [vmem:[%s4 + $0xbc] sm:$0xf]
  %v554 = vld [vmem:[%s2] sm:$0x1]
  %v555 = vld [vmem:[%s5] sm:$0x3]
  %v556 = vld [vmem:[%s6] sm:$0x1]
  %v557 = vld [vmem:[%s7] sm:$0x1]
  %v558 = vld [vmem:[#allocation2] sm:$0xff]
  %v559 = vld [vmem:[#allocation2 + $0x8] sm:$0xff]
  %v560 = vld [vmem:[#allocation2 + $0x10] sm:$0xff]
  %v561 = vld [vmem:[#allocation2 + $0x18] sm:$0xff]
  %v562 = vld [vmem:[#allocation2 + $0x20] sm:$0xff]
  %v563 = vld [vmem:[#allocation2 + $0x28] sm:$0xff]
  %v564 = vxor.u32 %v558, 2147483648
  %v565 = vxor.u32 %v559, 2147483648
  %v566 = vxor.u32 %v561, 2147483648
  %v567 = vxor.u32 %v562, 2147483648
  %v568 = vmul.f32 %v564, 1.442695
  %v569 = vpow.pop %v568
  %v570 = vmul.f32 %v565, 1.442695
  %v571 = vpow.pop %v570
  %v572 = vmul.f32 %v566, 1.442695
  %v573 = vpow.pop %v572
  %v574 = vmul.f32 %v567, 1.442695
  %v575 = vpow.pop %v574
  %v576 = vadd.f32 %v569, 1.0
  %v577 = vadd.f32 %v571, 1.0
  %v578 = vadd.f32 %v573, 1.0
  %v579 = vadd.f32 %v575, 1.0
  %v580 = vrcp.pop %v576
  %v581 = vmul.f32 1.0, %v580
  %v582 = vrcp.pop %v577
  %v583 = vmul.f32 1.0, %v582
  %v584 = vrcp.pop %v578
  %v585 = vmul.f32 1.0, %v584
  %v586 = vrcp.pop %v579
  %v587 = vmul.f32 1.0, %v586
  %v589 = vlaneseq
  %v590 = vshrl.u32 %v589, 7
  %v591 = vsub.s32 0, %v590
  %v592 = vrot.slane %v554, %v591
  %v594 = vmul.f32 %v581, %v592
  %v595 = vmul.f32 %v585, %v592
  %v596 = vadd.f32 %v560, %v594
  %v597 = vadd.f32 %v563, %v595
  %v598 = vtanh.pop %v596
  %v599 = vtanh.pop %v597
  %v600 = vsub.f32 1.0, %v583
  %v601 = vsub.f32 1.0, %v587
  %v602 = vmul.f32 %v600, %v598
  %v603 = vmul.f32 %v601, %v599
  %v604 = vpack.c.bf16 %v603, %v602
  %v653 = vunpack.c.l.b16 %v474
  %v654 = vunpack.c.h.b16 %v474
  %v655 = vunpack.c.l.b16 %v475
  %v656 = vunpack.c.h.b16 %v475
  %v657 = vunpack.c.l.b16 %v476
  %v658 = vunpack.c.h.b16 %v476
  %v659 = vunpack.c.l.b16 %v477
  %v660 = vunpack.c.h.b16 %v477
  %v661 = vunpack.c.l.b16 %v478
  %v662 = vunpack.c.h.b16 %v478
  %v663 = vunpack.c.l.b16 %v479
  %v664 = vunpack.c.h.b16 %v479
  %v665 = vunpack.c.l.b16 %v480
  %v666 = vunpack.c.h.b16 %v480
  %v667 = vunpack.c.l.b16 %v481
  %v668 = vunpack.c.h.b16 %v481
  %v669 = vunpack.c.l.b16 %v482
  %v670 = vunpack.c.h.b16 %v482
  %v671 = vunpack.c.l.b16 %v483
  %v672 = vunpack.c.h.b16 %v483
  %v673 = vunpack.c.l.b16 %v484
  %v674 = vunpack.c.h.b16 %v484
  %v675 = vunpack.c.l.b16 %v485
  %v676 = vunpack.c.h.b16 %v485
  %v677 = vunpack.c.l.b16 %v486
  %v678 = vunpack.c.h.b16 %v486
  %v679 = vunpack.c.l.b16 %v487
  %v680 = vunpack.c.h.b16 %v487
  %v681 = vunpack.c.l.b16 %v488
  %v682 = vunpack.c.h.b16 %v488
  %v683 = vunpack.c.l.b16 %v489
  %v684 = vunpack.c.h.b16 %v489
  %v685 = vunpack.c.l.b16 %v490
  %v686 = vunpack.c.h.b16 %v490
  %v687 = vunpack.c.l.b16 %v491
  %v688 = vunpack.c.h.b16 %v491
  %v689 = vunpack.c.l.b16 %v492
  %v690 = vunpack.c.h.b16 %v492
  %v691 = vunpack.c.l.b16 %v493
  %v692 = vunpack.c.h.b16 %v493
  %v693 = vunpack.c.l.b16 %v494
  %v694 = vunpack.c.h.b16 %v494
  %v695 = vunpack.c.l.b16 %v495
  %v696 = vunpack.c.h.b16 %v495
  %v697 = vunpack.c.l.b16 %v496
  %v698 = vunpack.c.h.b16 %v496
  %v699 = vunpack.c.l.b16 %v497
  %v700 = vunpack.c.h.b16 %v497
  %v701 = vunpack.c.l.b16 %v498
  %v702 = vunpack.c.h.b16 %v498
  %v703 = vunpack.c.l.b16 %v499
  %v704 = vunpack.c.h.b16 %v499
  %v705 = vunpack.c.l.b16 %v500
  %v706 = vunpack.c.h.b16 %v500
  %v707 = vunpack.c.l.b16 %v501
  %v708 = vunpack.c.h.b16 %v501
  %v709 = vunpack.c.l.b16 %v502
  %v710 = vunpack.c.h.b16 %v502
  %v711 = vunpack.c.l.b16 %v503
  %v712 = vunpack.c.h.b16 %v503
  %v713 = vunpack.c.l.b16 %v504
  %v714 = vunpack.c.h.b16 %v504
  %v715 = vunpack.c.l.b16 %v505
  %v716 = vunpack.c.h.b16 %v505
  %v717 = vunpack.c.l.b16 %v506
  %v718 = vunpack.c.h.b16 %v506
  %v719 = vunpack.c.l.b16 %v507
  %v720 = vunpack.c.h.b16 %v507
  %v721 = vunpack.c.l.b16 %v508
  %v722 = vunpack.c.h.b16 %v508
  %v723 = vunpack.c.l.b16 %v509
  %v724 = vunpack.c.h.b16 %v509
  %v725 = vunpack.c.l.b16 %v510
  %v726 = vunpack.c.h.b16 %v510
  %v727 = vunpack.c.l.b16 %v511
  %v728 = vunpack.c.h.b16 %v511
  %v729 = vunpack.c.l.b16 %v512
  %v730 = vunpack.c.h.b16 %v512
  %v731 = vunpack.c.l.b16 %v513
  %v732 = vunpack.c.h.b16 %v513
  %v733 = vunpack.c.l.b16 %v514
  %v734 = vunpack.c.h.b16 %v514
  %v735 = vunpack.c.l.b16 %v515
  %v736 = vunpack.c.h.b16 %v515
  %v737 = vunpack.c.l.b16 %v516
  %v738 = vunpack.c.h.b16 %v516
  %v739 = vunpack.c.l.b16 %v517
  %v740 = vunpack.c.h.b16 %v517
  %v741 = vunpack.c.l.b16 %v518
  %v742 = vunpack.c.h.b16 %v518
  %v743 = vunpack.c.l.b16 %v519
  %v744 = vunpack.c.h.b16 %v519
  %v745 = vunpack.c.l.b16 %v520
  %v746 = vunpack.c.h.b16 %v520
  %v747 = vunpack.c.l.b16 %v521
  %v748 = vunpack.c.h.b16 %v521
  %v749 = vpack.c.b16 %v659, %v653
  %v750 = vpack.c.b16 %v660, %v654
  %v751 = vpack.c.b16 %v661, %v655
  %v752 = vpack.c.b16 %v662, %v656
  %v753 = vpack.c.b16 %v663, %v657
  %v754 = vpack.c.b16 %v664, %v658
  %v755 = vpack.c.b16 %v671, %v665
  %v756 = vpack.c.b16 %v672, %v666
  %v757 = vpack.c.b16 %v673, %v667
  %v758 = vpack.c.b16 %v674, %v668
  %v759 = vpack.c.b16 %v675, %v669
  %v760 = vpack.c.b16 %v676, %v670
  %v761 = vpack.c.b16 %v683, %v677
  %v762 = vpack.c.b16 %v684, %v678
  %v763 = vpack.c.b16 %v685, %v679
  %v764 = vpack.c.b16 %v686, %v680
  %v765 = vpack.c.b16 %v687, %v681
  %v766 = vpack.c.b16 %v688, %v682
  %v767 = vpack.c.b16 %v695, %v689
  %v768 = vpack.c.b16 %v696, %v690
  %v769 = vpack.c.b16 %v697, %v691
  %v770 = vpack.c.b16 %v698, %v692
  %v771 = vpack.c.b16 %v699, %v693
  %v772 = vpack.c.b16 %v700, %v694
  %v773 = vpack.c.b16 %v707, %v701
  %v774 = vpack.c.b16 %v708, %v702
  %v775 = vpack.c.b16 %v709, %v703
  %v776 = vpack.c.b16 %v710, %v704
  %v777 = vpack.c.b16 %v711, %v705
  %v778 = vpack.c.b16 %v712, %v706
  %v779 = vpack.c.b16 %v719, %v713
  %v780 = vpack.c.b16 %v720, %v714
  %v781 = vpack.c.b16 %v721, %v715
  %v782 = vpack.c.b16 %v722, %v716
  %v783 = vpack.c.b16 %v723, %v717
  %v784 = vpack.c.b16 %v724, %v718
  %v785 = vpack.c.b16 %v731, %v725
  %v786 = vpack.c.b16 %v732, %v726
  %v787 = vpack.c.b16 %v733, %v727
  %v788 = vpack.c.b16 %v734, %v728
  %v789 = vpack.c.b16 %v735, %v729
  %v790 = vpack.c.b16 %v736, %v730
  %v791 = vpack.c.b16 %v743, %v737
  %v792 = vpack.c.b16 %v744, %v738
  %v793 = vpack.c.b16 %v745, %v739
  %v794 = vpack.c.b16 %v746, %v740
  %v795 = vpack.c.b16 %v747, %v741
  %v796 = vpack.c.b16 %v748, %v742
  %845 = vmatprep.subr.bf16.mxu0 %v792
  %846 = vmatpush1.bf16.msra.mxu0 %v791
  %847 = vmatprep.subr.bf16.mxu0 %v786
  %848 = vmatpush1.bf16.msra.mxu0 %v785
  %849 = vmatprep.subr.bf16.mxu0 %v780
  %850 = vmatpush1.bf16.msra.mxu0 %v779
  %851 = vmatprep.subr.bf16.mxu0 %v774
  %852 = vmatpush1.bf16.msra.mxu0 %v773
  %853 = vmatprep.subr.bf16.mxu0 %v768
  %854 = vmatpush1.bf16.msra.mxu0 %v767
  %855 = vmatprep.subr.bf16.mxu0 %v762
  %856 = vmatpush1.bf16.msra.mxu0 %v761
  %857 = vmatprep.subr.bf16.mxu0 %v756
  %858 = vmatpush1.bf16.msra.mxu0 %v755
  %859 = vmatprep.subr.bf16.mxu0 %v750
  %860 = vmatpush1.bf16.msra.mxu0 %v749
  %861 = vmatprep.subr.bf16.mxu0 0
  %862 = vmatpush2.bf16.msra.mxu0 0
  %863 = vmatprep.subr.bf16.mxu0 0
  %864 = vmatpush2.bf16.msra.mxu0 0
  %865 = vmatprep.subr.bf16.mxu0 0
  %866 = vmatpush2.bf16.msra.mxu0 0
  %867 = vmatprep.subr.bf16.mxu0 0
  %868 = vmatpush2.bf16.msra.mxu0 0
  %869 = vmatprep.subr.bf16.mxu0 0
  %870 = vmatpush2.bf16.msra.mxu0 0
  %871 = vmatprep.subr.bf16.mxu0 0
  %872 = vmatpush2.bf16.msra.mxu0 0
  %873 = vmatprep.subr.bf16.mxu0 0
  %874 = vmatpush2.bf16.msra.mxu0 0
  %875 = vmatprep.subr.bf16.mxu0 0
  %876 = vmatpush2.bf16.msra.mxu0 0
  %877 = vmatprep.mubr.bf16.mxu0 0
  %878 = vmatmul.mubr.bf16.gmra.mxu0 %v604
  %v879 = vpop.f32.mrf.mxu0
  %v880 = vadd.f32 0.0, %v879
  %v881 = vpop.f32.mrf.mxu0
  %v882 = vadd.f32 0.0, %v881
  %v883 = vpop.f32.mrf.mxu0
  %v884 = vadd.f32 0.0, %v883
  %v885 = vpop.f32.mrf.mxu0
  %v886 = vadd.f32 0.0, %v885
  %887 = vdwg.mxu0
  %888 = vmatprep.subr.bf16.mxu0 %v794
  %889 = vmatpush1.bf16.msra.mxu0 %v793
  %890 = vmatprep.subr.bf16.mxu0 %v788
  %891 = vmatpush1.bf16.msra.mxu0 %v787
  %892 = vmatprep.subr.bf16.mxu0 %v782
  %893 = vmatpush1.bf16.msra.mxu0 %v781
  %894 = vmatprep.subr.bf16.mxu0 %v776
  %895 = vmatpush1.bf16.msra.mxu0 %v775
  %896 = vmatprep.subr.bf16.mxu0 %v770
  %897 = vmatpush1.bf16.msra.mxu0 %v769
  %898 = vmatprep.subr.bf16.mxu0 %v764
  %899 = vmatpush1.bf16.msra.mxu0 %v763
  %900 = vmatprep.subr.bf16.mxu0 %v758
  %901 = vmatpush1.bf16.msra.mxu0 %v757
  %902 = vmatprep.subr.bf16.mxu0 %v752
  %903 = vmatpush1.bf16.msra.mxu0 %v751
  %904 = vmatprep.subr.bf16.mxu0 0
  %905 = vmatpush2.bf16.msra.mxu0 0
  %906 = vmatprep.subr.bf16.mxu0 0
  %907 = vmatpush2.bf16.msra.mxu0 0
  %908 = vmatprep.subr.bf16.mxu0 0
  %909 = vmatpush2.bf16.msra.mxu0 0
  %910 = vmatprep.subr.bf16.mxu0 0
  %911 = vmatpush2.bf16.msra.mxu0 0
  %912 = vmatprep.subr.bf16.mxu0 0
  %913 = vmatpush2.bf16.msra.mxu0 0
  %914 = vmatprep.subr.bf16.mxu0 0
  %915 = vmatpush2.bf16.msra.mxu0 0
  %916 = vmatprep.subr.bf16.mxu0 0
  %917 = vmatpush2.bf16.msra.mxu0 0
  %918 = vmatprep.subr.bf16.mxu0 0
  %919 = vmatpush2.bf16.msra.mxu0 0
  %920 = vmatprep.mubr.bf16.mxu0 0
  %921 = vmatmul.mubr.bf16.gmra.mxu0 %v604
  %v922 = vpop.f32.mrf.mxu0
  %v923 = vadd.f32 0.0, %v922
  %v924 = vpop.f32.mrf.mxu0
  %v925 = vadd.f32 0.0, %v924
  %v926 = vpop.f32.mrf.mxu0
  %v927 = vadd.f32 0.0, %v926
  %v928 = vpop.f32.mrf.mxu0
  %v929 = vadd.f32 0.0, %v928
  %930 = vdwg.mxu0
  %931 = vmatprep.subr.bf16.mxu0 %v796
  %932 = vmatpush1.bf16.msra.mxu0 %v795
  %933 = vmatprep.subr.bf16.mxu0 %v790
  %934 = vmatpush1.bf16.msra.mxu0 %v789
  %935 = vmatprep.subr.bf16.mxu0 %v784
  %936 = vmatpush1.bf16.msra.mxu0 %v783
  %937 = vmatprep.subr.bf16.mxu0 %v778
  %938 = vmatpush1.bf16.msra.mxu0 %v777
  %939 = vmatprep.subr.bf16.mxu0 %v772
  %940 = vmatpush1.bf16.msra.mxu0 %v771
  %941 = vmatprep.subr.bf16.mxu0 %v766
  %942 = vmatpush1.bf16.msra.mxu0 %v765
  %943 = vmatprep.subr.bf16.mxu0 %v760
  %944 = vmatpush1.bf16.msra.mxu0 %v759
  %945 = vmatprep.subr.bf16.mxu0 %v754
  %946 = vmatpush1.bf16.msra.mxu0 %v753
  %947 = vmatprep.subr.bf16.mxu0 0
  %948 = vmatpush2.bf16.msra.mxu0 0
  %949 = vmatprep.subr.bf16.mxu0 0
  %950 = vmatpush2.bf16.msra.mxu0 0
  %951 = vmatprep.subr.bf16.mxu0 0
  %952 = vmatpush2.bf16.msra.mxu0 0
  %953 = vmatprep.subr.bf16.mxu0 0
  %954 = vmatpush2.bf16.msra.mxu0 0
  %955 = vmatprep.subr.bf16.mxu0 0
  %956 = vmatpush2.bf16.msra.mxu0 0
  %957 = vmatprep.subr.bf16.mxu0 0
  %958 = vmatpush2.bf16.msra.mxu0 0
  %959 = vmatprep.subr.bf16.mxu0 0
  %960 = vmatpush2.bf16.msra.mxu0 0
  %961 = vmatprep.subr.bf16.mxu0 0
  %962 = vmatpush2.bf16.msra.mxu0 0
  %963 = vmatprep.mubr.bf16.mxu0 0
  %964 = vmatmul.mubr.bf16.gmra.mxu0 %v604
  %v965 = vpop.f32.mrf.mxu0
  %v966 = vadd.f32 0.0, %v965
  %v967 = vpop.f32.mrf.mxu0
  %v968 = vadd.f32 0.0, %v967
  %v969 = vpop.f32.mrf.mxu0
  %v970 = vadd.f32 0.0, %v969
  %v971 = vpop.f32.mrf.mxu0
  %v972 = vadd.f32 0.0, %v971
  %973 = vdwg.mxu0
  %v975 = vlaneseq
  %v976 = vshrl.u32 %v975, 7
  %v977 = vsub.s32 0, %v976
  %v978 = vrot.slane %v555, %v977
  %v979 = vlaneseq
  %v980 = vshrl.u32 %v979, 7
  %v981 = vsub.s32 1, %v980
  %v982 = vrot.slane %v555, %v981
  %v985 = vadd.f32 %v880, %v978
  %v986 = vadd.f32 %v882, %v982
  %v987 = vadd.f32 %v884, %v978
  %v988 = vadd.f32 %v886, %v982
  %v989 = vxor.u32 %v985, 2147483648
  %v990 = vxor.u32 %v986, 2147483648
  %v991 = vxor.u32 %v987, 2147483648
  %v992 = vxor.u32 %v988, 2147483648
  %v993 = vmul.f32 %v989, 1.442695
  %v994 = vpow.pop %v993
  %v995 = vmul.f32 %v990, 1.442695
  %v996 = vpow.pop %v995
  %v997 = vmul.f32 %v991, 1.442695
  %v998 = vpow.pop %v997
  %v999 = vmul.f32 %v992, 1.442695
  %v1000 = vpow.pop %v999
  %v1001 = vadd.f32 %v994, 1.0
  %v1002 = vadd.f32 %v996, 1.0
  %v1003 = vadd.f32 %v998, 1.0
  %v1004 = vadd.f32 %v1000, 1.0
  %v1005 = vrcp.pop %v1001
  %v1006 = vmul.f32 1.0, %v1005
  %v1007 = vrcp.pop %v1002
  %v1008 = vmul.f32 1.0, %v1007
  %v1009 = vrcp.pop %v1003
  %v1010 = vmul.f32 1.0, %v1009
  %v1011 = vrcp.pop %v1004
  %v1012 = vmul.f32 1.0, %v1011
  %v1014 = vlaneseq
  %v1015 = vshrl.u32 %v1014, 7
  %v1016 = vsub.s32 0, %v1015
  %v1017 = vrot.slane %v556, %v1016
  %v1019 = vadd.f32 %v923, %v1017
  %v1020 = vadd.f32 %v927, %v1017
  %v1022 = vlaneseq
  %v1023 = vshrl.u32 %v1022, 7
  %v1024 = vsub.s32 0, %v1023
  %v1025 = vrot.slane %v557, %v1024
  %v1027 = vmul.f32 %v1006, %v1025
  %v1028 = vmul.f32 %v1010, %v1025
  %v1029 = vadd.f32 %v1019, %v1027
  %v1030 = vadd.f32 %v1020, %v1028
  %v1031 = vtanh.pop %v1029
  %v1032 = vtanh.pop %v1030
  %v1033 = vsub.f32 1.0, %v1008
  %v1034 = vsub.f32 1.0, %v1012
  %v1035 = vmul.f32 %v1033, %v1031
  %v1036 = vmul.f32 %v1034, %v1032
  %v1037 = vld [vmem:[#allocation2 + $0x30] sm:$0xff]
  %v1038 = vld [vmem:[#allocation2 + $0x38] sm:$0xff]
  %v1039 = vld [vmem:[#allocation2 + $0x40] sm:$0xff]
  %v1040 = vld [vmem:[#allocation2 + $0x48] sm:$0xff]
  %v1041 = vld [vmem:[#allocation2 + $0x50] sm:$0xff]
  %v1042 = vld [vmem:[#allocation2 + $0x58] sm:$0xff]
  %v1043 = vadd.f32 %v1037, %v925
  %v1044 = vadd.f32 %v1038, %v966
  %v1045 = vadd.f32 %v1040, %v929
  %v1046 = vadd.f32 %v1041, %v970
  %v1047 = vxor.u32 %v1043, 2147483648
  %v1048 = vxor.u32 %v1044, 2147483648
  %v1049 = vxor.u32 %v1045, 2147483648
  %v1050 = vxor.u32 %v1046, 2147483648
  %v1051 = vmul.f32 %v1047, 1.442695
  %v1052 = vpow.pop %v1051
  %v1053 = vmul.f32 %v1048, 1.442695
  %v1054 = vpow.pop %v1053
  %v1055 = vmul.f32 %v1049, 1.442695
  %v1056 = vpow.pop %v1055
  %v1057 = vmul.f32 %v1050, 1.442695
  %v1058 = vpow.pop %v1057
  %v1059 = vadd.f32 %v1052, 1.0
  %v1060 = vadd.f32 %v1054, 1.0
  %v1061 = vadd.f32 %v1056, 1.0
  %v1062 = vadd.f32 %v1058, 1.0
  %v1063 = vrcp.pop %v1059
  %v1064 = vmul.f32 1.0, %v1063
  %v1065 = vrcp.pop %v1060
  %v1066 = vmul.f32 1.0, %v1065
  %v1067 = vrcp.pop %v1061
  %v1068 = vmul.f32 1.0, %v1067
  %v1069 = vrcp.pop %v1062
  %v1070 = vmul.f32 1.0, %v1069
  %v1071 = vadd.f32 %v968, %v592
  %v1072 = vadd.f32 %v972, %v592
  %v1073 = vmul.f32 %v1064, %v1071
  %v1074 = vmul.f32 %v1068, %v1072
  %v1075 = vadd.f32 %v1039, %v1073
  %v1076 = vadd.f32 %v1042, %v1074
  %v1077 = vtanh.pop %v1075
  %v1078 = vtanh.pop %v1076
  %v1079 = vsub.f32 1.0, %v1066
  %v1080 = vsub.f32 1.0, %v1070
  %v1081 = vmul.f32 %v1079, %v1077
  %v1082 = vmul.f32 %v1080, %v1078
  %v1083 = vmul.f32 %v1066, %v602
  %v1084 = vmul.f32 %v1070, %v603
  %v1085 = vadd.f32 %v1081, %v1083
  %v1086 = vadd.f32 %v1082, %v1084
  %v1087 = vpack.c.bf16 %v1086, %v1085
  %1088 = vmatprep.subr.bf16.mxu0 %v792
  %1089 = vmatpush1.bf16.msra.mxu0 %v791
  %1090 = vmatprep.subr.bf16.mxu0 %v786
  %1091 = vmatpush1.bf16.msra.mxu0 %v785
  %1092 = vmatprep.subr.bf16.mxu0 %v780
  %1093 = vmatpush1.bf16.msra.mxu0 %v779
  %1094 = vmatprep.subr.bf16.mxu0 %v774
  %1095 = vmatpush1.bf16.msra.mxu0 %v773
  %1096 = vmatprep.subr.bf16.mxu0 %v768
  %1097 = vmatpush1.bf16.msra.mxu0 %v767
  %1098 = vmatprep.subr.bf16.mxu0 %v762
  %1099 = vmatpush1.bf16.msra.mxu0 %v761
  %1100 = vmatprep.subr.bf16.mxu0 %v756
  %1101 = vmatpush1.bf16.msra.mxu0 %v755
  %1102 = vmatprep.subr.bf16.mxu0 %v750
  %1103 = vmatpush1.bf16.msra.mxu0 %v749
  %1104 = vmatprep.subr.bf16.mxu0 0
  %1105 = vmatpush2.bf16.msra.mxu0 0
  %1106 = vmatprep.subr.bf16.mxu0 0
  %1107 = vmatpush2.bf16.msra.mxu0 0
  %1108 = vmatprep.subr.bf16.mxu0 0
  %1109 = vmatpush2.bf16.msra.mxu0 0
  %1110 = vmatprep.subr.bf16.mxu0 0
  %1111 = vmatpush2.bf16.msra.mxu0 0
  %1112 = vmatprep.subr.bf16.mxu0 0
  %1113 = vmatpush2.bf16.msra.mxu0 0
  %1114 = vmatprep.subr.bf16.mxu0 0
  %1115 = vmatpush2.bf16.msra.mxu0 0
  %1116 = vmatprep.subr.bf16.mxu0 0
  %1117 = vmatpush2.bf16.msra.mxu0 0
  %1118 = vmatprep.subr.bf16.mxu0 0
  %1119 = vmatpush2.bf16.msra.mxu0 0
  %1120 = vmatprep.mubr.bf16.mxu0 0
  %1121 = vmatmul.mubr.bf16.gmra.mxu0 %v1087
  %v1122 = vpop.f32.mrf.mxu0
  %v1123 = vadd.f32 0.0, %v1122
  %v1124 = vpop.f32.mrf.mxu0
  %v1125 = vadd.f32 0.0, %v1124
  %v1126 = vpop.f32.mrf.mxu0
  %v1127 = vadd.f32 0.0, %v1126
  %v1128 = vpop.f32.mrf.mxu0
  %v1129 = vadd.f32 0.0, %v1128
  %1130 = vdwg.mxu0
  %1131 = vmatprep.subr.bf16.mxu0 %v794
  %1132 = vmatpush1.bf16.msra.mxu0 %v793
  %1133 = vmatprep.subr.bf16.mxu0 %v788
  %1134 = vmatpush1.bf16.msra.mxu0 %v787
  %1135 = vmatprep.subr.bf16.mxu0 %v782
  %1136 = vmatpush1.bf16.msra.mxu0 %v781
  %1137 = vmatprep.subr.bf16.mxu0 %v776
  %1138 = vmatpush1.bf16.msra.mxu0 %v775
  %1139 = vmatprep.subr.bf16.mxu0 %v770
  %1140 = vmatpush1.bf16.msra.mxu0 %v769
  %1141 = vmatprep.subr.bf16.mxu0 %v764
  %1142 = vmatpush1.bf16.msra.mxu0 %v763
  %1143 = vmatprep.subr.bf16.mxu0 %v758
  %1144 = vmatpush1.bf16.msra.mxu0 %v757
  %1145 = vmatprep.subr.bf16.mxu0 %v752
  %1146 = vmatpush1.bf16.msra.mxu0 %v751
  %1147 = vmatprep.subr.bf16.mxu0 0
  %1148 = vmatpush2.bf16.msra.mxu0 0
  %1149 = vmatprep.subr.bf16.mxu0 0
  %1150 = vmatpush2.bf16.msra.mxu0 0
  %1151 = vmatprep.subr.bf16.mxu0 0
  %1152 = vmatpush2.bf16.msra.mxu0 0
  %1153 = vmatprep.subr.bf16.mxu0 0
  %1154 = vmatpush2.bf16.msra.mxu0 0
  %1155 = vmatprep.subr.bf16.mxu0 0
  %1156 = vmatpush2.bf16.msra.mxu0 0
  %1157 = vmatprep.subr.bf16.mxu0 0
  %1158 = vmatpush2.bf16.msra.mxu0 0
  %1159 = vmatprep.subr.bf16.mxu0 0
  %1160 = vmatpush2.bf16.msra.mxu0 0
  %1161 = vmatprep.subr.bf16.mxu0 0
  %1162 = vmatpush2.bf16.msra.mxu0 0
  %1163 = vmatprep.mubr.bf16.mxu0 0
  %1164 = vmatmul.mubr.bf16.gmra.mxu0 %v1087
  %v1165 = vpop.f32.mrf.mxu0
  %v1166 = vadd.f32 0.0, %v1165
  %v1167 = vpop.f32.mrf.mxu0
  %v1168 = vadd.f32 0.0, %v1167
  %v1169 = vpop.f32.mrf.mxu0
  %v1170 = vadd.f32 0.0, %v1169
  %v1171 = vpop.f32.mrf.mxu0
  %v1172 = vadd.f32 0.0, %v1171
  %1173 = vdwg.mxu0
  %1174 = vmatprep.subr.bf16.mxu0 %v796
  %1175 = vmatpush1.bf16.msra.mxu0 %v795
  %1176 = vmatprep.subr.bf16.mxu0 %v790
  %1177 = vmatpush1.bf16.msra.mxu0 %v789
  %1178 = vmatprep.subr.bf16.mxu0 %v784
  %1179 = vmatpush1.bf16.msra.mxu0 %v783
  %1180 = vmatprep.subr.bf16.mxu0 %v778
  %1181 = vmatpush1.bf16.msra.mxu0 %v777
  %1182 = vmatprep.subr.bf16.mxu0 %v772
  %1183 = vmatpush1.bf16.msra.mxu0 %v771
  %1184 = vmatprep.subr.bf16.mxu0 %v766
  %1185 = vmatpush1.bf16.msra.mxu0 %v765
  %1186 = vmatprep.subr.bf16.mxu0 %v760
  %1187 = vmatpush1.bf16.msra.mxu0 %v759
  %1188 = vmatprep.subr.bf16.mxu0 %v754
  %1189 = vmatpush1.bf16.msra.mxu0 %v753
  %1190 = vmatprep.subr.bf16.mxu0 0
  %1191 = vmatpush2.bf16.msra.mxu0 0
  %1192 = vmatprep.subr.bf16.mxu0 0
  %1193 = vmatpush2.bf16.msra.mxu0 0
  %1194 = vmatprep.subr.bf16.mxu0 0
  %1195 = vmatpush2.bf16.msra.mxu0 0
  %1196 = vmatprep.subr.bf16.mxu0 0
  %1197 = vmatpush2.bf16.msra.mxu0 0
  %1198 = vmatprep.subr.bf16.mxu0 0
  %1199 = vmatpush2.bf16.msra.mxu0 0
  %1200 = vmatprep.subr.bf16.mxu0 0
  %1201 = vmatpush2.bf16.msra.mxu0 0
  %1202 = vmatprep.subr.bf16.mxu0 0
  %1203 = vmatpush2.bf16.msra.mxu0 0
  %1204 = vmatprep.subr.bf16.mxu0 0
  %1205 = vmatpush2.bf16.msra.mxu0 0
  %1206 = vmatprep.mubr.bf16.mxu0 0
  %1207 = vmatmul.mubr.bf16.gmra.mxu0 %v1087
  %v1208 = vpop.f32.mrf.mxu0
  %v1209 = vadd.f32 0.0, %v1208
  %v1210 = vpop.f32.mrf.mxu0
  %v1211 = vadd.f32 0.0, %v1210
  %v1212 = vpop.f32.mrf.mxu0
  %v1213 = vadd.f32 0.0, %v1212
  %v1214 = vpop.f32.mrf.mxu0
  %v1215 = vadd.f32 0.0, %v1214
  %1216 = vdwg.mxu0
  %v1217 = vpack.c.bf16 %v1036, %v1035
  %v1250 = vunpack.c.l.b16 %v522
  %v1251 = vunpack.c.h.b16 %v522
  %v1252 = vunpack.c.l.b16 %v523
  %v1253 = vunpack.c.l.b16 %v524
  %v1254 = vunpack.c.h.b16 %v524
  %v1255 = vunpack.c.l.b16 %v525
  %v1256 = vunpack.c.l.b16 %v526
  %v1257 = vunpack.c.h.b16 %v526
  %v1258 = vunpack.c.l.b16 %v527
  %v1259 = vunpack.c.l.b16 %v528
  %v1260 = vunpack.c.h.b16 %v528
  %v1261 = vunpack.c.l.b16 %v529
  %v1262 = vunpack.c.l.b16 %v530
  %v1263 = vunpack.c.h.b16 %v530
  %v1264 = vunpack.c.l.b16 %v531
  %v1265 = vunpack.c.l.b16 %v532
  %v1266 = vunpack.c.h.b16 %v532
  %v1267 = vunpack.c.l.b16 %v533
  %v1268 = vunpack.c.l.b16 %v534
  %v1269 = vunpack.c.h.b16 %v534
  %v1270 = vunpack.c.l.b16 %v535
  %v1271 = vunpack.c.l.b16 %v536
  %v1272 = vunpack.c.h.b16 %v536
  %v1273 = vunpack.c.l.b16 %v537
  %v1274 = vunpack.c.l.b16 %v538
  %v1275 = vunpack.c.h.b16 %v538
  %v1276 = vunpack.c.l.b16 %v539
  %v1277 = vunpack.c.l.b16 %v540
  %v1278 = vunpack.c.h.b16 %v540
  %v1279 = vunpack.c.l.b16 %v541
  %v1280 = vunpack.c.l.b16 %v542
  %v1281 = vunpack.c.h.b16 %v542
  %v1282 = vunpack.c.l.b16 %v543
  %v1283 = vunpack.c.l.b16 %v544
  %v1284 = vunpack.c.h.b16 %v544
  %v1285 = vunpack.c.l.b16 %v545
  %v1286 = vunpack.c.l.b16 %v546
  %v1287 = vunpack.c.h.b16 %v546
  %v1288 = vunpack.c.l.b16 %v547
  %v1289 = vunpack.c.l.b16 %v548
  %v1290 = vunpack.c.h.b16 %v548
  %v1291 = vunpack.c.l.b16 %v549
  %v1292 = vunpack.c.l.b16 %v550
  %v1293 = vunpack.c.h.b16 %v550
  %v1294 = vunpack.c.l.b16 %v551
  %v1295 = vunpack.c.l.b16 %v552
  %v1296 = vunpack.c.h.b16 %v552
  %v1297 = vunpack.c.l.b16 %v553
  %v1298 = vpack.c.b16 %v1253, %v1250
  %v1299 = vpack.c.b16 %v1254, %v1251
  %v1300 = vpack.c.b16 %v1255, %v1252
  %v1301 = vpack.c.b16 %v1259, %v1256
  %v1302 = vpack.c.b16 %v1260, %v1257
  %v1303 = vpack.c.b16 %v1261, %v1258
  %v1304 = vpack.c.b16 %v1265, %v1262
  %v1305 = vpack.c.b16 %v1266, %v1263
  %v1306 = vpack.c.b16 %v1267, %v1264
  %v1307 = vpack.c.b16 %v1271, %v1268
  %v1308 = vpack.c.b16 %v1272, %v1269
  %v1309 = vpack.c.b16 %v1273, %v1270
  %v1310 = vpack.c.b16 %v1277, %v1274
  %v1311 = vpack.c.b16 %v1278, %v1275
  %v1312 = vpack.c.b16 %v1279, %v1276
  %v1313 = vpack.c.b16 %v1283, %v1280
  %v1314 = vpack.c.b16 %v1284, %v1281
  %v1315 = vpack.c.b16 %v1285, %v1282
  %v1316 = vpack.c.b16 %v1289, %v1286
  %v1317 = vpack.c.b16 %v1290, %v1287
  %v1318 = vpack.c.b16 %v1291, %v1288
  %v1319 = vpack.c.b16 %v1295, %v1292
  %v1320 = vpack.c.b16 %v1296, %v1293
  %v1321 = vpack.c.b16 %v1297, %v1294
  %1346 = vmatprep.subr.bf16.mxu0 %v1320
  %1347 = vmatpush1.bf16.msra.mxu0 %v1319
  %1348 = vmatprep.subr.bf16.mxu0 %v1317
  %1349 = vmatpush1.bf16.msra.mxu0 %v1316
  %1350 = vmatprep.subr.bf16.mxu0 %v1314
  %1351 = vmatpush1.bf16.msra.mxu0 %v1313
  %1352 = vmatprep.subr.bf16.mxu0 %v1311
  %1353 = vmatpush1.bf16.msra.mxu0 %v1310
  %1354 = vmatprep.subr.bf16.mxu0 %v1308
  %1355 = vmatpush1.bf16.msra.mxu0 %v1307
  %1356 = vmatprep.subr.bf16.mxu0 %v1305
  %1357 = vmatpush1.bf16.msra.mxu0 %v1304
  %1358 = vmatprep.subr.bf16.mxu0 %v1302
  %1359 = vmatpush1.bf16.msra.mxu0 %v1301
  %1360 = vmatprep.subr.bf16.mxu0 %v1299
  %1361 = vmatpush1.bf16.msra.mxu0 %v1298
  %1362 = vmatprep.subr.bf16.mxu0 0
  %1363 = vmatpush2.bf16.msra.mxu0 0
  %1364 = vmatprep.subr.bf16.mxu0 0
  %1365 = vmatpush2.bf16.msra.mxu0 0
  %1366 = vmatprep.subr.bf16.mxu0 0
  %1367 = vmatpush2.bf16.msra.mxu0 0
  %1368 = vmatprep.subr.bf16.mxu0 0
  %1369 = vmatpush2.bf16.msra.mxu0 0
  %1370 = vmatprep.subr.bf16.mxu0 0
  %1371 = vmatpush2.bf16.msra.mxu0 0
  %1372 = vmatprep.subr.bf16.mxu0 0
  %1373 = vmatpush2.bf16.msra.mxu0 0
  %1374 = vmatprep.subr.bf16.mxu0 0
  %1375 = vmatpush2.bf16.msra.mxu0 0
  %1376 = vmatprep.subr.bf16.mxu0 0
  %1377 = vmatpush2.bf16.msra.mxu0 0
  %1378 = vmatprep.mubr.bf16.mxu0 0
  %1379 = vmatmul.mubr.bf16.gmra.mxu0 %v1217
  %v1380 = vpop.f32.mrf.mxu0
  %v1381 = vadd.f32 0.0, %v1380
  %v1382 = vpop.f32.mrf.mxu0
  %v1383 = vadd.f32 0.0, %v1382
  %v1384 = vpop.f32.mrf.mxu0
  %v1385 = vadd.f32 0.0, %v1384
  %v1386 = vpop.f32.mrf.mxu0
  %v1387 = vadd.f32 0.0, %v1386
  %1388 = vdwg.mxu0
  %1389 = vmatprep.subr.bf16.mxu0 0
  %1390 = vmatpush1.bf16.msra.mxu0 %v1321
  %1391 = vmatprep.subr.bf16.mxu0 0
  %1392 = vmatpush1.bf16.msra.mxu0 %v1318
  %1393 = vmatprep.subr.bf16.mxu0 0
  %1394 = vmatpush1.bf16.msra.mxu0 %v1315
  %1395 = vmatprep.subr.bf16.mxu0 0
  %1396 = vmatpush1.bf16.msra.mxu0 %v1312
  %1397 = vmatprep.subr.bf16.mxu0 0
  %1398 = vmatpush1.bf16.msra.mxu0 %v1309
  %1399 = vmatprep.subr.bf16.mxu0 0
  %1400 = vmatpush1.bf16.msra.mxu0 %v1306
  %1401 = vmatprep.subr.bf16.mxu0 0
  %1402 = vmatpush1.bf16.msra.mxu0 %v1303
  %1403 = vmatprep.subr.bf16.mxu0 0
  %1404 = vmatpush1.bf16.msra.mxu0 %v1300
  %1405 = vmatprep.subr.bf16.mxu0 0
  %1406 = vmatpush2.bf16.msra.mxu0 0
  %1407 = vmatprep.subr.bf16.mxu0 0
  %1408 = vmatpush2.bf16.msra.mxu0 0
  %1409 = vmatprep.subr.bf16.mxu0 0
  %1410 = vmatpush2.bf16.msra.mxu0 0
  %1411 = vmatprep.subr.bf16.mxu0 0
  %1412 = vmatpush2.bf16.msra.mxu0 0
  %1413 = vmatprep.subr.bf16.mxu0 0
  %1414 = vmatpush2.bf16.msra.mxu0 0
  %1415 = vmatprep.subr.bf16.mxu0 0
  %1416 = vmatpush2.bf16.msra.mxu0 0
  %1417 = vmatprep.subr.bf16.mxu0 0
  %1418 = vmatpush2.bf16.msra.mxu0 0
  %1419 = vmatprep.subr.bf16.mxu0 0
  %1420 = vmatpush2.bf16.msra.mxu0 0
  %1421 = vmatprep.mubr.bf16.mxu0 0
  %1422 = vmatmul.mubr.bf16.gmra.mxu0 %v1217
  %v1423 = vpop.f32.mrf.mxu0
  %v1424 = vadd.f32 0.0, %v1423
  %v1425 = vpop.f32.mrf.mxu0
  %v1426 = vpop.f32.mrf.mxu0
  %v1427 = vadd.f32 0.0, %v1426
  %v1428 = vpop.f32.mrf.mxu0
  %1429 = vdwg.mxu0
  %v1430 = vadd.f32 %v1123, %v1381
  %v1431 = vadd.f32 %v1125, %v1383
  %v1432 = vadd.f32 %v1127, %v1385
  %v1433 = vadd.f32 %v1129, %v1387
  %v1434 = vadd.f32 %v1430, %v978
  %v1435 = vadd.f32 %v1431, %v982
  %v1436 = vadd.f32 %v1432, %v978
  %v1437 = vadd.f32 %v1433, %v982
  %v1438 = vxor.u32 %v1434, 2147483648
  %v1439 = vxor.u32 %v1435, 2147483648
  %v1440 = vxor.u32 %v1436, 2147483648
  %v1441 = vxor.u32 %v1437, 2147483648
  %v1442 = vmul.f32 %v1438, 1.442695
  %v1443 = vpow.pop %v1442
  %v1444 = vmul.f32 %v1439, 1.442695
  %v1445 = vpow.pop %v1444
  %v1446 = vmul.f32 %v1440, 1.442695
  %v1447 = vpow.pop %v1446
  %v1448 = vmul.f32 %v1441, 1.442695
  %v1449 = vpow.pop %v1448
  %v1450 = vadd.f32 %v1443, 1.0
  %v1451 = vadd.f32 %v1445, 1.0
  %v1452 = vadd.f32 %v1447, 1.0
  %v1453 = vadd.f32 %v1449, 1.0
  %v1454 = vrcp.pop %v1450
  %v1455 = vmul.f32 1.0, %v1454
  %v1456 = vrcp.pop %v1451
  %v1457 = vmul.f32 1.0, %v1456
  %v1458 = vrcp.pop %v1452
  %v1459 = vmul.f32 1.0, %v1458
  %v1460 = vrcp.pop %v1453
  %v1461 = vmul.f32 1.0, %v1460
  %v1462 = vadd.f32 %v1166, %v1017
  %v1463 = vadd.f32 %v1170, %v1017
  %v1464 = vadd.f32 %v1424, %v1025
  %v1465 = vadd.f32 %v1427, %v1025
  %v1466 = vmul.f32 %v1455, %v1464
  %v1467 = vmul.f32 %v1459, %v1465
  %v1468 = vadd.f32 %v1462, %v1466
  %v1469 = vadd.f32 %v1463, %v1467
  %v1470 = vtanh.pop %v1468
  %v1471 = vtanh.pop %v1469
  %v1472 = vsub.f32 1.0, %v1457
  %v1473 = vsub.f32 1.0, %v1461
  %v1474 = vmul.f32 %v1472, %v1470
  %v1475 = vmul.f32 %v1473, %v1471
  %v1476 = vmul.f32 %v1457, %v1035
  %v1477 = vmul.f32 %v1461, %v1036
  %v1478 = vadd.f32 %v1474, %v1476
  %v1479 = vadd.f32 %v1475, %v1477
  %v1480 = vld [vmem:[#allocation2 + $0x60] sm:$0xff]
  %v1481 = vld [vmem:[#allocation2 + $0x68] sm:$0xff]
  %v1482 = vld [vmem:[#allocation2 + $0x70] sm:$0xff]
  %v1483 = vld [vmem:[#allocation2 + $0x78] sm:$0xff]
  %v1484 = vld [vmem:[#allocation2 + $0x80] sm:$0xff]
  %v1485 = vld [vmem:[#allocation2 + $0x88] sm:$0xff]
  %v1486 = vadd.f32 %v1480, %v1168
  %v1487 = vadd.f32 %v1481, %v1209
  %v1488 = vadd.f32 %v1483, %v1172
  %v1489 = vadd.f32 %v1484, %v1213
  %v1490 = vxor.u32 %v1486, 2147483648
  %v1491 = vxor.u32 %v1487, 2147483648
  %v1492 = vxor.u32 %v1488, 2147483648
  %v1493 = vxor.u32 %v1489, 2147483648
  %v1494 = vmul.f32 %v1490, 1.442695
  %v1495 = vpow.pop %v1494
  %v1496 = vmul.f32 %v1491, 1.442695
  %v1497 = vpow.pop %v1496
  %v1498 = vmul.f32 %v1492, 1.442695
  %v1499 = vpow.pop %v1498
  %v1500 = vmul.f32 %v1493, 1.442695
  %v1501 = vpow.pop %v1500
  %v1502 = vadd.f32 %v1495, 1.0
  %v1503 = vadd.f32 %v1497, 1.0
  %v1504 = vadd.f32 %v1499, 1.0
  %v1505 = vadd.f32 %v1501, 1.0
  %v1506 = vrcp.pop %v1502
  %v1507 = vmul.f32 1.0, %v1506
  %v1508 = vrcp.pop %v1503
  %v1509 = vmul.f32 1.0, %v1508
  %v1510 = vrcp.pop %v1504
  %v1511 = vmul.f32 1.0, %v1510
  %v1512 = vrcp.pop %v1505
  %v1513 = vmul.f32 1.0, %v1512
  %v1514 = vadd.f32 %v1211, %v592
  %v1515 = vadd.f32 %v1215, %v592
  %v1516 = vmul.f32 %v1507, %v1514
  %v1517 = vmul.f32 %v1511, %v1515
  %v1518 = vadd.f32 %v1482, %v1516
  %v1519 = vadd.f32 %v1485, %v1517
  %v1520 = vtanh.pop %v1518
  %v1521 = vtanh.pop %v1519
  %v1522 = vsub.f32 1.0, %v1509
  %v1523 = vsub.f32 1.0, %v1513
  %v1524 = vmul.f32 %v1522, %v1520
  %v1525 = vmul.f32 %v1523, %v1521
  %v1526 = vmul.f32 %v1509, %v1085
  %v1527 = vmul.f32 %v1513, %v1086
  %v1528 = vadd.f32 %v1524, %v1526
  %v1529 = vadd.f32 %v1525, %v1527
  %v1530 = vpack.c.bf16 %v1529, %v1528
  %1531 = vmatprep.subr.bf16.mxu0 %v792
  %1532 = vmatpush1.bf16.msra.mxu0 %v791
  %1533 = vmatprep.subr.bf16.mxu0 %v786
  %1534 = vmatpush1.bf16.msra.mxu0 %v785
  %1535 = vmatprep.subr.bf16.mxu0 %v780
  %1536 = vmatpush1.bf16.msra.mxu0 %v779
  %1537 = vmatprep.subr.bf16.mxu0 %v774
  %1538 = vmatpush1.bf16.msra.mxu0 %v773
  %1539 = vmatprep.subr.bf16.mxu0 %v768
  %1540 = vmatpush1.bf16.msra.mxu0 %v767
  %1541 = vmatprep.subr.bf16.mxu0 %v762
  %1542 = vmatpush1.bf16.msra.mxu0 %v761
  %1543 = vmatprep.subr.bf16.mxu0 %v756
  %1544 = vmatpush1.bf16.msra.mxu0 %v755
  %1545 = vmatprep.subr.bf16.mxu0 %v750
  %1546 = vmatpush1.bf16.msra.mxu0 %v749
  %1547 = vmatprep.subr.bf16.mxu0 0
  %1548 = vmatpush2.bf16.msra.mxu0 0
  %1549 = vmatprep.subr.bf16.mxu0 0
  %1550 = vmatpush2.bf16.msra.mxu0 0
  %1551 = vmatprep.subr.bf16.mxu0 0
  %1552 = vmatpush2.bf16.msra.mxu0 0
  %1553 = vmatprep.subr.bf16.mxu0 0
  %1554 = vmatpush2.bf16.msra.mxu0 0
  %1555 = vmatprep.subr.bf16.mxu0 0
  %1556 = vmatpush2.bf16.msra.mxu0 0
  %1557 = vmatprep.subr.bf16.mxu0 0
  %1558 = vmatpush2.bf16.msra.mxu0 0
  %1559 = vmatprep.subr.bf16.mxu0 0
  %1560 = vmatpush2.bf16.msra.mxu0 0
  %1561 = vmatprep.subr.bf16.mxu0 0
  %1562 = vmatpush2.bf16.msra.mxu0 0
  %1563 = vmatprep.mubr.bf16.mxu0 0
  %1564 = vmatmul.mubr.bf16.gmra.mxu0 %v1530
  %v1565 = vpop.f32.mrf.mxu0
  %v1566 = vadd.f32 0.0, %v1565
  %v1567 = vpop.f32.mrf.mxu0
  %v1568 = vadd.f32 0.0, %v1567
  %v1569 = vpop.f32.mrf.mxu0
  %v1570 = vadd.f32 0.0, %v1569
  %v1571 = vpop.f32.mrf.mxu0
  %v1572 = vadd.f32 0.0, %v1571
  %1573 = vdwg.mxu0
  %1574 = vmatprep.subr.bf16.mxu0 %v794
  %1575 = vmatpush1.bf16.msra.mxu0 %v793
  %1576 = vmatprep.subr.bf16.mxu0 %v788
  %1577 = vmatpush1.bf16.msra.mxu0 %v787
  %1578 = vmatprep.subr.bf16.mxu0 %v782
  %1579 = vmatpush1.bf16.msra.mxu0 %v781
  %1580 = vmatprep.subr.bf16.mxu0 %v776
  %1581 = vmatpush1.bf16.msra.mxu0 %v775
  %1582 = vmatprep.subr.bf16.mxu0 %v770
  %1583 = vmatpush1.bf16.msra.mxu0 %v769
  %1584 = vmatprep.subr.bf16.mxu0 %v764
  %1585 = vmatpush1.bf16.msra.mxu0 %v763
  %1586 = vmatprep.subr.bf16.mxu0 %v758
  %1587 = vmatpush1.bf16.msra.mxu0 %v757
  %1588 = vmatprep.subr.bf16.mxu0 %v752
  %1589 = vmatpush1.bf16.msra.mxu0 %v751
  %1590 = vmatprep.subr.bf16.mxu0 0
  %1591 = vmatpush2.bf16.msra.mxu0 0
  %1592 = vmatprep.subr.bf16.mxu0 0
  %1593 = vmatpush2.bf16.msra.mxu0 0
  %1594 = vmatprep.subr.bf16.mxu0 0
  %1595 = vmatpush2.bf16.msra.mxu0 0
  %1596 = vmatprep.subr.bf16.mxu0 0
  %1597 = vmatpush2.bf16.msra.mxu0 0
  %1598 = vmatprep.subr.bf16.mxu0 0
  %1599 = vmatpush2.bf16.msra.mxu0 0
  %1600 = vmatprep.subr.bf16.mxu0 0
  %1601 = vmatpush2.bf16.msra.mxu0 0
  %1602 = vmatprep.subr.bf16.mxu0 0
  %1603 = vmatpush2.bf16.msra.mxu0 0
  %1604 = vmatprep.subr.bf16.mxu0 0
  %1605 = vmatpush2.bf16.msra.mxu0 0
  %1606 = vmatprep.mubr.bf16.mxu0 0
  %1607 = vmatmul.mubr.bf16.gmra.mxu0 %v1530
  %v1608 = vpop.f32.mrf.mxu0
  %v1609 = vadd.f32 0.0, %v1608
  %v1610 = vpop.f32.mrf.mxu0
  %v1611 = vadd.f32 0.0, %v1610
  %v1612 = vpop.f32.mrf.mxu0
  %v1613 = vadd.f32 0.0, %v1612
  %v1614 = vpop.f32.mrf.mxu0
  %v1615 = vadd.f32 0.0, %v1614
  %1616 = vdwg.mxu0
  %1617 = vmatprep.subr.bf16.mxu0 %v796
  %1618 = vmatpush1.bf16.msra.mxu0 %v795
  %1619 = vmatprep.subr.bf16.mxu0 %v790
  %1620 = vmatpush1.bf16.msra.mxu0 %v789
  %1621 = vmatprep.subr.bf16.mxu0 %v784
  %1622 = vmatpush1.bf16.msra.mxu0 %v783
  %1623 = vmatprep.subr.bf16.mxu0 %v778
  %1624 = vmatpush1.bf16.msra.mxu0 %v777
  %1625 = vmatprep.subr.bf16.mxu0 %v772
  %1626 = vmatpush1.bf16.msra.mxu0 %v771
  %1627 = vmatprep.subr.bf16.mxu0 %v766
  %1628 = vmatpush1.bf16.msra.mxu0 %v765
  %1629 = vmatprep.subr.bf16.mxu0 %v760
  %1630 = vmatpush1.bf16.msra.mxu0 %v759
  %1631 = vmatprep.subr.bf16.mxu0 %v754
  %1632 = vmatpush1.bf16.msra.mxu0 %v753
  %1633 = vmatprep.subr.bf16.mxu0 0
  %1634 = vmatpush2.bf16.msra.mxu0 0
  %1635 = vmatprep.subr.bf16.mxu0 0
  %1636 = vmatpush2.bf16.msra.mxu0 0
  %1637 = vmatprep.subr.bf16.mxu0 0
  %1638 = vmatpush2.bf16.msra.mxu0 0
  %1639 = vmatprep.subr.bf16.mxu0 0
  %1640 = vmatpush2.bf16.msra.mxu0 0
  %1641 = vmatprep.subr.bf16.mxu0 0
  %1642 = vmatpush2.bf16.msra.mxu0 0
  %1643 = vmatprep.subr.bf16.mxu0 0
  %1644 = vmatpush2.bf16.msra.mxu0 0
  %1645 = vmatprep.subr.bf16.mxu0 0
  %1646 = vmatpush2.bf16.msra.mxu0 0
  %1647 = vmatprep.subr.bf16.mxu0 0
  %1648 = vmatpush2.bf16.msra.mxu0 0
  %1649 = vmatprep.mubr.bf16.mxu0 0
  %1650 = vmatmul.mubr.bf16.gmra.mxu0 %v1530
  %v1651 = vpop.f32.mrf.mxu0
  %v1652 = vadd.f32 0.0, %v1651
  %v1653 = vpop.f32.mrf.mxu0
  %v1654 = vadd.f32 0.0, %v1653
  %v1655 = vpop.f32.mrf.mxu0
  %v1656 = vadd.f32 0.0, %v1655
  %v1657 = vpop.f32.mrf.mxu0
  %v1658 = vadd.f32 0.0, %v1657
  %1659 = vdwg.mxu0
  %v1660 = vpack.c.bf16 %v1479, %v1478
  %1661 = vmatprep.subr.bf16.mxu0 %v1320
  %1662 = vmatpush1.bf16.msra.mxu0 %v1319
  %1663 = vmatprep.subr.bf16.mxu0 %v1317
  %1664 = vmatpush1.bf16.msra.mxu0 %v1316
  %1665 = vmatprep.subr.bf16.mxu0 %v1314
  %1666 = vmatpush1.bf16.msra.mxu0 %v1313
  %1667 = vmatprep.subr.bf16.mxu0 %v1311
  %1668 = vmatpush1.bf16.msra.mxu0 %v1310
  %1669 = vmatprep.subr.bf16.mxu0 %v1308
  %1670 = vmatpush1.bf16.msra.mxu0 %v1307
  %1671 = vmatprep.subr.bf16.mxu0 %v1305
  %1672 = vmatpush1.bf16.msra.mxu0 %v1304
  %1673 = vmatprep.subr.bf16.mxu0 %v1302
  %1674 = vmatpush1.bf16.msra.mxu0 %v1301
  %1675 = vmatprep.subr.bf16.mxu0 %v1299
  %1676 = vmatpush1.bf16.msra.mxu0 %v1298
  %1677 = vmatprep.subr.bf16.mxu0 0
  %1678 = vmatpush2.bf16.msra.mxu0 0
  %1679 = vmatprep.subr.bf16.mxu0 0
  %1680 = vmatpush2.bf16.msra.mxu0 0
  %1681 = vmatprep.subr.bf16.mxu0 0
  %1682 = vmatpush2.bf16.msra.mxu0 0
  %1683 = vmatprep.subr.bf16.mxu0 0
  %1684 = vmatpush2.bf16.msra.mxu0 0
  %1685 = vmatprep.subr.bf16.mxu0 0
  %1686 = vmatpush2.bf16.msra.mxu0 0
  %1687 = vmatprep.subr.bf16.mxu0 0
  %1688 = vmatpush2.bf16.msra.mxu0 0
  %1689 = vmatprep.subr.bf16.mxu0 0
  %1690 = vmatpush2.bf16.msra.mxu0 0
  %1691 = vmatprep.subr.bf16.mxu0 0
  %1692 = vmatpush2.bf16.msra.mxu0 0
  %1693 = vmatprep.mubr.bf16.mxu0 0
  %1694 = vmatmul.mubr.bf16.gmra.mxu0 %v1660
  %v1695 = vpop.f32.mrf.mxu0
  %v1696 = vadd.f32 0.0, %v1695
  %v1697 = vpop.f32.mrf.mxu0
  %v1698 = vadd.f32 0.0, %v1697
  %v1699 = vpop.f32.mrf.mxu0
  %v1700 = vadd.f32 0.0, %v1699
  %v1701 = vpop.f32.mrf.mxu0
  %v1702 = vadd.f32 0.0, %v1701
  %1703 = vdwg.mxu0
  %1704 = vmatprep.subr.bf16.mxu0 0
  %1705 = vmatpush1.bf16.msra.mxu0 %v1321
  %1706 = vmatprep.subr.bf16.mxu0 0
  %1707 = vmatpush1.bf16.msra.mxu0 %v1318
  %1708 = vmatprep.subr.bf16.mxu0 0
  %1709 = vmatpush1.bf16.msra.mxu0 %v1315
  %1710 = vmatprep.subr.bf16.mxu0 0
  %1711 = vmatpush1.bf16.msra.mxu0 %v1312
  %1712 = vmatprep.subr.bf16.mxu0 0
  %1713 = vmatpush1.bf16.msra.mxu0 %v1309
  %1714 = vmatprep.subr.bf16.mxu0 0
  %1715 = vmatpush1.bf16.msra.mxu0 %v1306
  %1716 = vmatprep.subr.bf16.mxu0 0
  %1717 = vmatpush1.bf16.msra.mxu0 %v1303
  %1718 = vmatprep.subr.bf16.mxu0 0
  %1719 = vmatpush1.bf16.msra.mxu0 %v1300
  %1720 = vmatprep.subr.bf16.mxu0 0
  %1721 = vmatpush2.bf16.msra.mxu0 0
  %1722 = vmatprep.subr.bf16.mxu0 0
  %1723 = vmatpush2.bf16.msra.mxu0 0
  %1724 = vmatprep.subr.bf16.mxu0 0
  %1725 = vmatpush2.bf16.msra.mxu0 0
  %1726 = vmatprep.subr.bf16.mxu0 0
  %1727 = vmatpush2.bf16.msra.mxu0 0
  %1728 = vmatprep.subr.bf16.mxu0 0
  %1729 = vmatpush2.bf16.msra.mxu0 0
  %1730 = vmatprep.subr.bf16.mxu0 0
  %1731 = vmatpush2.bf16.msra.mxu0 0
  %1732 = vmatprep.subr.bf16.mxu0 0
  %1733 = vmatpush2.bf16.msra.mxu0 0
  %1734 = vmatprep.subr.bf16.mxu0 0
  %1735 = vmatpush2.bf16.msra.mxu0 0
  %1736 = vmatprep.mubr.bf16.mxu0 0
  %1737 = vmatmul.mubr.bf16.gmra.mxu0 %v1660
  %v1738 = vpop.f32.mrf.mxu0
  %v1739 = vadd.f32 0.0, %v1738
  %v1740 = vpop.f32.mrf.mxu0
  %v1741 = vpop.f32.mrf.mxu0
  %v1742 = vadd.f32 0.0, %v1741
  %v1743 = vpop.f32.mrf.mxu0
  %1744 = vdwg.mxu0
  %v1745 = vadd.f32 %v1566, %v1696
  %v1746 = vadd.f32 %v1568, %v1698
  %v1747 = vadd.f32 %v1570, %v1700
  %v1748 = vadd.f32 %v1572, %v1702
  %v1749 = vadd.f32 %v1745, %v978
  %v1750 = vadd.f32 %v1746, %v982
  %v1751 = vadd.f32 %v1747, %v978
  %v1752 = vadd.f32 %v1748, %v982
  %v1753 = vxor.u32 %v1749, 2147483648
  %v1754 = vxor.u32 %v1750, 2147483648
  %v1755 = vxor.u32 %v1751, 2147483648
  %v1756 = vxor.u32 %v1752, 2147483648
  %v1757 = vmul.f32 %v1753, 1.442695
  %v1758 = vpow.pop %v1757
  %v1759 = vmul.f32 %v1754, 1.442695
  %v1760 = vpow.pop %v1759
  %v1761 = vmul.f32 %v1755, 1.442695
  %v1762 = vpow.pop %v1761
  %v1763 = vmul.f32 %v1756, 1.442695
  %v1764 = vpow.pop %v1763
  %v1765 = vadd.f32 %v1758, 1.0
  %v1766 = vadd.f32 %v1760, 1.0
  %v1767 = vadd.f32 %v1762, 1.0
  %v1768 = vadd.f32 %v1764, 1.0
  %v1769 = vrcp.pop %v1765
  %v1770 = vmul.f32 1.0, %v1769
  %v1771 = vrcp.pop %v1766
  %v1772 = vmul.f32 1.0, %v1771
  %v1773 = vrcp.pop %v1767
  %v1774 = vmul.f32 1.0, %v1773
  %v1775 = vrcp.pop %v1768
  %v1776 = vmul.f32 1.0, %v1775
  %v1777 = vadd.f32 %v1609, %v1017
  %v1778 = vadd.f32 %v1613, %v1017
  %v1779 = vadd.f32 %v1739, %v1025
  %v1780 = vadd.f32 %v1742, %v1025
  %v1781 = vmul.f32 %v1770, %v1779
  %v1782 = vmul.f32 %v1774, %v1780
  %v1783 = vadd.f32 %v1777, %v1781
  %v1784 = vadd.f32 %v1778, %v1782
  %v1785 = vtanh.pop %v1783
  %v1786 = vtanh.pop %v1784
  %v1787 = vsub.f32 1.0, %v1772
  %v1788 = vsub.f32 1.0, %v1776
  %v1789 = vmul.f32 %v1787, %v1785
  %v1790 = vmul.f32 %v1788, %v1786
  %v1791 = vmul.f32 %v1772, %v1478
  %v1792 = vmul.f32 %v1776, %v1479
  %v1793 = vadd.f32 %v1789, %v1791
  %v1794 = vadd.f32 %v1790, %v1792
  %v1795 = vld [vmem:[#allocation2 + $0x90] sm:$0xff]
  %v1796 = vld [vmem:[#allocation2 + $0x98] sm:$0xff]
  %v1797 = vld [vmem:[#allocation2 + $0xa0] sm:$0xff]
  %v1798 = vld [vmem:[#allocation2 + $0xa8] sm:$0xff]
  %v1799 = vld [vmem:[#allocation2 + $0xb0] sm:$0xff]
  %v1800 = vld [vmem:[#allocation2 + $0xb8] sm:$0xff]
  %v1801 = vadd.f32 %v1795, %v1611
  %v1802 = vadd.f32 %v1796, %v1652
  %v1803 = vadd.f32 %v1798, %v1615
  %v1804 = vadd.f32 %v1799, %v1656
  %v1805 = vxor.u32 %v1801, 2147483648
  %v1806 = vxor.u32 %v1802, 2147483648
  %v1807 = vxor.u32 %v1803, 2147483648
  %v1808 = vxor.u32 %v1804, 2147483648
  %v1809 = vmul.f32 %v1805, 1.442695
  %v1810 = vpow.pop %v1809
  %v1811 = vmul.f32 %v1806, 1.442695
  %v1812 = vpow.pop %v1811
  %v1813 = vmul.f32 %v1807, 1.442695
  %v1814 = vpow.pop %v1813
  %v1815 = vmul.f32 %v1808, 1.442695
  %v1816 = vpow.pop %v1815
  %v1817 = vadd.f32 %v1810, 1.0
  %v1818 = vadd.f32 %v1812, 1.0
  %v1819 = vadd.f32 %v1814, 1.0
  %v1820 = vadd.f32 %v1816, 1.0
  %v1821 = vrcp.pop %v1817
  %v1822 = vmul.f32 1.0, %v1821
  %v1823 = vrcp.pop %v1818
  %v1824 = vmul.f32 1.0, %v1823
  %v1825 = vrcp.pop %v1819
  %v1826 = vmul.f32 1.0, %v1825
  %v1827 = vrcp.pop %v1820
  %v1828 = vmul.f32 1.0, %v1827
  %v1829 = vadd.f32 %v1654, %v592
  %v1830 = vadd.f32 %v1658, %v592
  %v1831 = vmul.f32 %v1822, %v1829
  %v1832 = vmul.f32 %v1826, %v1830
  %v1833 = vadd.f32 %v1797, %v1831
  %v1834 = vadd.f32 %v1800, %v1832
  %v1835 = vtanh.pop %v1833
  %v1836 = vtanh.pop %v1834
  %v1837 = vsub.f32 1.0, %v1824
  %v1838 = vsub.f32 1.0, %v1828
  %v1839 = vmul.f32 %v1837, %v1835
  %v1840 = vmul.f32 %v1838, %v1836
  %v1841 = vmul.f32 %v1824, %v1528
  %v1842 = vmul.f32 %v1828, %v1529
  %v1843 = vadd.f32 %v1839, %v1841
  %v1844 = vadd.f32 %v1840, %v1842
  %v1845 = vpack.c.bf16 %v1844, %v1843
  %1846 = vmatprep.subr.bf16.mxu0 %v792
  %1847 = vmatpush1.bf16.msra.mxu0 %v791
  %1848 = vmatprep.subr.bf16.mxu0 %v786
  %1849 = vmatpush1.bf16.msra.mxu0 %v785
  %1850 = vmatprep.subr.bf16.mxu0 %v780
  %1851 = vmatpush1.bf16.msra.mxu0 %v779
  %1852 = vmatprep.subr.bf16.mxu0 %v774
  %1853 = vmatpush1.bf16.msra.mxu0 %v773
  %1854 = vmatprep.subr.bf16.mxu0 %v768
  %1855 = vmatpush1.bf16.msra.mxu0 %v767
  %1856 = vmatprep.subr.bf16.mxu0 %v762
  %1857 = vmatpush1.bf16.msra.mxu0 %v761
  %1858 = vmatprep.subr.bf16.mxu0 %v756
  %1859 = vmatpush1.bf16.msra.mxu0 %v755
  %1860 = vmatprep.subr.bf16.mxu0 %v750
  %1861 = vmatpush1.bf16.msra.mxu0 %v749
  %1862 = vmatprep.subr.bf16.mxu0 0
  %1863 = vmatpush2.bf16.msra.mxu0 0
  %1864 = vmatprep.subr.bf16.mxu0 0
  %1865 = vmatpush2.bf16.msra.mxu0 0
  %1866 = vmatprep.subr.bf16.mxu0 0
  %1867 = vmatpush2.bf16.msra.mxu0 0
  %1868 = vmatprep.subr.bf16.mxu0 0
  %1869 = vmatpush2.bf16.msra.mxu0 0
  %1870 = vmatprep.subr.bf16.mxu0 0
  %1871 = vmatpush2.bf16.msra.mxu0 0
  %1872 = vmatprep.subr.bf16.mxu0 0
  %1873 = vmatpush2.bf16.msra.mxu0 0
  %1874 = vmatprep.subr.bf16.mxu0 0
  %1875 = vmatpush2.bf16.msra.mxu0 0
  %1876 = vmatprep.subr.bf16.mxu0 0
  %1877 = vmatpush2.bf16.msra.mxu0 0
  %1878 = vmatprep.mubr.bf16.mxu0 0
  %1879 = vmatmul.mubr.bf16.gmra.mxu0 %v1845
  %v1880 = vpop.f32.mrf.mxu0
  %v1881 = vadd.f32 0.0, %v1880
  %v1882 = vpop.f32.mrf.mxu0
  %v1883 = vadd.f32 0.0, %v1882
  %v1884 = vpop.f32.mrf.mxu0
  %v1885 = vadd.f32 0.0, %v1884
  %v1886 = vpop.f32.mrf.mxu0
  %v1887 = vadd.f32 0.0, %v1886
  %1888 = vdwg.mxu0
  %1889 = vmatprep.subr.bf16.mxu0 %v794
  %1890 = vmatpush1.bf16.msra.mxu0 %v793
  %1891 = vmatprep.subr.bf16.mxu0 %v788
  %1892 = vmatpush1.bf16.msra.mxu0 %v787
  %1893 = vmatprep.subr.bf16.mxu0 %v782
  %1894 = vmatpush1.bf16.msra.mxu0 %v781
  %1895 = vmatprep.subr.bf16.mxu0 %v776
  %1896 = vmatpush1.bf16.msra.mxu0 %v775
  %1897 = vmatprep.subr.bf16.mxu0 %v770
  %1898 = vmatpush1.bf16.msra.mxu0 %v769
  %1899 = vmatprep.subr.bf16.mxu0 %v764
  %1900 = vmatpush1.bf16.msra.mxu0 %v763
  %1901 = vmatprep.subr.bf16.mxu0 %v758
  %1902 = vmatpush1.bf16.msra.mxu0 %v757
  %1903 = vmatprep.subr.bf16.mxu0 %v752
  %1904 = vmatpush1.bf16.msra.mxu0 %v751
  %1905 = vmatprep.subr.bf16.mxu0 0
  %1906 = vmatpush2.bf16.msra.mxu0 0
  %1907 = vmatprep.subr.bf16.mxu0 0
  %1908 = vmatpush2.bf16.msra.mxu0 0
  %1909 = vmatprep.subr.bf16.mxu0 0
  %1910 = vmatpush2.bf16.msra.mxu0 0
  %1911 = vmatprep.subr.bf16.mxu0 0
  %1912 = vmatpush2.bf16.msra.mxu0 0
  %1913 = vmatprep.subr.bf16.mxu0 0
  %1914 = vmatpush2.bf16.msra.mxu0 0
  %1915 = vmatprep.subr.bf16.mxu0 0
  %1916 = vmatpush2.bf16.msra.mxu0 0
  %1917 = vmatprep.subr.bf16.mxu0 0
  %1918 = vmatpush2.bf16.msra.mxu0 0
  %1919 = vmatprep.subr.bf16.mxu0 0
  %1920 = vmatpush2.bf16.msra.mxu0 0
  %1921 = vmatprep.mubr.bf16.mxu0 0
  %1922 = vmatmul.mubr.bf16.gmra.mxu0 %v1845
  %v1923 = vpop.f32.mrf.mxu0
  %v1924 = vadd.f32 0.0, %v1923
  %v1925 = vpop.f32.mrf.mxu0
  %v1926 = vadd.f32 0.0, %v1925
  %v1927 = vpop.f32.mrf.mxu0
  %v1928 = vadd.f32 0.0, %v1927
  %v1929 = vpop.f32.mrf.mxu0
  %v1930 = vadd.f32 0.0, %v1929
  %1931 = vdwg.mxu0
  %1932 = vmatprep.subr.bf16.mxu0 %v796
  %1933 = vmatpush1.bf16.msra.mxu0 %v795
  %1934 = vmatprep.subr.bf16.mxu0 %v790
  %1935 = vmatpush1.bf16.msra.mxu0 %v789
  %1936 = vmatprep.subr.bf16.mxu0 %v784
  %1937 = vmatpush1.bf16.msra.mxu0 %v783
  %1938 = vmatprep.subr.bf16.mxu0 %v778
  %1939 = vmatpush1.bf16.msra.mxu0 %v777
  %1940 = vmatprep.subr.bf16.mxu0 %v772
  %1941 = vmatpush1.bf16.msra.mxu0 %v771
  %1942 = vmatprep.subr.bf16.mxu0 %v766
  %1943 = vmatpush1.bf16.msra.mxu0 %v765
  %1944 = vmatprep.subr.bf16.mxu0 %v760
  %1945 = vmatpush1.bf16.msra.mxu0 %v759
  %1946 = vmatprep.subr.bf16.mxu0 %v754
  %1947 = vmatpush1.bf16.msra.mxu0 %v753
  %1948 = vmatprep.subr.bf16.mxu0 0
  %1949 = vmatpush2.bf16.msra.mxu0 0
  %1950 = vmatprep.subr.bf16.mxu0 0
  %1951 = vmatpush2.bf16.msra.mxu0 0
  %1952 = vmatprep.subr.bf16.mxu0 0
  %1953 = vmatpush2.bf16.msra.mxu0 0
  %1954 = vmatprep.subr.bf16.mxu0 0
  %1955 = vmatpush2.bf16.msra.mxu0 0
  %1956 = vmatprep.subr.bf16.mxu0 0
  %1957 = vmatpush2.bf16.msra.mxu0 0
  %1958 = vmatprep.subr.bf16.mxu0 0
  %1959 = vmatpush2.bf16.msra.mxu0 0
  %1960 = vmatprep.subr.bf16.mxu0 0
  %1961 = vmatpush2.bf16.msra.mxu0 0
  %1962 = vmatprep.subr.bf16.mxu0 0
  %1963 = vmatpush2.bf16.msra.mxu0 0
  %1964 = vmatprep.mubr.bf16.mxu0 0
  %1965 = vmatmul.mubr.bf16.gmra.mxu0 %v1845
  %v1966 = vpop.f32.mrf.mxu0
  %v1967 = vadd.f32 0.0, %v1966
  %v1968 = vpop.f32.mrf.mxu0
  %v1969 = vadd.f32 0.0, %v1968
  %v1970 = vpop.f32.mrf.mxu0
  %v1971 = vadd.f32 0.0, %v1970
  %v1972 = vpop.f32.mrf.mxu0
  %v1973 = vadd.f32 0.0, %v1972
  %1974 = vdwg.mxu0
  %v1975 = vpack.c.bf16 %v1794, %v1793
  %1976 = vmatprep.subr.bf16.mxu0 %v1320
  %1977 = vmatpush1.bf16.msra.mxu0 %v1319
  %1978 = vmatprep.subr.bf16.mxu0 %v1317
  %1979 = vmatpush1.bf16.msra.mxu0 %v1316
  %1980 = vmatprep.subr.bf16.mxu0 %v1314
  %1981 = vmatpush1.bf16.msra.mxu0 %v1313
  %1982 = vmatprep.subr.bf16.mxu0 %v1311
  %1983 = vmatpush1.bf16.msra.mxu0 %v1310
  %1984 = vmatprep.subr.bf16.mxu0 %v1308
  %1985 = vmatpush1.bf16.msra.mxu0 %v1307
  %1986 = vmatprep.subr.bf16.mxu0 %v1305
  %1987 = vmatpush1.bf16.msra.mxu0 %v1304
  %1988 = vmatprep.subr.bf16.mxu0 %v1302
  %1989 = vmatpush1.bf16.msra.mxu0 %v1301
  %1990 = vmatprep.subr.bf16.mxu0 %v1299
  %1991 = vmatpush1.bf16.msra.mxu0 %v1298
  %1992 = vmatprep.subr.bf16.mxu0 0
  %1993 = vmatpush2.bf16.msra.mxu0 0
  %1994 = vmatprep.subr.bf16.mxu0 0
  %1995 = vmatpush2.bf16.msra.mxu0 0
  %1996 = vmatprep.subr.bf16.mxu0 0
  %1997 = vmatpush2.bf16.msra.mxu0 0
  %1998 = vmatprep.subr.bf16.mxu0 0
  %1999 = vmatpush2.bf16.msra.mxu0 0
  %2000 = vmatprep.subr.bf16.mxu0 0
  %2001 = vmatpush2.bf16.msra.mxu0 0
  %2002 = vmatprep.subr.bf16.mxu0 0
  %2003 = vmatpush2.bf16.msra.mxu0 0
  %2004 = vmatprep.subr.bf16.mxu0 0
  %2005 = vmatpush2.bf16.msra.mxu0 0
  %2006 = vmatprep.subr.bf16.mxu0 0
  %2007 = vmatpush2.bf16.msra.mxu0 0
  %2008 = vmatprep.mubr.bf16.mxu0 0
  %2009 = vmatmul.mubr.bf16.gmra.mxu0 %v1975
  %v2010 = vpop.f32.mrf.mxu0
  %v2011 = vadd.f32 0.0, %v2010
  %v2012 = vpop.f32.mrf.mxu0
  %v2013 = vadd.f32 0.0, %v2012
  %v2014 = vpop.f32.mrf.mxu0
  %v2015 = vadd.f32 0.0, %v2014
  %v2016 = vpop.f32.mrf.mxu0
  %v2017 = vadd.f32 0.0, %v2016
  %2018 = vdwg.mxu0
  %2019 = vmatprep.subr.bf16.mxu0 0
  %2020 = vmatpush1.bf16.msra.mxu0 %v1321
  %2021 = vmatprep.subr.bf16.mxu0 0
  %2022 = vmatpush1.bf16.msra.mxu0 %v1318
  %2023 = vmatprep.subr.bf16.mxu0 0
  %2024 = vmatpush1.bf16.msra.mxu0 %v1315
  %2025 = vmatprep.subr.bf16.mxu0 0
  %2026 = vmatpush1.bf16.msra.mxu0 %v1312
  %2027 = vmatprep.subr.bf16.mxu0 0
  %2028 = vmatpush1.bf16.msra.mxu0 %v1309
  %2029 = vmatprep.subr.bf16.mxu0 0
  %2030 = vmatpush1.bf16.msra.mxu0 %v1306
  %2031 = vmatprep.subr.bf16.mxu0 0
  %2032 = vmatpush1.bf16.msra.mxu0 %v1303
  %2033 = vmatprep.subr.bf16.mxu0 0
  %2034 = vmatpush1.bf16.msra.mxu0 %v1300
  %2035 = vmatprep.subr.bf16.mxu0 0
  %2036 = vmatpush2.bf16.msra.mxu0 0
  %2037 = vmatprep.subr.bf16.mxu0 0
  %2038 = vmatpush2.bf16.msra.mxu0 0
  %2039 = vmatprep.subr.bf16.mxu0 0
  %2040 = vmatpush2.bf16.msra.mxu0 0
  %2041 = vmatprep.subr.bf16.mxu0 0
  %2042 = vmatpush2.bf16.msra.mxu0 0
  %2043 = vmatprep.subr.bf16.mxu0 0
  %2044 = vmatpush2.bf16.msra.mxu0 0
  %2045 = vmatprep.subr.bf16.mxu0 0
  %2046 = vmatpush2.bf16.msra.mxu0 0
  %2047 = vmatprep.subr.bf16.mxu0 0
  %2048 = vmatpush2.bf16.msra.mxu0 0
  %2049 = vmatprep.subr.bf16.mxu0 0
  %2050 = vmatpush2.bf16.msra.mxu0 0
  %2051 = vmatprep.mubr.bf16.mxu0 0
  %2052 = vmatmul.mubr.bf16.gmra.mxu0 %v1975
  %v2053 = vpop.f32.mrf.mxu0
  %v2054 = vadd.f32 0.0, %v2053
  %v2055 = vpop.f32.mrf.mxu0
  %v2056 = vpop.f32.mrf.mxu0
  %v2057 = vadd.f32 0.0, %v2056
  %v2058 = vpop.f32.mrf.mxu0
  %2059 = vdwg.mxu0
  %v2060 = vadd.f32 %v1881, %v2011
  %v2061 = vadd.f32 %v1883, %v2013
  %v2062 = vadd.f32 %v1885, %v2015
  %v2063 = vadd.f32 %v1887, %v2017
  %v2064 = vadd.f32 %v2060, %v978
  %v2065 = vadd.f32 %v2061, %v982
  %v2066 = vadd.f32 %v2062, %v978
  %v2067 = vadd.f32 %v2063, %v982
  %v2068 = vxor.u32 %v2064, 2147483648
  %v2069 = vxor.u32 %v2065, 2147483648
  %v2070 = vxor.u32 %v2066, 2147483648
  %v2071 = vxor.u32 %v2067, 2147483648
  %v2072 = vmul.f32 %v2068, 1.442695
  %v2073 = vpow.pop %v2072
  %v2074 = vmul.f32 %v2069, 1.442695
  %v2075 = vpow.pop %v2074
  %v2076 = vmul.f32 %v2070, 1.442695
  %v2077 = vpow.pop %v2076
  %v2078 = vmul.f32 %v2071, 1.442695
  %v2079 = vpow.pop %v2078
  %v2080 = vadd.f32 %v2073, 1.0
  %v2081 = vadd.f32 %v2075, 1.0
  %v2082 = vadd.f32 %v2077, 1.0
  %v2083 = vadd.f32 %v2079, 1.0
  %v2084 = vrcp.pop %v2080
  %v2085 = vmul.f32 1.0, %v2084
  %v2086 = vrcp.pop %v2081
  %v2087 = vmul.f32 1.0, %v2086
  %v2088 = vrcp.pop %v2082
  %v2089 = vmul.f32 1.0, %v2088
  %v2090 = vrcp.pop %v2083
  %v2091 = vmul.f32 1.0, %v2090
  %v2092 = vadd.f32 %v1924, %v1017
  %v2093 = vadd.f32 %v1928, %v1017
  %v2094 = vadd.f32 %v2054, %v1025
  %v2095 = vadd.f32 %v2057, %v1025
  %v2096 = vmul.f32 %v2085, %v2094
  %v2097 = vmul.f32 %v2089, %v2095
  %v2098 = vadd.f32 %v2092, %v2096
  %v2099 = vadd.f32 %v2093, %v2097
  %v2100 = vtanh.pop %v2098
  %v2101 = vtanh.pop %v2099
  %v2102 = vsub.f32 1.0, %v2087
  %v2103 = vsub.f32 1.0, %v2091
  %v2104 = vmul.f32 %v2102, %v2100
  %v2105 = vmul.f32 %v2103, %v2101
  %v2106 = vmul.f32 %v2087, %v1793
  %v2107 = vmul.f32 %v2091, %v1794
  %v2108 = vadd.f32 %v2104, %v2106
  %v2109 = vadd.f32 %v2105, %v2107
  %v2110 = vld [vmem:[#allocation2 + $0xc0] sm:$0xff]
  %v2111 = vld [vmem:[#allocation2 + $0xc8] sm:$0xff]
  %v2112 = vld [vmem:[#allocation2 + $0xd0] sm:$0xff]
  %v2113 = vld [vmem:[#allocation2 + $0xd8] sm:$0xff]
  %v2114 = vld [vmem:[#allocation2 + $0xe0] sm:$0xff]
  %v2115 = vld [vmem:[#allocation2 + $0xe8] sm:$0xff]
  %v2116 = vadd.f32 %v2110, %v1926
  %v2117 = vadd.f32 %v2111, %v1967
  %v2118 = vadd.f32 %v2113, %v1930
  %v2119 = vadd.f32 %v2114, %v1971
  %v2120 = vxor.u32 %v2116, 2147483648
  %v2121 = vxor.u32 %v2117, 2147483648
  %v2122 = vxor.u32 %v2118, 2147483648
  %v2123 = vxor.u32 %v2119, 2147483648
  %v2124 = vmul.f32 %v2120, 1.442695
  %v2125 = vpow.pop %v2124
  %v2126 = vmul.f32 %v2121, 1.442695
  %v2127 = vpow.pop %v2126
  %v2128 = vmul.f32 %v2122, 1.442695
  %v2129 = vpow.pop %v2128
  %v2130 = vmul.f32 %v2123, 1.442695
  %v2131 = vpow.pop %v2130
  %v2132 = vadd.f32 %v2125, 1.0
  %v2133 = vadd.f32 %v2127, 1.0
  %v2134 = vadd.f32 %v2129, 1.0
  %v2135 = vadd.f32 %v2131, 1.0
  %v2136 = vrcp.pop %v2132
  %v2137 = vmul.f32 1.0, %v2136
  %v2138 = vrcp.pop %v2133
  %v2139 = vmul.f32 1.0, %v2138
  %v2140 = vrcp.pop %v2134
  %v2141 = vmul.f32 1.0, %v2140
  %v2142 = vrcp.pop %v2135
  %v2143 = vmul.f32 1.0, %v2142
  %v2144 = vadd.f32 %v1969, %v592
  %v2145 = vadd.f32 %v1973, %v592
  %v2146 = vmul.f32 %v2137, %v2144
  %v2147 = vmul.f32 %v2141, %v2145
  %v2148 = vadd.f32 %v2112, %v2146
  %v2149 = vadd.f32 %v2115, %v2147
  %v2150 = vtanh.pop %v2148
  %v2151 = vtanh.pop %v2149
  %v2152 = vsub.f32 1.0, %v2139
  %v2153 = vsub.f32 1.0, %v2143
  %v2154 = vmul.f32 %v2152, %v2150
  %v2155 = vmul.f32 %v2153, %v2151
  %v2156 = vmul.f32 %v2139, %v1843
  %v2157 = vmul.f32 %v2143, %v1844
  %v2158 = vadd.f32 %v2154, %v2156
  %v2159 = vadd.f32 %v2155, %v2157
  %v2160 = vpack.c.bf16 %v2159, %v2158
  %2161 = vmatprep.subr.bf16.mxu0 %v792
  %2162 = vmatpush1.bf16.msra.mxu0 %v791
  %2163 = vmatprep.subr.bf16.mxu0 %v786
  %2164 = vmatpush1.bf16.msra.mxu0 %v785
  %2165 = vmatprep.subr.bf16.mxu0 %v780
  %2166 = vmatpush1.bf16.msra.mxu0 %v779
  %2167 = vmatprep.subr.bf16.mxu0 %v774
  %2168 = vmatpush1.bf16.msra.mxu0 %v773
  %2169 = vmatprep.subr.bf16.mxu0 %v768
  %2170 = vmatpush1.bf16.msra.mxu0 %v767
  %2171 = vmatprep.subr.bf16.mxu0 %v762
  %2172 = vmatpush1.bf16.msra.mxu0 %v761
  %2173 = vmatprep.subr.bf16.mxu0 %v756
  %2174 = vmatpush1.bf16.msra.mxu0 %v755
  %2175 = vmatprep.subr.bf16.mxu0 %v750
  %2176 = vmatpush1.bf16.msra.mxu0 %v749
  %2177 = vmatprep.subr.bf16.mxu0 0
  %2178 = vmatpush2.bf16.msra.mxu0 0
  %2179 = vmatprep.subr.bf16.mxu0 0
  %2180 = vmatpush2.bf16.msra.mxu0 0
  %2181 = vmatprep.subr.bf16.mxu0 0
  %2182 = vmatpush2.bf16.msra.mxu0 0
  %2183 = vmatprep.subr.bf16.mxu0 0
  %2184 = vmatpush2.bf16.msra.mxu0 0
  %2185 = vmatprep.subr.bf16.mxu0 0
  %2186 = vmatpush2.bf16.msra.mxu0 0
  %2187 = vmatprep.subr.bf16.mxu0 0
  %2188 = vmatpush2.bf16.msra.mxu0 0
  %2189 = vmatprep.subr.bf16.mxu0 0
  %2190 = vmatpush2.bf16.msra.mxu0 0
  %2191 = vmatprep.subr.bf16.mxu0 0
  %2192 = vmatpush2.bf16.msra.mxu0 0
  %2193 = vmatprep.mubr.bf16.mxu0 0
  %2194 = vmatmul.mubr.bf16.gmra.mxu0 %v2160
  %v2195 = vpop.f32.mrf.mxu0
  %v2196 = vadd.f32 0.0, %v2195
  %v2197 = vpop.f32.mrf.mxu0
  %v2198 = vadd.f32 0.0, %v2197
  %v2199 = vpop.f32.mrf.mxu0
  %v2200 = vadd.f32 0.0, %v2199
  %v2201 = vpop.f32.mrf.mxu0
  %v2202 = vadd.f32 0.0, %v2201
  %2203 = vdwg.mxu0
  %2204 = vmatprep.subr.bf16.mxu0 %v794
  %2205 = vmatpush1.bf16.msra.mxu0 %v793
  %2206 = vmatprep.subr.bf16.mxu0 %v788
  %2207 = vmatpush1.bf16.msra.mxu0 %v787
  %2208 = vmatprep.subr.bf16.mxu0 %v782
  %2209 = vmatpush1.bf16.msra.mxu0 %v781
  %2210 = vmatprep.subr.bf16.mxu0 %v776
  %2211 = vmatpush1.bf16.msra.mxu0 %v775
  %2212 = vmatprep.subr.bf16.mxu0 %v770
  %2213 = vmatpush1.bf16.msra.mxu0 %v769
  %2214 = vmatprep.subr.bf16.mxu0 %v764
  %2215 = vmatpush1.bf16.msra.mxu0 %v763
  %2216 = vmatprep.subr.bf16.mxu0 %v758
  %2217 = vmatpush1.bf16.msra.mxu0 %v757
  %2218 = vmatprep.subr.bf16.mxu0 %v752
  %2219 = vmatpush1.bf16.msra.mxu0 %v751
  %2220 = vmatprep.subr.bf16.mxu0 0
  %2221 = vmatpush2.bf16.msra.mxu0 0
  %2222 = vmatprep.subr.bf16.mxu0 0
  %2223 = vmatpush2.bf16.msra.mxu0 0
  %2224 = vmatprep.subr.bf16.mxu0 0
  %2225 = vmatpush2.bf16.msra.mxu0 0
  %2226 = vmatprep.subr.bf16.mxu0 0
  %2227 = vmatpush2.bf16.msra.mxu0 0
  %2228 = vmatprep.subr.bf16.mxu0 0
  %2229 = vmatpush2.bf16.msra.mxu0 0
  %2230 = vmatprep.subr.bf16.mxu0 0
  %2231 = vmatpush2.bf16.msra.mxu0 0
  %2232 = vmatprep.subr.bf16.mxu0 0
  %2233 = vmatpush2.bf16.msra.mxu0 0
  %2234 = vmatprep.subr.bf16.mxu0 0
  %2235 = vmatpush2.bf16.msra.mxu0 0
  %2236 = vmatprep.mubr.bf16.mxu0 0
  %2237 = vmatmul.mubr.bf16.gmra.mxu0 %v2160
  %v2238 = vpop.f32.mrf.mxu0
  %v2239 = vadd.f32 0.0, %v2238
  %v2240 = vpop.f32.mrf.mxu0
  %v2241 = vadd.f32 0.0, %v2240
  %v2242 = vpop.f32.mrf.mxu0
  %v2243 = vadd.f32 0.0, %v2242
  %v2244 = vpop.f32.mrf.mxu0
  %v2245 = vadd.f32 0.0, %v2244
  %2246 = vdwg.mxu0
  %2247 = vmatprep.subr.bf16.mxu0 %v796
  %2248 = vmatpush1.bf16.msra.mxu0 %v795
  %2249 = vmatprep.subr.bf16.mxu0 %v790
  %2250 = vmatpush1.bf16.msra.mxu0 %v789
  %2251 = vmatprep.subr.bf16.mxu0 %v784
  %2252 = vmatpush1.bf16.msra.mxu0 %v783
  %2253 = vmatprep.subr.bf16.mxu0 %v778
  %2254 = vmatpush1.bf16.msra.mxu0 %v777
  %2255 = vmatprep.subr.bf16.mxu0 %v772
  %2256 = vmatpush1.bf16.msra.mxu0 %v771
  %2257 = vmatprep.subr.bf16.mxu0 %v766
  %2258 = vmatpush1.bf16.msra.mxu0 %v765
  %2259 = vmatprep.subr.bf16.mxu0 %v760
  %2260 = vmatpush1.bf16.msra.mxu0 %v759
  %2261 = vmatprep.subr.bf16.mxu0 %v754
  %2262 = vmatpush1.bf16.msra.mxu0 %v753
  %2263 = vmatprep.subr.bf16.mxu0 0
  %2264 = vmatpush2.bf16.msra.mxu0 0
  %2265 = vmatprep.subr.bf16.mxu0 0
  %2266 = vmatpush2.bf16.msra.mxu0 0
  %2267 = vmatprep.subr.bf16.mxu0 0
  %2268 = vmatpush2.bf16.msra.mxu0 0
  %2269 = vmatprep.subr.bf16.mxu0 0
  %2270 = vmatpush2.bf16.msra.mxu0 0
  %2271 = vmatprep.subr.bf16.mxu0 0
  %2272 = vmatpush2.bf16.msra.mxu0 0
  %2273 = vmatprep.subr.bf16.mxu0 0
  %2274 = vmatpush2.bf16.msra.mxu0 0
  %2275 = vmatprep.subr.bf16.mxu0 0
  %2276 = vmatpush2.bf16.msra.mxu0 0
  %2277 = vmatprep.subr.bf16.mxu0 0
  %2278 = vmatpush2.bf16.msra.mxu0 0
  %2279 = vmatprep.mubr.bf16.mxu0 0
  %2280 = vmatmul.mubr.bf16.gmra.mxu0 %v2160
  %v2281 = vpop.f32.mrf.mxu0
  %v2282 = vadd.f32 0.0, %v2281
  %v2283 = vpop.f32.mrf.mxu0
  %v2284 = vadd.f32 0.0, %v2283
  %v2285 = vpop.f32.mrf.mxu0
  %v2286 = vadd.f32 0.0, %v2285
  %v2287 = vpop.f32.mrf.mxu0
  %v2288 = vadd.f32 0.0, %v2287
  %2289 = vdwg.mxu0
  %v2290 = vpack.c.bf16 %v2109, %v2108
  %2291 = vmatprep.subr.bf16.mxu0 %v1320
  %2292 = vmatpush1.bf16.msra.mxu0 %v1319
  %2293 = vmatprep.subr.bf16.mxu0 %v1317
  %2294 = vmatpush1.bf16.msra.mxu0 %v1316
  %2295 = vmatprep.subr.bf16.mxu0 %v1314
  %2296 = vmatpush1.bf16.msra.mxu0 %v1313
  %2297 = vmatprep.subr.bf16.mxu0 %v1311
  %2298 = vmatpush1.bf16.msra.mxu0 %v1310
  %2299 = vmatprep.subr.bf16.mxu0 %v1308
  %2300 = vmatpush1.bf16.msra.mxu0 %v1307
  %2301 = vmatprep.subr.bf16.mxu0 %v1305
  %2302 = vmatpush1.bf16.msra.mxu0 %v1304
  %2303 = vmatprep.subr.bf16.mxu0 %v1302
  %2304 = vmatpush1.bf16.msra.mxu0 %v1301
  %2305 = vmatprep.subr.bf16.mxu0 %v1299
  %2306 = vmatpush1.bf16.msra.mxu0 %v1298
  %2307 = vmatprep.subr.bf16.mxu0 0
  %2308 = vmatpush2.bf16.msra.mxu0 0
  %2309 = vmatprep.subr.bf16.mxu0 0
  %2310 = vmatpush2.bf16.msra.mxu0 0
  %2311 = vmatprep.subr.bf16.mxu0 0
  %2312 = vmatpush2.bf16.msra.mxu0 0
  %2313 = vmatprep.subr.bf16.mxu0 0
  %2314 = vmatpush2.bf16.msra.mxu0 0
  %2315 = vmatprep.subr.bf16.mxu0 0
  %2316 = vmatpush2.bf16.msra.mxu0 0
  %2317 = vmatprep.subr.bf16.mxu0 0
  %2318 = vmatpush2.bf16.msra.mxu0 0
  %2319 = vmatprep.subr.bf16.mxu0 0
  %2320 = vmatpush2.bf16.msra.mxu0 0
  %2321 = vmatprep.subr.bf16.mxu0 0
  %2322 = vmatpush2.bf16.msra.mxu0 0
  %2323 = vmatprep.mubr.bf16.mxu0 0
  %2324 = vmatmul.mubr.bf16.gmra.mxu0 %v2290
  %v2325 = vpop.f32.mrf.mxu0
  %v2326 = vadd.f32 0.0, %v2325
  %v2327 = vpop.f32.mrf.mxu0
  %v2328 = vadd.f32 0.0, %v2327
  %v2329 = vpop.f32.mrf.mxu0
  %v2330 = vadd.f32 0.0, %v2329
  %v2331 = vpop.f32.mrf.mxu0
  %v2332 = vadd.f32 0.0, %v2331
  %2333 = vdwg.mxu0
  %2334 = vmatprep.subr.bf16.mxu0 0
  %2335 = vmatpush1.bf16.msra.mxu0 %v1321
  %2336 = vmatprep.subr.bf16.mxu0 0
  %2337 = vmatpush1.bf16.msra.mxu0 %v1318
  %2338 = vmatprep.subr.bf16.mxu0 0
  %2339 = vmatpush1.bf16.msra.mxu0 %v1315
  %2340 = vmatprep.subr.bf16.mxu0 0
  %2341 = vmatpush1.bf16.msra.mxu0 %v1312
  %2342 = vmatprep.subr.bf16.mxu0 0
  %2343 = vmatpush1.bf16.msra.mxu0 %v1309
  %2344 = vmatprep.subr.bf16.mxu0 0
  %2345 = vmatpush1.bf16.msra.mxu0 %v1306
  %2346 = vmatprep.subr.bf16.mxu0 0
  %2347 = vmatpush1.bf16.msra.mxu0 %v1303
  %2348 = vmatprep.subr.bf16.mxu0 0
  %2349 = vmatpush1.bf16.msra.mxu0 %v1300
  %2350 = vmatprep.subr.bf16.mxu0 0
  %2351 = vmatpush2.bf16.msra.mxu0 0
  %2352 = vmatprep.subr.bf16.mxu0 0
  %2353 = vmatpush2.bf16.msra.mxu0 0
  %2354 = vmatprep.subr.bf16.mxu0 0
  %2355 = vmatpush2.bf16.msra.mxu0 0
  %2356 = vmatprep.subr.bf16.mxu0 0
  %2357 = vmatpush2.bf16.msra.mxu0 0
  %2358 = vmatprep.subr.bf16.mxu0 0
  %2359 = vmatpush2.bf16.msra.mxu0 0
  %2360 = vmatprep.subr.bf16.mxu0 0
  %2361 = vmatpush2.bf16.msra.mxu0 0
  %2362 = vmatprep.subr.bf16.mxu0 0
  %2363 = vmatpush2.bf16.msra.mxu0 0
  %2364 = vmatprep.subr.bf16.mxu0 0
  %2365 = vmatpush2.bf16.msra.mxu0 0
  %2366 = vmatprep.mubr.bf16.mxu0 0
  %2367 = vmatmul.mubr.bf16.gmra.mxu0 %v2290
  %v2368 = vpop.f32.mrf.mxu0
  %v2369 = vadd.f32 0.0, %v2368
  %v2370 = vpop.f32.mrf.mxu0
  %v2371 = vpop.f32.mrf.mxu0
  %v2372 = vadd.f32 0.0, %v2371
  %v2373 = vpop.f32.mrf.mxu0
  %2374 = vdwg.mxu0
  %v2375 = vadd.f32 %v2196, %v2326
  %v2376 = vadd.f32 %v2198, %v2328
  %v2377 = vadd.f32 %v2200, %v2330
  %v2378 = vadd.f32 %v2202, %v2332
  %v2379 = vadd.f32 %v2375, %v978
  %v2380 = vadd.f32 %v2376, %v982
  %v2381 = vadd.f32 %v2377, %v978
  %v2382 = vadd.f32 %v2378, %v982
  %v2383 = vxor.u32 %v2379, 2147483648
  %v2384 = vxor.u32 %v2380, 2147483648
  %v2385 = vxor.u32 %v2381, 2147483648
  %v2386 = vxor.u32 %v2382, 2147483648
  %v2387 = vmul.f32 %v2383, 1.442695
  %v2388 = vpow.pop %v2387
  %v2389 = vmul.f32 %v2384, 1.442695
  %v2390 = vpow.pop %v2389
  %v2391 = vmul.f32 %v2385, 1.442695
  %v2392 = vpow.pop %v2391
  %v2393 = vmul.f32 %v2386, 1.442695
  %v2394 = vpow.pop %v2393
  %v2395 = vadd.f32 %v2388, 1.0
  %v2396 = vadd.f32 %v2390, 1.0
  %v2397 = vadd.f32 %v2392, 1.0
  %v2398 = vadd.f32 %v2394, 1.0
  %v2399 = vrcp.pop %v2395
  %v2400 = vmul.f32 1.0, %v2399
  %v2401 = vrcp.pop %v2396
  %v2402 = vmul.f32 1.0, %v2401
  %v2403 = vrcp.pop %v2397
  %v2404 = vmul.f32 1.0, %v2403
  %v2405 = vrcp.pop %v2398
  %v2406 = vmul.f32 1.0, %v2405
  %v2407 = vadd.f32 %v2239, %v1017
  %v2408 = vadd.f32 %v2243, %v1017
  %v2409 = vadd.f32 %v2369, %v1025
  %v2410 = vadd.f32 %v2372, %v1025
  %v2411 = vmul.f32 %v2400, %v2409
  %v2412 = vmul.f32 %v2404, %v2410
  %v2413 = vadd.f32 %v2407, %v2411
  %v2414 = vadd.f32 %v2408, %v2412
  %v2415 = vtanh.pop %v2413
  %v2416 = vtanh.pop %v2414
  %v2417 = vsub.f32 1.0, %v2402
  %v2418 = vsub.f32 1.0, %v2406
  %v2419 = vmul.f32 %v2417, %v2415
  %v2420 = vmul.f32 %v2418, %v2416
  %v2421 = vmul.f32 %v2402, %v2108
  %v2422 = vmul.f32 %v2406, %v2109
  %v2423 = vadd.f32 %v2419, %v2421
  %v2424 = vadd.f32 %v2420, %v2422
  %v2425 = vld [vmem:[#allocation2 + $0xf0] sm:$0xff]
  %v2426 = vld [vmem:[#allocation2 + $0xf8] sm:$0xff]
  %v2427 = vld [vmem:[#allocation2 + $0x100] sm:$0xff]
  %v2428 = vld [vmem:[#allocation2 + $0x108] sm:$0xff]
  %v2429 = vld [vmem:[#allocation2 + $0x110] sm:$0xff]
  %v2430 = vld [vmem:[#allocation2 + $0x118] sm:$0xff]
  %v2431 = vadd.f32 %v2425, %v2241
  %v2432 = vadd.f32 %v2426, %v2282
  %v2433 = vadd.f32 %v2428, %v2245
  %v2434 = vadd.f32 %v2429, %v2286
  %v2435 = vxor.u32 %v2431, 2147483648
  %v2436 = vxor.u32 %v2432, 2147483648
  %v2437 = vxor.u32 %v2433, 2147483648
  %v2438 = vxor.u32 %v2434, 2147483648
  %v2439 = vmul.f32 %v2435, 1.442695
  %v2440 = vpow.pop %v2439
  %v2441 = vmul.f32 %v2436, 1.442695
  %v2442 = vpow.pop %v2441
  %v2443 = vmul.f32 %v2437, 1.442695
  %v2444 = vpow.pop %v2443
  %v2445 = vmul.f32 %v2438, 1.442695
  %v2446 = vpow.pop %v2445
  %v2447 = vadd.f32 %v2440, 1.0
  %v2448 = vadd.f32 %v2442, 1.0
  %v2449 = vadd.f32 %v2444, 1.0
  %v2450 = vadd.f32 %v2446, 1.0
  %v2451 = vrcp.pop %v2447
  %v2452 = vmul.f32 1.0, %v2451
  %v2453 = vrcp.pop %v2448
  %v2454 = vmul.f32 1.0, %v2453
  %v2455 = vrcp.pop %v2449
  %v2456 = vmul.f32 1.0, %v2455
  %v2457 = vrcp.pop %v2450
  %v2458 = vmul.f32 1.0, %v2457
  %v2459 = vadd.f32 %v2284, %v592
  %v2460 = vadd.f32 %v2288, %v592
  %v2461 = vmul.f32 %v2452, %v2459
  %v2462 = vmul.f32 %v2456, %v2460
  %v2463 = vadd.f32 %v2427, %v2461
  %v2464 = vadd.f32 %v2430, %v2462
  %v2465 = vtanh.pop %v2463
  %v2466 = vtanh.pop %v2464
  %v2467 = vsub.f32 1.0, %v2454
  %v2468 = vsub.f32 1.0, %v2458
  %v2469 = vmul.f32 %v2467, %v2465
  %v2470 = vmul.f32 %v2468, %v2466
  %v2471 = vmul.f32 %v2454, %v2158
  %v2472 = vmul.f32 %v2458, %v2159
  %v2473 = vadd.f32 %v2469, %v2471
  %v2474 = vadd.f32 %v2470, %v2472
  %v2475 = vpack.c.bf16 %v2474, %v2473
  %2476 = vmatprep.subr.bf16.mxu0 %v792
  %2477 = vmatpush1.bf16.msra.mxu0 %v791
  %2478 = vmatprep.subr.bf16.mxu0 %v786
  %2479 = vmatpush1.bf16.msra.mxu0 %v785
  %2480 = vmatprep.subr.bf16.mxu0 %v780
  %2481 = vmatpush1.bf16.msra.mxu0 %v779
  %2482 = vmatprep.subr.bf16.mxu0 %v774
  %2483 = vmatpush1.bf16.msra.mxu0 %v773
  %2484 = vmatprep.subr.bf16.mxu0 %v768
  %2485 = vmatpush1.bf16.msra.mxu0 %v767
  %2486 = vmatprep.subr.bf16.mxu0 %v762
  %2487 = vmatpush1.bf16.msra.mxu0 %v761
  %2488 = vmatprep.subr.bf16.mxu0 %v756
  %2489 = vmatpush1.bf16.msra.mxu0 %v755
  %2490 = vmatprep.subr.bf16.mxu0 %v750
  %2491 = vmatpush1.bf16.msra.mxu0 %v749
  %2492 = vmatprep.subr.bf16.mxu0 0
  %2493 = vmatpush2.bf16.msra.mxu0 0
  %2494 = vmatprep.subr.bf16.mxu0 0
  %2495 = vmatpush2.bf16.msra.mxu0 0
  %2496 = vmatprep.subr.bf16.mxu0 0
  %2497 = vmatpush2.bf16.msra.mxu0 0
  %2498 = vmatprep.subr.bf16.mxu0 0
  %2499 = vmatpush2.bf16.msra.mxu0 0
  %2500 = vmatprep.subr.bf16.mxu0 0
  %2501 = vmatpush2.bf16.msra.mxu0 0
  %2502 = vmatprep.subr.bf16.mxu0 0
  %2503 = vmatpush2.bf16.msra.mxu0 0
  %2504 = vmatprep.subr.bf16.mxu0 0
  %2505 = vmatpush2.bf16.msra.mxu0 0
  %2506 = vmatprep.subr.bf16.mxu0 0
  %2507 = vmatpush2.bf16.msra.mxu0 0
  %2508 = vmatprep.mubr.bf16.mxu0 0
  %2509 = vmatmul.mubr.bf16.gmra.mxu0 %v2475
  %v2510 = vpop.f32.mrf.mxu0
  %v2511 = vadd.f32 0.0, %v2510
  %v2512 = vpop.f32.mrf.mxu0
  %v2513 = vadd.f32 0.0, %v2512
  %v2514 = vpop.f32.mrf.mxu0
  %v2515 = vadd.f32 0.0, %v2514
  %v2516 = vpop.f32.mrf.mxu0
  %v2517 = vadd.f32 0.0, %v2516
  %2518 = vdwg.mxu0
  %2519 = vmatprep.subr.bf16.mxu0 %v794
  %2520 = vmatpush1.bf16.msra.mxu0 %v793
  %2521 = vmatprep.subr.bf16.mxu0 %v788
  %2522 = vmatpush1.bf16.msra.mxu0 %v787
  %2523 = vmatprep.subr.bf16.mxu0 %v782
  %2524 = vmatpush1.bf16.msra.mxu0 %v781
  %2525 = vmatprep.subr.bf16.mxu0 %v776
  %2526 = vmatpush1.bf16.msra.mxu0 %v775
  %2527 = vmatprep.subr.bf16.mxu0 %v770
  %2528 = vmatpush1.bf16.msra.mxu0 %v769
  %2529 = vmatprep.subr.bf16.mxu0 %v764
  %2530 = vmatpush1.bf16.msra.mxu0 %v763
  %2531 = vmatprep.subr.bf16.mxu0 %v758
  %2532 = vmatpush1.bf16.msra.mxu0 %v757
  %2533 = vmatprep.subr.bf16.mxu0 %v752
  %2534 = vmatpush1.bf16.msra.mxu0 %v751
  %2535 = vmatprep.subr.bf16.mxu0 0
  %2536 = vmatpush2.bf16.msra.mxu0 0
  %2537 = vmatprep.subr.bf16.mxu0 0
  %2538 = vmatpush2.bf16.msra.mxu0 0
  %2539 = vmatprep.subr.bf16.mxu0 0
  %2540 = vmatpush2.bf16.msra.mxu0 0
  %2541 = vmatprep.subr.bf16.mxu0 0
  %2542 = vmatpush2.bf16.msra.mxu0 0
  %2543 = vmatprep.subr.bf16.mxu0 0
  %2544 = vmatpush2.bf16.msra.mxu0 0
  %2545 = vmatprep.subr.bf16.mxu0 0
  %2546 = vmatpush2.bf16.msra.mxu0 0
  %2547 = vmatprep.subr.bf16.mxu0 0
  %2548 = vmatpush2.bf16.msra.mxu0 0
  %2549 = vmatprep.subr.bf16.mxu0 0
  %2550 = vmatpush2.bf16.msra.mxu0 0
  %2551 = vmatprep.mubr.bf16.mxu0 0
  %2552 = vmatmul.mubr.bf16.gmra.mxu0 %v2475
  %v2553 = vpop.f32.mrf.mxu0
  %v2554 = vadd.f32 0.0, %v2553
  %v2555 = vpop.f32.mrf.mxu0
  %v2556 = vadd.f32 0.0, %v2555
  %v2557 = vpop.f32.mrf.mxu0
  %v2558 = vadd.f32 0.0, %v2557
  %v2559 = vpop.f32.mrf.mxu0
  %v2560 = vadd.f32 0.0, %v2559
  %2561 = vdwg.mxu0
  %2562 = vmatprep.subr.bf16.mxu0 %v796
  %2563 = vmatpush1.bf16.msra.mxu0 %v795
  %2564 = vmatprep.subr.bf16.mxu0 %v790
  %2565 = vmatpush1.bf16.msra.mxu0 %v789
  %2566 = vmatprep.subr.bf16.mxu0 %v784
  %2567 = vmatpush1.bf16.msra.mxu0 %v783
  %2568 = vmatprep.subr.bf16.mxu0 %v778
  %2569 = vmatpush1.bf16.msra.mxu0 %v777
  %2570 = vmatprep.subr.bf16.mxu0 %v772
  %2571 = vmatpush1.bf16.msra.mxu0 %v771
  %2572 = vmatprep.subr.bf16.mxu0 %v766
  %2573 = vmatpush1.bf16.msra.mxu0 %v765
  %2574 = vmatprep.subr.bf16.mxu0 %v760
  %2575 = vmatpush1.bf16.msra.mxu0 %v759
  %2576 = vmatprep.subr.bf16.mxu0 %v754
  %2577 = vmatpush1.bf16.msra.mxu0 %v753
  %2578 = vmatprep.subr.bf16.mxu0 0
  %2579 = vmatpush2.bf16.msra.mxu0 0
  %2580 = vmatprep.subr.bf16.mxu0 0
  %2581 = vmatpush2.bf16.msra.mxu0 0
  %2582 = vmatprep.subr.bf16.mxu0 0
  %2583 = vmatpush2.bf16.msra.mxu0 0
  %2584 = vmatprep.subr.bf16.mxu0 0
  %2585 = vmatpush2.bf16.msra.mxu0 0
  %2586 = vmatprep.subr.bf16.mxu0 0
  %2587 = vmatpush2.bf16.msra.mxu0 0
  %2588 = vmatprep.subr.bf16.mxu0 0
  %2589 = vmatpush2.bf16.msra.mxu0 0
  %2590 = vmatprep.subr.bf16.mxu0 0
  %2591 = vmatpush2.bf16.msra.mxu0 0
  %2592 = vmatprep.subr.bf16.mxu0 0
  %2593 = vmatpush2.bf16.msra.mxu0 0
  %2594 = vmatprep.mubr.bf16.mxu0 0
  %2595 = vmatmul.mubr.bf16.gmra.mxu0 %v2475
  %v2596 = vpop.f32.mrf.mxu0
  %v2597 = vadd.f32 0.0, %v2596
  %v2598 = vpop.f32.mrf.mxu0
  %v2599 = vadd.f32 0.0, %v2598
  %v2600 = vpop.f32.mrf.mxu0
  %v2601 = vadd.f32 0.0, %v2600
  %v2602 = vpop.f32.mrf.mxu0
  %v2603 = vadd.f32 0.0, %v2602
  %2604 = vdwg.mxu0
  %v2605 = vpack.c.bf16 %v2424, %v2423
  %2606 = vmatprep.subr.bf16.mxu0 %v1320
  %2607 = vmatpush1.bf16.msra.mxu0 %v1319
  %2608 = vmatprep.subr.bf16.mxu0 %v1317
  %2609 = vmatpush1.bf16.msra.mxu0 %v1316
  %2610 = vmatprep.subr.bf16.mxu0 %v1314
  %2611 = vmatpush1.bf16.msra.mxu0 %v1313
  %2612 = vmatprep.subr.bf16.mxu0 %v1311
  %2613 = vmatpush1.bf16.msra.mxu0 %v1310
  %2614 = vmatprep.subr.bf16.mxu0 %v1308
  %2615 = vmatpush1.bf16.msra.mxu0 %v1307
  %2616 = vmatprep.subr.bf16.mxu0 %v1305
  %2617 = vmatpush1.bf16.msra.mxu0 %v1304
  %2618 = vmatprep.subr.bf16.mxu0 %v1302
  %2619 = vmatpush1.bf16.msra.mxu0 %v1301
  %2620 = vmatprep.subr.bf16.mxu0 %v1299
  %2621 = vmatpush1.bf16.msra.mxu0 %v1298
  %2622 = vmatprep.subr.bf16.mxu0 0
  %2623 = vmatpush2.bf16.msra.mxu0 0
  %2624 = vmatprep.subr.bf16.mxu0 0
  %2625 = vmatpush2.bf16.msra.mxu0 0
  %2626 = vmatprep.subr.bf16.mxu0 0
  %2627 = vmatpush2.bf16.msra.mxu0 0
  %2628 = vmatprep.subr.bf16.mxu0 0
  %2629 = vmatpush2.bf16.msra.mxu0 0
  %2630 = vmatprep.subr.bf16.mxu0 0
  %2631 = vmatpush2.bf16.msra.mxu0 0
  %2632 = vmatprep.subr.bf16.mxu0 0
  %2633 = vmatpush2.bf16.msra.mxu0 0
  %2634 = vmatprep.subr.bf16.mxu0 0
  %2635 = vmatpush2.bf16.msra.mxu0 0
  %2636 = vmatprep.subr.bf16.mxu0 0
  %2637 = vmatpush2.bf16.msra.mxu0 0
  %2638 = vmatprep.mubr.bf16.mxu0 0
  %2639 = vmatmul.mubr.bf16.gmra.mxu0 %v2605
  %v2640 = vpop.f32.mrf.mxu0
  %v2641 = vadd.f32 0.0, %v2640
  %v2642 = vpop.f32.mrf.mxu0
  %v2643 = vadd.f32 0.0, %v2642
  %v2644 = vpop.f32.mrf.mxu0
  %v2645 = vadd.f32 0.0, %v2644
  %v2646 = vpop.f32.mrf.mxu0
  %v2647 = vadd.f32 0.0, %v2646
  %2648 = vdwg.mxu0
  %2649 = vmatprep.subr.bf16.mxu0 0
  %2650 = vmatpush1.bf16.msra.mxu0 %v1321
  %2651 = vmatprep.subr.bf16.mxu0 0
  %2652 = vmatpush1.bf16.msra.mxu0 %v1318
  %2653 = vmatprep.subr.bf16.mxu0 0
  %2654 = vmatpush1.bf16.msra.mxu0 %v1315
  %2655 = vmatprep.subr.bf16.mxu0 0
  %2656 = vmatpush1.bf16.msra.mxu0 %v1312
  %2657 = vmatprep.subr.bf16.mxu0 0
  %2658 = vmatpush1.bf16.msra.mxu0 %v1309
  %2659 = vmatprep.subr.bf16.mxu0 0
  %2660 = vmatpush1.bf16.msra.mxu0 %v1306
  %2661 = vmatprep.subr.bf16.mxu0 0
  %2662 = vmatpush1.bf16.msra.mxu0 %v1303
  %2663 = vmatprep.subr.bf16.mxu0 0
  %2664 = vmatpush1.bf16.msra.mxu0 %v1300
  %2665 = vmatprep.subr.bf16.mxu0 0
  %2666 = vmatpush2.bf16.msra.mxu0 0
  %2667 = vmatprep.subr.bf16.mxu0 0
  %2668 = vmatpush2.bf16.msra.mxu0 0
  %2669 = vmatprep.subr.bf16.mxu0 0
  %2670 = vmatpush2.bf16.msra.mxu0 0
  %2671 = vmatprep.subr.bf16.mxu0 0
  %2672 = vmatpush2.bf16.msra.mxu0 0
  %2673 = vmatprep.subr.bf16.mxu0 0
  %2674 = vmatpush2.bf16.msra.mxu0 0
  %2675 = vmatprep.subr.bf16.mxu0 0
  %2676 = vmatpush2.bf16.msra.mxu0 0
  %2677 = vmatprep.subr.bf16.mxu0 0
  %2678 = vmatpush2.bf16.msra.mxu0 0
  %2679 = vmatprep.subr.bf16.mxu0 0
  %2680 = vmatpush2.bf16.msra.mxu0 0
  %2681 = vmatprep.mubr.bf16.mxu0 0
  %2682 = vmatmul.mubr.bf16.gmra.mxu0 %v2605
  %v2683 = vpop.f32.mrf.mxu0
  %v2684 = vadd.f32 0.0, %v2683
  %v2685 = vpop.f32.mrf.mxu0
  %v2686 = vpop.f32.mrf.mxu0
  %v2687 = vadd.f32 0.0, %v2686
  %v2688 = vpop.f32.mrf.mxu0
  %2689 = vdwg.mxu0
  %v2690 = vadd.f32 %v2511, %v2641
  %v2691 = vadd.f32 %v2513, %v2643
  %v2692 = vadd.f32 %v2515, %v2645
  %v2693 = vadd.f32 %v2517, %v2647
  %v2694 = vadd.f32 %v2690, %v978
  %v2695 = vadd.f32 %v2691, %v982
  %v2696 = vadd.f32 %v2692, %v978
  %v2697 = vadd.f32 %v2693, %v982
  %v2698 = vxor.u32 %v2694, 2147483648
  %v2699 = vxor.u32 %v2695, 2147483648
  %v2700 = vxor.u32 %v2696, 2147483648
  %v2701 = vxor.u32 %v2697, 2147483648
  %v2702 = vmul.f32 %v2698, 1.442695
  %v2703 = vpow.pop %v2702
  %v2704 = vmul.f32 %v2699, 1.442695
  %v2705 = vpow.pop %v2704
  %v2706 = vmul.f32 %v2700, 1.442695
  %v2707 = vpow.pop %v2706
  %v2708 = vmul.f32 %v2701, 1.442695
  %v2709 = vpow.pop %v2708
  %v2710 = vadd.f32 %v2703, 1.0
  %v2711 = vadd.f32 %v2705, 1.0
  %v2712 = vadd.f32 %v2707, 1.0
  %v2713 = vadd.f32 %v2709, 1.0
  %v2714 = vrcp.pop %v2710
  %v2715 = vmul.f32 1.0, %v2714
  %v2716 = vrcp.pop %v2711
  %v2717 = vmul.f32 1.0, %v2716
  %v2718 = vrcp.pop %v2712
  %v2719 = vmul.f32 1.0, %v2718
  %v2720 = vrcp.pop %v2713
  %v2721 = vmul.f32 1.0, %v2720
  %v2722 = vadd.f32 %v2554, %v1017
  %v2723 = vadd.f32 %v2558, %v1017
  %v2724 = vadd.f32 %v2684, %v1025
  %v2725 = vadd.f32 %v2687, %v1025
  %v2726 = vmul.f32 %v2715, %v2724
  %v2727 = vmul.f32 %v2719, %v2725
  %v2728 = vadd.f32 %v2722, %v2726
  %v2729 = vadd.f32 %v2723, %v2727
  %v2730 = vtanh.pop %v2728
  %v2731 = vtanh.pop %v2729
  %v2732 = vsub.f32 1.0, %v2717
  %v2733 = vsub.f32 1.0, %v2721
  %v2734 = vmul.f32 %v2732, %v2730
  %v2735 = vmul.f32 %v2733, %v2731
  %v2736 = vmul.f32 %v2717, %v2423
  %v2737 = vmul.f32 %v2721, %v2424
  %v2738 = vadd.f32 %v2734, %v2736
  %v2739 = vadd.f32 %v2735, %v2737
  %v2740 = vld [vmem:[#allocation2 + $0x120] sm:$0xff]
  %v2741 = vld [vmem:[#allocation2 + $0x128] sm:$0xff]
  %v2742 = vld [vmem:[#allocation2 + $0x130] sm:$0xff]
  %v2743 = vld [vmem:[#allocation2 + $0x138] sm:$0xff]
  %v2744 = vld [vmem:[#allocation2 + $0x140] sm:$0xff]
  %v2745 = vld [vmem:[#allocation2 + $0x148] sm:$0xff]
  %v2746 = vadd.f32 %v2740, %v2556
  %v2747 = vadd.f32 %v2741, %v2597
  %v2748 = vadd.f32 %v2743, %v2560
  %v2749 = vadd.f32 %v2744, %v2601
  %v2750 = vxor.u32 %v2746, 2147483648
  %v2751 = vxor.u32 %v2747, 2147483648
  %v2752 = vxor.u32 %v2748, 2147483648
  %v2753 = vxor.u32 %v2749, 2147483648
  %v2754 = vmul.f32 %v2750, 1.442695
  %v2755 = vpow.pop %v2754
  %v2756 = vmul.f32 %v2751, 1.442695
  %v2757 = vpow.pop %v2756
  %v2758 = vmul.f32 %v2752, 1.442695
  %v2759 = vpow.pop %v2758
  %v2760 = vmul.f32 %v2753, 1.442695
  %v2761 = vpow.pop %v2760
  %v2762 = vadd.f32 %v2755, 1.0
  %v2763 = vadd.f32 %v2757, 1.0
  %v2764 = vadd.f32 %v2759, 1.0
  %v2765 = vadd.f32 %v2761, 1.0
  %v2766 = vrcp.pop %v2762
  %v2767 = vmul.f32 1.0, %v2766
  %v2768 = vrcp.pop %v2763
  %v2769 = vmul.f32 1.0, %v2768
  %v2770 = vrcp.pop %v2764
  %v2771 = vmul.f32 1.0, %v2770
  %v2772 = vrcp.pop %v2765
  %v2773 = vmul.f32 1.0, %v2772
  %v2774 = vadd.f32 %v2599, %v592
  %v2775 = vadd.f32 %v2603, %v592
  %v2776 = vmul.f32 %v2767, %v2774
  %v2777 = vmul.f32 %v2771, %v2775
  %v2778 = vadd.f32 %v2742, %v2776
  %v2779 = vadd.f32 %v2745, %v2777
  %v2780 = vtanh.pop %v2778
  %v2781 = vtanh.pop %v2779
  %v2782 = vsub.f32 1.0, %v2769
  %v2783 = vsub.f32 1.0, %v2773
  %v2784 = vmul.f32 %v2782, %v2780
  %v2785 = vmul.f32 %v2783, %v2781
  %v2786 = vmul.f32 %v2769, %v2473
  %v2787 = vmul.f32 %v2773, %v2474
  %v2788 = vadd.f32 %v2784, %v2786
  %v2789 = vadd.f32 %v2785, %v2787
  %v2790 = vpack.c.bf16 %v2789, %v2788
  %2791 = vmatprep.subr.bf16.mxu0 %v792
  %2792 = vmatpush1.bf16.msra.mxu0 %v791
  %2793 = vmatprep.subr.bf16.mxu0 %v786
  %2794 = vmatpush1.bf16.msra.mxu0 %v785
  %2795 = vmatprep.subr.bf16.mxu0 %v780
  %2796 = vmatpush1.bf16.msra.mxu0 %v779
  %2797 = vmatprep.subr.bf16.mxu0 %v774
  %2798 = vmatpush1.bf16.msra.mxu0 %v773
  %2799 = vmatprep.subr.bf16.mxu0 %v768
  %2800 = vmatpush1.bf16.msra.mxu0 %v767
  %2801 = vmatprep.subr.bf16.mxu0 %v762
  %2802 = vmatpush1.bf16.msra.mxu0 %v761
  %2803 = vmatprep.subr.bf16.mxu0 %v756
  %2804 = vmatpush1.bf16.msra.mxu0 %v755
  %2805 = vmatprep.subr.bf16.mxu0 %v750
  %2806 = vmatpush1.bf16.msra.mxu0 %v749
  %2807 = vmatprep.subr.bf16.mxu0 0
  %2808 = vmatpush2.bf16.msra.mxu0 0
  %2809 = vmatprep.subr.bf16.mxu0 0
  %2810 = vmatpush2.bf16.msra.mxu0 0
  %2811 = vmatprep.subr.bf16.mxu0 0
  %2812 = vmatpush2.bf16.msra.mxu0 0
  %2813 = vmatprep.subr.bf16.mxu0 0
  %2814 = vmatpush2.bf16.msra.mxu0 0
  %2815 = vmatprep.subr.bf16.mxu0 0
  %2816 = vmatpush2.bf16.msra.mxu0 0
  %2817 = vmatprep.subr.bf16.mxu0 0
  %2818 = vmatpush2.bf16.msra.mxu0 0
  %2819 = vmatprep.subr.bf16.mxu0 0
  %2820 = vmatpush2.bf16.msra.mxu0 0
  %2821 = vmatprep.subr.bf16.mxu0 0
  %2822 = vmatpush2.bf16.msra.mxu0 0
  %2823 = vmatprep.mubr.bf16.mxu0 0
  %2824 = vmatmul.mubr.bf16.gmra.mxu0 %v2790
  %v2825 = vpop.f32.mrf.mxu0
  %v2826 = vadd.f32 0.0, %v2825
  %v2827 = vpop.f32.mrf.mxu0
  %v2828 = vadd.f32 0.0, %v2827
  %v2829 = vpop.f32.mrf.mxu0
  %v2830 = vadd.f32 0.0, %v2829
  %v2831 = vpop.f32.mrf.mxu0
  %v2832 = vadd.f32 0.0, %v2831
  %2833 = vdwg.mxu0
  %2834 = vmatprep.subr.bf16.mxu0 %v794
  %2835 = vmatpush1.bf16.msra.mxu0 %v793
  %2836 = vmatprep.subr.bf16.mxu0 %v788
  %2837 = vmatpush1.bf16.msra.mxu0 %v787
  %2838 = vmatprep.subr.bf16.mxu0 %v782
  %2839 = vmatpush1.bf16.msra.mxu0 %v781
  %2840 = vmatprep.subr.bf16.mxu0 %v776
  %2841 = vmatpush1.bf16.msra.mxu0 %v775
  %2842 = vmatprep.subr.bf16.mxu0 %v770
  %2843 = vmatpush1.bf16.msra.mxu0 %v769
  %2844 = vmatprep.subr.bf16.mxu0 %v764
  %2845 = vmatpush1.bf16.msra.mxu0 %v763
  %2846 = vmatprep.subr.bf16.mxu0 %v758
  %2847 = vmatpush1.bf16.msra.mxu0 %v757
  %2848 = vmatprep.subr.bf16.mxu0 %v752
  %2849 = vmatpush1.bf16.msra.mxu0 %v751
  %2850 = vmatprep.subr.bf16.mxu0 0
  %2851 = vmatpush2.bf16.msra.mxu0 0
  %2852 = vmatprep.subr.bf16.mxu0 0
  %2853 = vmatpush2.bf16.msra.mxu0 0
  %2854 = vmatprep.subr.bf16.mxu0 0
  %2855 = vmatpush2.bf16.msra.mxu0 0
  %2856 = vmatprep.subr.bf16.mxu0 0
  %2857 = vmatpush2.bf16.msra.mxu0 0
  %2858 = vmatprep.subr.bf16.mxu0 0
  %2859 = vmatpush2.bf16.msra.mxu0 0
  %2860 = vmatprep.subr.bf16.mxu0 0
  %2861 = vmatpush2.bf16.msra.mxu0 0
  %2862 = vmatprep.subr.bf16.mxu0 0
  %2863 = vmatpush2.bf16.msra.mxu0 0
  %2864 = vmatprep.subr.bf16.mxu0 0
  %2865 = vmatpush2.bf16.msra.mxu0 0
  %2866 = vmatprep.mubr.bf16.mxu0 0
  %2867 = vmatmul.mubr.bf16.gmra.mxu0 %v2790
  %v2868 = vpop.f32.mrf.mxu0
  %v2869 = vadd.f32 0.0, %v2868
  %v2870 = vpop.f32.mrf.mxu0
  %v2871 = vadd.f32 0.0, %v2870
  %v2872 = vpop.f32.mrf.mxu0
  %v2873 = vadd.f32 0.0, %v2872
  %v2874 = vpop.f32.mrf.mxu0
  %v2875 = vadd.f32 0.0, %v2874
  %2876 = vdwg.mxu0
  %2877 = vmatprep.subr.bf16.mxu0 %v796
  %2878 = vmatpush1.bf16.msra.mxu0 %v795
  %2879 = vmatprep.subr.bf16.mxu0 %v790
  %2880 = vmatpush1.bf16.msra.mxu0 %v789
  %2881 = vmatprep.subr.bf16.mxu0 %v784
  %2882 = vmatpush1.bf16.msra.mxu0 %v783
  %2883 = vmatprep.subr.bf16.mxu0 %v778
  %2884 = vmatpush1.bf16.msra.mxu0 %v777
  %2885 = vmatprep.subr.bf16.mxu0 %v772
  %2886 = vmatpush1.bf16.msra.mxu0 %v771
  %2887 = vmatprep.subr.bf16.mxu0 %v766
  %2888 = vmatpush1.bf16.msra.mxu0 %v765
  %2889 = vmatprep.subr.bf16.mxu0 %v760
  %2890 = vmatpush1.bf16.msra.mxu0 %v759
  %2891 = vmatprep.subr.bf16.mxu0 %v754
  %2892 = vmatpush1.bf16.msra.mxu0 %v753
  %2893 = vmatprep.subr.bf16.mxu0 0
  %2894 = vmatpush2.bf16.msra.mxu0 0
  %2895 = vmatprep.subr.bf16.mxu0 0
  %2896 = vmatpush2.bf16.msra.mxu0 0
  %2897 = vmatprep.subr.bf16.mxu0 0
  %2898 = vmatpush2.bf16.msra.mxu0 0
  %2899 = vmatprep.subr.bf16.mxu0 0
  %2900 = vmatpush2.bf16.msra.mxu0 0
  %2901 = vmatprep.subr.bf16.mxu0 0
  %2902 = vmatpush2.bf16.msra.mxu0 0
  %2903 = vmatprep.subr.bf16.mxu0 0
  %2904 = vmatpush2.bf16.msra.mxu0 0
  %2905 = vmatprep.subr.bf16.mxu0 0
  %2906 = vmatpush2.bf16.msra.mxu0 0
  %2907 = vmatprep.subr.bf16.mxu0 0
  %2908 = vmatpush2.bf16.msra.mxu0 0
  %2909 = vmatprep.mubr.bf16.mxu0 0
  %2910 = vmatmul.mubr.bf16.gmra.mxu0 %v2790
  %v2911 = vpop.f32.mrf.mxu0
  %v2912 = vadd.f32 0.0, %v2911
  %v2913 = vpop.f32.mrf.mxu0
  %v2914 = vadd.f32 0.0, %v2913
  %v2915 = vpop.f32.mrf.mxu0
  %v2916 = vadd.f32 0.0, %v2915
  %v2917 = vpop.f32.mrf.mxu0
  %v2918 = vadd.f32 0.0, %v2917
  %2919 = vdwg.mxu0
  %v2920 = vpack.c.bf16 %v2739, %v2738
  %2921 = vmatprep.subr.bf16.mxu0 %v1320
  %2922 = vmatpush1.bf16.msra.mxu0 %v1319
  %2923 = vmatprep.subr.bf16.mxu0 %v1317
  %2924 = vmatpush1.bf16.msra.mxu0 %v1316
  %2925 = vmatprep.subr.bf16.mxu0 %v1314
  %2926 = vmatpush1.bf16.msra.mxu0 %v1313
  %2927 = vmatprep.subr.bf16.mxu0 %v1311
  %2928 = vmatpush1.bf16.msra.mxu0 %v1310
  %2929 = vmatprep.subr.bf16.mxu0 %v1308
  %2930 = vmatpush1.bf16.msra.mxu0 %v1307
  %2931 = vmatprep.subr.bf16.mxu0 %v1305
  %2932 = vmatpush1.bf16.msra.mxu0 %v1304
  %2933 = vmatprep.subr.bf16.mxu0 %v1302
  %2934 = vmatpush1.bf16.msra.mxu0 %v1301
  %2935 = vmatprep.subr.bf16.mxu0 %v1299
  %2936 = vmatpush1.bf16.msra.mxu0 %v1298
  %2937 = vmatprep.subr.bf16.mxu0 0
  %2938 = vmatpush2.bf16.msra.mxu0 0
  %2939 = vmatprep.subr.bf16.mxu0 0
  %2940 = vmatpush2.bf16.msra.mxu0 0
  %2941 = vmatprep.subr.bf16.mxu0 0
  %2942 = vmatpush2.bf16.msra.mxu0 0
  %2943 = vmatprep.subr.bf16.mxu0 0
  %2944 = vmatpush2.bf16.msra.mxu0 0
  %2945 = vmatprep.subr.bf16.mxu0 0
  %2946 = vmatpush2.bf16.msra.mxu0 0
  %2947 = vmatprep.subr.bf16.mxu0 0
  %2948 = vmatpush2.bf16.msra.mxu0 0
  %2949 = vmatprep.subr.bf16.mxu0 0
  %2950 = vmatpush2.bf16.msra.mxu0 0
  %2951 = vmatprep.subr.bf16.mxu0 0
  %2952 = vmatpush2.bf16.msra.mxu0 0
  %2953 = vmatprep.mubr.bf16.mxu0 0
  %2954 = vmatmul.mubr.bf16.gmra.mxu0 %v2920
  %v2955 = vpop.f32.mrf.mxu0
  %v2956 = vadd.f32 0.0, %v2955
  %v2957 = vpop.f32.mrf.mxu0
  %v2958 = vadd.f32 0.0, %v2957
  %v2959 = vpop.f32.mrf.mxu0
  %v2960 = vadd.f32 0.0, %v2959
  %v2961 = vpop.f32.mrf.mxu0
  %v2962 = vadd.f32 0.0, %v2961
  %2963 = vdwg.mxu0
  %2964 = vmatprep.subr.bf16.mxu0 0
  %2965 = vmatpush1.bf16.msra.mxu0 %v1321
  %2966 = vmatprep.subr.bf16.mxu0 0
  %2967 = vmatpush1.bf16.msra.mxu0 %v1318
  %2968 = vmatprep.subr.bf16.mxu0 0
  %2969 = vmatpush1.bf16.msra.mxu0 %v1315
  %2970 = vmatprep.subr.bf16.mxu0 0
  %2971 = vmatpush1.bf16.msra.mxu0 %v1312
  %2972 = vmatprep.subr.bf16.mxu0 0
  %2973 = vmatpush1.bf16.msra.mxu0 %v1309
  %2974 = vmatprep.subr.bf16.mxu0 0
  %2975 = vmatpush1.bf16.msra.mxu0 %v1306
  %2976 = vmatprep.subr.bf16.mxu0 0
  %2977 = vmatpush1.bf16.msra.mxu0 %v1303
  %2978 = vmatprep.subr.bf16.mxu0 0
  %2979 = vmatpush1.bf16.msra.mxu0 %v1300
  %2980 = vmatprep.subr.bf16.mxu0 0
  %2981 = vmatpush2.bf16.msra.mxu0 0
  %2982 = vmatprep.subr.bf16.mxu0 0
  %2983 = vmatpush2.bf16.msra.mxu0 0
  %2984 = vmatprep.subr.bf16.mxu0 0
  %2985 = vmatpush2.bf16.msra.mxu0 0
  %2986 = vmatprep.subr.bf16.mxu0 0
  %2987 = vmatpush2.bf16.msra.mxu0 0
  %2988 = vmatprep.subr.bf16.mxu0 0
  %2989 = vmatpush2.bf16.msra.mxu0 0
  %2990 = vmatprep.subr.bf16.mxu0 0
  %2991 = vmatpush2.bf16.msra.mxu0 0
  %2992 = vmatprep.subr.bf16.mxu0 0
  %2993 = vmatpush2.bf16.msra.mxu0 0
  %2994 = vmatprep.subr.bf16.mxu0 0
  %2995 = vmatpush2.bf16.msra.mxu0 0
  %2996 = vmatprep.mubr.bf16.mxu0 0
  %2997 = vmatmul.mubr.bf16.gmra.mxu0 %v2920
  %v2998 = vpop.f32.mrf.mxu0
  %v2999 = vadd.f32 0.0, %v2998
  %v3000 = vpop.f32.mrf.mxu0
  %v3001 = vpop.f32.mrf.mxu0
  %v3002 = vadd.f32 0.0, %v3001
  %v3003 = vpop.f32.mrf.mxu0
  %3004 = vdwg.mxu0
  %v3005 = vadd.f32 %v2826, %v2956
  %v3006 = vadd.f32 %v2828, %v2958
  %v3007 = vadd.f32 %v2830, %v2960
  %v3008 = vadd.f32 %v2832, %v2962
  %v3009 = vadd.f32 %v3005, %v978
  %v3010 = vadd.f32 %v3006, %v982
  %v3011 = vadd.f32 %v3007, %v978
  %v3012 = vadd.f32 %v3008, %v982
  %v3013 = vxor.u32 %v3009, 2147483648
  %v3014 = vxor.u32 %v3010, 2147483648
  %v3015 = vxor.u32 %v3011, 2147483648
  %v3016 = vxor.u32 %v3012, 2147483648
  %v3017 = vmul.f32 %v3013, 1.442695
  %v3018 = vpow.pop %v3017
  %v3019 = vmul.f32 %v3014, 1.442695
  %v3020 = vpow.pop %v3019
  %v3021 = vmul.f32 %v3015, 1.442695
  %v3022 = vpow.pop %v3021
  %v3023 = vmul.f32 %v3016, 1.442695
  %v3024 = vpow.pop %v3023
  %v3025 = vadd.f32 %v3018, 1.0
  %v3026 = vadd.f32 %v3020, 1.0
  %v3027 = vadd.f32 %v3022, 1.0
  %v3028 = vadd.f32 %v3024, 1.0
  %v3029 = vrcp.pop %v3025
  %v3030 = vmul.f32 1.0, %v3029
  %v3031 = vrcp.pop %v3026
  %v3032 = vmul.f32 1.0, %v3031
  %v3033 = vrcp.pop %v3027
  %v3034 = vmul.f32 1.0, %v3033
  %v3035 = vrcp.pop %v3028
  %v3036 = vmul.f32 1.0, %v3035
  %v3037 = vadd.f32 %v2869, %v1017
  %v3038 = vadd.f32 %v2873, %v1017
  %v3039 = vadd.f32 %v2999, %v1025
  %v3040 = vadd.f32 %v3002, %v1025
  %v3041 = vmul.f32 %v3030, %v3039
  %v3042 = vmul.f32 %v3034, %v3040
  %v3043 = vadd.f32 %v3037, %v3041
  %v3044 = vadd.f32 %v3038, %v3042
  %v3045 = vtanh.pop %v3043
  %v3046 = vtanh.pop %v3044
  %v3047 = vsub.f32 1.0, %v3032
  %v3048 = vsub.f32 1.0, %v3036
  %v3049 = vmul.f32 %v3047, %v3045
  %v3050 = vmul.f32 %v3048, %v3046
  %v3051 = vmul.f32 %v3032, %v2738
  %v3052 = vmul.f32 %v3036, %v2739
  %v3053 = vadd.f32 %v3049, %v3051
  %v3054 = vadd.f32 %v3050, %v3052
  %v3055 = vld [vmem:[#allocation2 + $0x150] sm:$0xff]
  %v3056 = vld [vmem:[#allocation2 + $0x158] sm:$0xff]
  %v3057 = vld [vmem:[#allocation2 + $0x160] sm:$0xff]
  %v3058 = vld [vmem:[#allocation2 + $0x168] sm:$0xff]
  %v3059 = vld [vmem:[#allocation2 + $0x170] sm:$0xff]
  %v3060 = vld [vmem:[#allocation2 + $0x178] sm:$0xff]
  %v3061 = vadd.f32 %v3055, %v2871
  %v3062 = vadd.f32 %v3056, %v2912
  %v3063 = vadd.f32 %v3058, %v2875
  %v3064 = vadd.f32 %v3059, %v2916
  %v3065 = vxor.u32 %v3061, 2147483648
  %v3066 = vxor.u32 %v3062, 2147483648
  %v3067 = vxor.u32 %v3063, 2147483648
  %v3068 = vxor.u32 %v3064, 2147483648
  %v3069 = vmul.f32 %v3065, 1.442695
  %v3070 = vpow.pop %v3069
  %v3071 = vmul.f32 %v3066, 1.442695
  %v3072 = vpow.pop %v3071
  %v3073 = vmul.f32 %v3067, 1.442695
  %v3074 = vpow.pop %v3073
  %v3075 = vmul.f32 %v3068, 1.442695
  %v3076 = vpow.pop %v3075
  %v3077 = vadd.f32 %v3070, 1.0
  %v3078 = vadd.f32 %v3072, 1.0
  %v3079 = vadd.f32 %v3074, 1.0
  %v3080 = vadd.f32 %v3076, 1.0
  %v3081 = vrcp.pop %v3077
  %v3082 = vmul.f32 1.0, %v3081
  %v3083 = vrcp.pop %v3078
  %v3084 = vmul.f32 1.0, %v3083
  %v3085 = vrcp.pop %v3079
  %v3086 = vmul.f32 1.0, %v3085
  %v3087 = vrcp.pop %v3080
  %v3088 = vmul.f32 1.0, %v3087
  %v3089 = vadd.f32 %v2914, %v592
  %v3090 = vadd.f32 %v2918, %v592
  %v3091 = vmul.f32 %v3082, %v3089
  %v3092 = vmul.f32 %v3086, %v3090
  %v3093 = vadd.f32 %v3057, %v3091
  %v3094 = vadd.f32 %v3060, %v3092
  %v3095 = vtanh.pop %v3093
  %v3096 = vtanh.pop %v3094
  %v3097 = vsub.f32 1.0, %v3084
  %v3098 = vsub.f32 1.0, %v3088
  %v3099 = vmul.f32 %v3097, %v3095
  %v3100 = vmul.f32 %v3098, %v3096
  %v3101 = vmul.f32 %v3084, %v2788
  %v3102 = vmul.f32 %v3088, %v2789
  %v3103 = vadd.f32 %v3099, %v3101
  %v3104 = vadd.f32 %v3100, %v3102
  %v3105 = vpack.c.bf16 %v3104, %v3103
  %3106 = vmatprep.subr.bf16.mxu0 %v792
  %3107 = vmatpush1.bf16.msra.mxu0 %v791
  %3108 = vmatprep.subr.bf16.mxu0 %v786
  %3109 = vmatpush1.bf16.msra.mxu0 %v785
  %3110 = vmatprep.subr.bf16.mxu0 %v780
  %3111 = vmatpush1.bf16.msra.mxu0 %v779
  %3112 = vmatprep.subr.bf16.mxu0 %v774
  %3113 = vmatpush1.bf16.msra.mxu0 %v773
  %3114 = vmatprep.subr.bf16.mxu0 %v768
  %3115 = vmatpush1.bf16.msra.mxu0 %v767
  %3116 = vmatprep.subr.bf16.mxu0 %v762
  %3117 = vmatpush1.bf16.msra.mxu0 %v761
  %3118 = vmatprep.subr.bf16.mxu0 %v756
  %3119 = vmatpush1.bf16.msra.mxu0 %v755
  %3120 = vmatprep.subr.bf16.mxu0 %v750
  %3121 = vmatpush1.bf16.msra.mxu0 %v749
  %3122 = vmatprep.subr.bf16.mxu0 0
  %3123 = vmatpush2.bf16.msra.mxu0 0
  %3124 = vmatprep.subr.bf16.mxu0 0
  %3125 = vmatpush2.bf16.msra.mxu0 0
  %3126 = vmatprep.subr.bf16.mxu0 0
  %3127 = vmatpush2.bf16.msra.mxu0 0
  %3128 = vmatprep.subr.bf16.mxu0 0
  %3129 = vmatpush2.bf16.msra.mxu0 0
  %3130 = vmatprep.subr.bf16.mxu0 0
  %3131 = vmatpush2.bf16.msra.mxu0 0
  %3132 = vmatprep.subr.bf16.mxu0 0
  %3133 = vmatpush2.bf16.msra.mxu0 0
  %3134 = vmatprep.subr.bf16.mxu0 0
  %3135 = vmatpush2.bf16.msra.mxu0 0
  %3136 = vmatprep.subr.bf16.mxu0 0
  %3137 = vmatpush2.bf16.msra.mxu0 0
  %3138 = vmatprep.mubr.bf16.mxu0 0
  %3139 = vmatmul.mubr.bf16.gmra.mxu0 %v3105
  %v3140 = vpop.f32.mrf.mxu0
  %v3141 = vadd.f32 0.0, %v3140
  %v3142 = vpop.f32.mrf.mxu0
  %v3143 = vadd.f32 0.0, %v3142
  %v3144 = vpop.f32.mrf.mxu0
  %v3145 = vadd.f32 0.0, %v3144
  %v3146 = vpop.f32.mrf.mxu0
  %v3147 = vadd.f32 0.0, %v3146
  %3148 = vdwg.mxu0
  %3149 = vmatprep.subr.bf16.mxu0 0
  %3150 = vmatpush1.bf16.msra.mxu0 %v793
  %3151 = vmatprep.subr.bf16.mxu0 0
  %3152 = vmatpush1.bf16.msra.mxu0 %v787
  %3153 = vmatprep.subr.bf16.mxu0 0
  %3154 = vmatpush1.bf16.msra.mxu0 %v781
  %3155 = vmatprep.subr.bf16.mxu0 0
  %3156 = vmatpush1.bf16.msra.mxu0 %v775
  %3157 = vmatprep.subr.bf16.mxu0 0
  %3158 = vmatpush1.bf16.msra.mxu0 %v769
  %3159 = vmatprep.subr.bf16.mxu0 0
  %3160 = vmatpush1.bf16.msra.mxu0 %v763
  %3161 = vmatprep.subr.bf16.mxu0 0
  %3162 = vmatpush1.bf16.msra.mxu0 %v757
  %3163 = vmatprep.subr.bf16.mxu0 0
  %3164 = vmatpush1.bf16.msra.mxu0 %v751
  %3165 = vmatprep.subr.bf16.mxu0 0
  %3166 = vmatpush2.bf16.msra.mxu0 0
  %3167 = vmatprep.subr.bf16.mxu0 0
  %3168 = vmatpush2.bf16.msra.mxu0 0
  %3169 = vmatprep.subr.bf16.mxu0 0
  %3170 = vmatpush2.bf16.msra.mxu0 0
  %3171 = vmatprep.subr.bf16.mxu0 0
  %3172 = vmatpush2.bf16.msra.mxu0 0
  %3173 = vmatprep.subr.bf16.mxu0 0
  %3174 = vmatpush2.bf16.msra.mxu0 0
  %3175 = vmatprep.subr.bf16.mxu0 0
  %3176 = vmatpush2.bf16.msra.mxu0 0
  %3177 = vmatprep.subr.bf16.mxu0 0
  %3178 = vmatpush2.bf16.msra.mxu0 0
  %3179 = vmatprep.subr.bf16.mxu0 0
  %3180 = vmatpush2.bf16.msra.mxu0 0
  %3181 = vmatprep.mubr.bf16.mxu0 0
  %3182 = vmatmul.mubr.bf16.gmra.mxu0 %v3105
  %v3183 = vpop.f32.mrf.mxu0
  %v3184 = vadd.f32 0.0, %v3183
  %v3185 = vpop.f32.mrf.mxu0
  %v3186 = vpop.f32.mrf.mxu0
  %v3187 = vadd.f32 0.0, %v3186
  %v3188 = vpop.f32.mrf.mxu0
  %3189 = vdwg.mxu0
  %v3190 = vpack.c.bf16 %v3054, %v3053
  %3191 = vmatprep.subr.bf16.mxu0 %v1320
  %3192 = vmatpush1.bf16.msra.mxu0 %v1319
  %3193 = vmatprep.subr.bf16.mxu0 %v1317
  %3194 = vmatpush1.bf16.msra.mxu0 %v1316
  %3195 = vmatprep.subr.bf16.mxu0 %v1314
  %3196 = vmatpush1.bf16.msra.mxu0 %v1313
  %3197 = vmatprep.subr.bf16.mxu0 %v1311
  %3198 = vmatpush1.bf16.msra.mxu0 %v1310
  %3199 = vmatprep.subr.bf16.mxu0 %v1308
  %3200 = vmatpush1.bf16.msra.mxu0 %v1307
  %3201 = vmatprep.subr.bf16.mxu0 %v1305
  %3202 = vmatpush1.bf16.msra.mxu0 %v1304
  %3203 = vmatprep.subr.bf16.mxu0 %v1302
  %3204 = vmatpush1.bf16.msra.mxu0 %v1301
  %3205 = vmatprep.subr.bf16.mxu0 %v1299
  %3206 = vmatpush1.bf16.msra.mxu0 %v1298
  %3207 = vmatprep.subr.bf16.mxu0 0
  %3208 = vmatpush2.bf16.msra.mxu0 0
  %3209 = vmatprep.subr.bf16.mxu0 0
  %3210 = vmatpush2.bf16.msra.mxu0 0
  %3211 = vmatprep.subr.bf16.mxu0 0
  %3212 = vmatpush2.bf16.msra.mxu0 0
  %3213 = vmatprep.subr.bf16.mxu0 0
  %3214 = vmatpush2.bf16.msra.mxu0 0
  %3215 = vmatprep.subr.bf16.mxu0 0
  %3216 = vmatpush2.bf16.msra.mxu0 0
  %3217 = vmatprep.subr.bf16.mxu0 0
  %3218 = vmatpush2.bf16.msra.mxu0 0
  %3219 = vmatprep.subr.bf16.mxu0 0
  %3220 = vmatpush2.bf16.msra.mxu0 0
  %3221 = vmatprep.subr.bf16.mxu0 0
  %3222 = vmatpush2.bf16.msra.mxu0 0
  %3223 = vmatprep.mubr.bf16.mxu0 0
  %3224 = vmatmul.mubr.bf16.gmra.mxu0 %v3190
  %v3225 = vpop.f32.mrf.mxu0
  %v3226 = vadd.f32 0.0, %v3225
  %v3227 = vpop.f32.mrf.mxu0
  %v3228 = vadd.f32 0.0, %v3227
  %v3229 = vpop.f32.mrf.mxu0
  %v3230 = vadd.f32 0.0, %v3229
  %v3231 = vpop.f32.mrf.mxu0
  %v3232 = vadd.f32 0.0, %v3231
  %3233 = vdwg.mxu0
  %3234 = vmatprep.subr.bf16.mxu0 0
  %3235 = vmatpush1.bf16.msra.mxu0 %v1321
  %3236 = vmatprep.subr.bf16.mxu0 0
  %3237 = vmatpush1.bf16.msra.mxu0 %v1318
  %3238 = vmatprep.subr.bf16.mxu0 0
  %3239 = vmatpush1.bf16.msra.mxu0 %v1315
  %3240 = vmatprep.subr.bf16.mxu0 0
  %3241 = vmatpush1.bf16.msra.mxu0 %v1312
  %3242 = vmatprep.subr.bf16.mxu0 0
  %3243 = vmatpush1.bf16.msra.mxu0 %v1309
  %3244 = vmatprep.subr.bf16.mxu0 0
  %3245 = vmatpush1.bf16.msra.mxu0 %v1306
  %3246 = vmatprep.subr.bf16.mxu0 0
  %3247 = vmatpush1.bf16.msra.mxu0 %v1303
  %3248 = vmatprep.subr.bf16.mxu0 0
  %3249 = vmatpush1.bf16.msra.mxu0 %v1300
  %3250 = vmatprep.subr.bf16.mxu0 0
  %3251 = vmatpush2.bf16.msra.mxu0 0
  %3252 = vmatprep.subr.bf16.mxu0 0
  %3253 = vmatpush2.bf16.msra.mxu0 0
  %3254 = vmatprep.subr.bf16.mxu0 0
  %3255 = vmatpush2.bf16.msra.mxu0 0
  %3256 = vmatprep.subr.bf16.mxu0 0
  %3257 = vmatpush2.bf16.msra.mxu0 0
  %3258 = vmatprep.subr.bf16.mxu0 0
  %3259 = vmatpush2.bf16.msra.mxu0 0
  %3260 = vmatprep.subr.bf16.mxu0 0
  %3261 = vmatpush2.bf16.msra.mxu0 0
  %3262 = vmatprep.subr.bf16.mxu0 0
  %3263 = vmatpush2.bf16.msra.mxu0 0
  %3264 = vmatprep.subr.bf16.mxu0 0
  %3265 = vmatpush2.bf16.msra.mxu0 0
  %3266 = vmatprep.mubr.bf16.mxu0 0
  %3267 = vmatmul.mubr.bf16.gmra.mxu0 %v3190
  %v3268 = vpop.f32.mrf.mxu0
  %v3269 = vadd.f32 0.0, %v3268
  %v3270 = vpop.f32.mrf.mxu0
  %v3271 = vpop.f32.mrf.mxu0
  %v3272 = vadd.f32 0.0, %v3271
  %v3273 = vpop.f32.mrf.mxu0
  %3274 = vdwg.mxu0
  %v3275 = vadd.f32 %v3141, %v3226
  %v3276 = vadd.f32 %v3143, %v3228
  %v3277 = vadd.f32 %v3145, %v3230
  %v3278 = vadd.f32 %v3147, %v3232
  %v3279 = vadd.f32 %v3275, %v978
  %v3280 = vadd.f32 %v3276, %v982
  %v3281 = vadd.f32 %v3277, %v978
  %v3282 = vadd.f32 %v3278, %v982
  %v3283 = vxor.u32 %v3279, 2147483648
  %v3284 = vxor.u32 %v3280, 2147483648
  %v3285 = vxor.u32 %v3281, 2147483648
  %v3286 = vxor.u32 %v3282, 2147483648
  %v3287 = vmul.f32 %v3283, 1.442695
  %v3288 = vpow.pop %v3287
  %v3289 = vmul.f32 %v3284, 1.442695
  %v3290 = vpow.pop %v3289
  %v3291 = vmul.f32 %v3285, 1.442695
  %v3292 = vpow.pop %v3291
  %v3293 = vmul.f32 %v3286, 1.442695
  %v3294 = vpow.pop %v3293
  %v3295 = vadd.f32 %v3288, 1.0
  %v3296 = vadd.f32 %v3290, 1.0
  %v3297 = vadd.f32 %v3292, 1.0
  %v3298 = vadd.f32 %v3294, 1.0
  %v3299 = vrcp.pop %v3295
  %v3300 = vmul.f32 1.0, %v3299
  %v3301 = vrcp.pop %v3296
  %v3302 = vmul.f32 1.0, %v3301
  %v3303 = vrcp.pop %v3297
  %v3304 = vmul.f32 1.0, %v3303
  %v3305 = vrcp.pop %v3298
  %v3306 = vmul.f32 1.0, %v3305
  %v3307 = vadd.f32 %v3184, %v1017
  %v3308 = vadd.f32 %v3187, %v1017
  %v3309 = vadd.f32 %v3269, %v1025
  %v3310 = vadd.f32 %v3272, %v1025
  %v3311 = vmul.f32 %v3300, %v3309
  %v3312 = vmul.f32 %v3304, %v3310
  %v3313 = vadd.f32 %v3307, %v3311
  %v3314 = vadd.f32 %v3308, %v3312
  %v3315 = vtanh.pop %v3313
  %v3316 = vtanh.pop %v3314
  %v3317 = vsub.f32 1.0, %v3302
  %v3318 = vsub.f32 1.0, %v3306
  %v3319 = vmul.f32 %v3317, %v3315
  %v3320 = vmul.f32 %v3318, %v3316
  %v3321 = vmul.f32 %v3302, %v3053
  %v3322 = vmul.f32 %v3306, %v3054
  %v3323 = vadd.f32 %v3319, %v3321
  %v3324 = vadd.f32 %v3320, %v3322
  %v3325 = vld [vmem:[%s8] sm:$0xff]
  %v3326 = vld [vmem:[%s8 + $0x8] sm:$0xff]
  %v3327 = vld [vmem:[%s8 + $0x10] sm:$0xff]
  %v3328 = vld [vmem:[%s8 + $0x18] sm:$0xff]
  %v3329 = vld [vmem:[%s8 + $0x20] sm:$0xff]
  %v3330 = vld [vmem:[%s8 + $0x28] sm:$0xff]
  %v3331 = vld [vmem:[%s8 + $0x30] sm:$0xff]
  %v3332 = vld [vmem:[%s8 + $0x38] sm:$0xff]
  %v3333 = vld [vmem:[%s8 + $0x40] sm:$0xff]
  %v3334 = vld [vmem:[%s8 + $0x48] sm:$0xff]
  %v3335 = vld [vmem:[%s8 + $0x50] sm:$0xff]
  %v3336 = vld [vmem:[%s8 + $0x58] sm:$0xff]
  %v3337 = vld [vmem:[%s8 + $0x60] sm:$0xff]
  %v3338 = vld [vmem:[%s8 + $0x68] sm:$0xff]
  %v3339 = vld [vmem:[%s8 + $0x70] sm:$0xff]
  %v3340 = vld [vmem:[%s8 + $0x78] sm:$0xff]
  %v3341 = vld [vmem:[%s9] sm:$0x1]
  %v3343 = vlaneseq
  %v3344 = vshrl.u32 %v3343, 7
  %v3345 = vsub.s32 0, %v3344
  %v3346 = vrot.slane %v3341, %v3345
  %3348 = vmatprep.subr.mxu0 0.0
  %3349 = vmatpush1.msra.mxu0 %v3340
  %3350 = vmatprep.subr.mxu0 0.0
  %3351 = vmatpush1.msra.mxu0 %v3339
  %3352 = vmatprep.subr.mxu0 0.0
  %3353 = vmatpush1.msra.mxu0 %v3338
  %3354 = vmatprep.subr.mxu0 0.0
  %3355 = vmatpush1.msra.mxu0 %v3337
  %3356 = vmatprep.subr.mxu0 0.0
  %3357 = vmatpush1.msra.mxu0 %v3336
  %3358 = vmatprep.subr.mxu0 0.0
  %3359 = vmatpush1.msra.mxu0 %v3335
  %3360 = vmatprep.subr.mxu0 0.0
  %3361 = vmatpush1.msra.mxu0 %v3334
  %3362 = vmatprep.subr.mxu0 0.0
  %3363 = vmatpush1.msra.mxu0 %v3333
  %3364 = vmatprep.subr.mxu0 0.0
  %3365 = vmatpush1.msra.mxu0 %v3332
  %3366 = vmatprep.subr.mxu0 0.0
  %3367 = vmatpush1.msra.mxu0 %v3331
  %3368 = vmatprep.subr.mxu0 0.0
  %3369 = vmatpush1.msra.mxu0 %v3330
  %3370 = vmatprep.subr.mxu0 0.0
  %3371 = vmatpush1.msra.mxu0 %v3329
  %3372 = vmatprep.subr.mxu0 0.0
  %3373 = vmatpush1.msra.mxu0 %v3328
  %3374 = vmatprep.subr.mxu0 0.0
  %3375 = vmatpush1.msra.mxu0 %v3327
  %3376 = vmatprep.subr.mxu0 0.0
  %3377 = vmatpush1.msra.mxu0 %v3326
  %3378 = vmatprep.subr.mxu0 0.0
  %3379 = vmatpush1.msra.mxu0 %v3325
  %3380 = vmatprep.subr.mxu0 0.0
  %3381 = vmatpush2.msra.mxu0 0.0
  %3382 = vmatprep.subr.mxu0 0.0
  %3383 = vmatpush2.msra.mxu0 0.0
  %3384 = vmatprep.subr.mxu0 0.0
  %3385 = vmatpush2.msra.mxu0 0.0
  %3386 = vmatprep.subr.mxu0 0.0
  %3387 = vmatpush2.msra.mxu0 0.0
  %3388 = vmatprep.subr.mxu0 0.0
  %3389 = vmatpush2.msra.mxu0 0.0
  %3390 = vmatprep.subr.mxu0 0.0
  %3391 = vmatpush2.msra.mxu0 0.0
  %3392 = vmatprep.subr.mxu0 0.0
  %3393 = vmatpush2.msra.mxu0 0.0
  %3394 = vmatprep.subr.mxu0 0.0
  %3395 = vmatpush2.msra.mxu0 0.0
  %3396 = vmatprep.subr.mxu0 0.0
  %3397 = vmatpush2.msra.mxu0 0.0
  %3398 = vmatprep.subr.mxu0 0.0
  %3399 = vmatpush2.msra.mxu0 0.0
  %3400 = vmatprep.subr.mxu0 0.0
  %3401 = vmatpush2.msra.mxu0 0.0
  %3402 = vmatprep.subr.mxu0 0.0
  %3403 = vmatpush2.msra.mxu0 0.0
  %3404 = vmatprep.subr.mxu0 0.0
  %3405 = vmatpush2.msra.mxu0 0.0
  %3406 = vmatprep.subr.mxu0 0.0
  %3407 = vmatpush2.msra.mxu0 0.0
  %3408 = vmatprep.subr.mxu0 0.0
  %3409 = vmatpush2.msra.mxu0 0.0
  %3410 = vmatprep.subr.mxu0 0.0
  %3411 = vmatpush2.msra.mxu0 0.0
  %3412 = vmatprep.mubr.f32.mxu0 0.0
  %3413 = vmatmul.mubr.f32.gmra.mxu0 %v3323
  %v3414 = vpop.f32.mrf.mxu0
  %v3415 = vadd.f32 %v3346, %v3414
  %v3416 = vpop.f32.mrf.mxu0
  %3417 = vmatprep.mubr.f32.mxu0 0.0
  %3418 = vmatmul.mubr.f32.gmra.mxu0 %v3324
  %v3419 = vpop.f32.mrf.mxu0
  %v3420 = vadd.f32 %v3346, %v3419
  %v3421 = vpop.f32.mrf.mxu0
  %3422 = vdwg.mxu0
  %v3423 = vmax.f32 %v3415, 0.0
  %v3424 = vmax.f32 %v3420, 0.0
  %v3425 = vld [vmem:[%s10] sm:$0xff]
  %v3426 = vld [vmem:[%s10 + $0x8] sm:$0xff]
  %v3427 = vld [vmem:[%s10 + $0x10] sm:$0xff]
  %v3428 = vld [vmem:[%s10 + $0x18] sm:$0xff]
  %v3429 = vld [vmem:[%s10 + $0x20] sm:$0xff]
  %v3430 = vld [vmem:[%s10 + $0x28] sm:$0xff]
  %v3431 = vld [vmem:[%s10 + $0x30] sm:$0xff]
  %v3432 = vld [vmem:[%s10 + $0x38] sm:$0xff]
  %v3433 = vld [vmem:[%s11] sm:$0x1]
  %v3435 = vlaneseq
  %v3436 = vshrl.u32 %v3435, 7
  %v3437 = vsub.s32 0, %v3436
  %v3438 = vrot.slane %v3433, %v3437
  %vm3440 = vcmask 523264
  %v3442 = vsel %vm3440, %v3423, 0
  %v3445 = vsel %vm3440, %v3424, 0
  %3447 = vmatprep.subr.mxu0 0.0
  %3448 = vmatpush1.msra.mxu0 0.0
  %3449 = vmatprep.subr.mxu0 0.0
  %3450 = vmatpush1.msra.mxu0 0.0
  %3451 = vmatprep.subr.mxu0 0.0
  %3452 = vmatpush1.msra.mxu0 0.0
  %3453 = vmatprep.subr.mxu0 0.0
  %3454 = vmatpush1.msra.mxu0 0.0
  %3455 = vmatprep.subr.mxu0 0.0
  %3456 = vmatpush1.msra.mxu0 0.0
  %3457 = vmatprep.subr.mxu0 0.0
  %3458 = vmatpush1.msra.mxu0 0.0
  %3459 = vmatprep.subr.mxu0 0.0
  %3460 = vmatpush1.msra.mxu0 0.0
  %3461 = vmatprep.subr.mxu0 0.0
  %3462 = vmatpush1.msra.mxu0 0.0
  %3463 = vmatprep.subr.mxu0 0.0
  %3464 = vmatpush1.msra.mxu0 %v3432
  %3465 = vmatprep.subr.mxu0 0.0
  %3466 = vmatpush1.msra.mxu0 %v3431
  %3467 = vmatprep.subr.mxu0 0.0
  %3468 = vmatpush1.msra.mxu0 %v3430
  %3469 = vmatprep.subr.mxu0 0.0
  %3470 = vmatpush1.msra.mxu0 %v3429
  %3471 = vmatprep.subr.mxu0 0.0
  %3472 = vmatpush1.msra.mxu0 %v3428
  %3473 = vmatprep.subr.mxu0 0.0
  %3474 = vmatpush1.msra.mxu0 %v3427
  %3475 = vmatprep.subr.mxu0 0.0
  %3476 = vmatpush1.msra.mxu0 %v3426
  %3477 = vmatprep.subr.mxu0 0.0
  %3478 = vmatpush1.msra.mxu0 %v3425
  %3479 = vmatprep.subr.mxu0 0.0
  %3480 = vmatpush2.msra.mxu0 0.0
  %3481 = vmatprep.subr.mxu0 0.0
  %3482 = vmatpush2.msra.mxu0 0.0
  %3483 = vmatprep.subr.mxu0 0.0
  %3484 = vmatpush2.msra.mxu0 0.0
  %3485 = vmatprep.subr.mxu0 0.0
  %3486 = vmatpush2.msra.mxu0 0.0
  %3487 = vmatprep.subr.mxu0 0.0
  %3488 = vmatpush2.msra.mxu0 0.0
  %3489 = vmatprep.subr.mxu0 0.0
  %3490 = vmatpush2.msra.mxu0 0.0
  %3491 = vmatprep.subr.mxu0 0.0
  %3492 = vmatpush2.msra.mxu0 0.0
  %3493 = vmatprep.subr.mxu0 0.0
  %3494 = vmatpush2.msra.mxu0 0.0
  %3495 = vmatprep.subr.mxu0 0.0
  %3496 = vmatpush2.msra.mxu0 0.0
  %3497 = vmatprep.subr.mxu0 0.0
  %3498 = vmatpush2.msra.mxu0 0.0
  %3499 = vmatprep.subr.mxu0 0.0
  %3500 = vmatpush2.msra.mxu0 0.0
  %3501 = vmatprep.subr.mxu0 0.0
  %3502 = vmatpush2.msra.mxu0 0.0
  %3503 = vmatprep.subr.mxu0 0.0
  %3504 = vmatpush2.msra.mxu0 0.0
  %3505 = vmatprep.subr.mxu0 0.0
  %3506 = vmatpush2.msra.mxu0 0.0
  %3507 = vmatprep.subr.mxu0 0.0
  %3508 = vmatpush2.msra.mxu0 0.0
  %3509 = vmatprep.subr.mxu0 0.0
  %3510 = vmatpush2.msra.mxu0 0.0
  %3511 = vmatprep.mubr.f32.mxu0 0.0
  %3512 = vmatmul.mubr.f32.gmra.mxu0 %v3442
  %v3513 = vpop.f32.mrf.mxu0
  %v3514 = vadd.f32 %v3438, %v3513
  %v3515 = vpop.f32.mrf.mxu0
  %3516 = vmatprep.mubr.f32.mxu0 0.0
  %3517 = vmatmul.mubr.f32.gmra.mxu0 %v3445
  %v3518 = vpop.f32.mrf.mxu0
  %v3519 = vadd.f32 %v3438, %v3518
  %v3520 = vpop.f32.mrf.mxu0
  %3521 = vdwg.mxu0
  %vm3522 = vcmask 39936
  %3523 = vst.msk [vmem:[%s12] sm:$0xff] %vm3522, %v3514
  %3524 = vst.msk [vmem:[%s12 + $0x8] sm:$0xff] %vm3522, %v3519
  // Predicated region
  $region50: #{emotion_seq2beh_forward.1} parent=0 // pred_check
    _
  $region51: #{emotion_seq2beh_forward.1} parent=0 // pred_check_branch
    %3526 = sbr.rel (0) target = $region53
  $region52: #{emotion_seq2beh_forward.1} parent=0 // pred_region
    _
  $region53: #{emotion_seq2beh_forward.1} parent=0 // pred_fallthru
    _
  // Predicated region
  $region54: #{emotion_seq2beh_forward.1} parent=0 // pred_check
    _
  $region55: #{emotion_seq2beh_forward.1} parent=0 // pred_check_branch
    %3528 = sbr.rel (0) target = $region57
  $region56: #{emotion_seq2beh_forward.1} parent=0 // pred_region
    _
  $region57: #{emotion_seq2beh_forward.1} parent=0 // pred_fallthru
    _

</llo_original>
